<compile_context>
chip_gen: v5e
topology: v5e:2x2
jax: 0.10.0
libtpu: 0.0.40
codegen_flags: <defaults>
</compile_context>

<pallas_src>
import jax
import jax.numpy as jnp
from jax.experimental import pallas as pl
from jax.experimental.pallas import tpu as pltpu


# ----------------------------- Pallas kernels ------------------------------

def _conv_pool_kernel(p_ref, w_ref, b_ref, o_ref):
    """Fused conv (4 parity matmuls) + bias + ReLU + 2x2 maxpool for 1 sample.

    p_ref: (1, 4, Q, F)  im2col patches grouped by 2x2-pool-window parity
                         (dh, dw); Q = pooled H*W, F = 9*Cin.
    w_ref: (F, Cout)     bf16 reshaped conv weight.
    b_ref: (1, Cout)     f32 bias.
    o_ref: (1, Q, Cout)  pooled activations, rows in (ho, wo) order.

    relu(maxpool(conv + b)) == relu(max_parity(patches_p @ W) + b) because the
    bias is shared across the window and bias-add / ReLU are monotone.
    """
    w = w_ref[...]
    a0 = jnp.dot(p_ref[0, 0, :, :].astype(w.dtype), w,
                 preferred_element_type=jnp.float32)
    a1 = jnp.dot(p_ref[0, 1, :, :].astype(w.dtype), w,
                 preferred_element_type=jnp.float32)
    a2 = jnp.dot(p_ref[0, 2, :, :].astype(w.dtype), w,
                 preferred_element_type=jnp.float32)
    a3 = jnp.dot(p_ref[0, 3, :, :].astype(w.dtype), w,
                 preferred_element_type=jnp.float32)
    m = jnp.maximum(jnp.maximum(a0, a1), jnp.maximum(a2, a3))
    y = jnp.maximum(m + b_ref[...], 0.0)
    o_ref[0, :, :] = y.astype(o_ref.dtype)


def _fc_fused_kernel(x_ref, w1_ref, b1_ref, w2_ref, b2_ref, o_ref):
    """Fused fc1 + ReLU + fc2; the (bm, 128) intermediate never leaves VMEM."""
    h = jnp.dot(x_ref[...].astype(jnp.bfloat16), w1_ref[...],
                preferred_element_type=jnp.float32)
    h = jnp.maximum(h + b1_ref[...], 0.0)
    o = jnp.dot(h.astype(jnp.bfloat16), w2_ref[...],
                preferred_element_type=jnp.float32)
    o_ref[...] = (o + b2_ref[...]).astype(o_ref.dtype)


# ------------------------------ kernel wrappers ------------------------------

def conv_pool(patches, w, b, *, out_dtype=jnp.bfloat16):
    """patches: (N, 4, Q, F); w: (F, Cout) bf16; b: (1, Cout) f32 -> (N, Q, Cout)."""
    N, P, Q, F = patches.shape
    Cout = w.shape[1]
    flops = 2 * N * P * Q * F * Cout
    bytes_accessed = int(patches.size * patches.dtype.itemsize
                         + w.size * w.dtype.itemsize
                         + N * Q * Cout * jnp.dtype(out_dtype).itemsize)
    return pl.pallas_call(
        _conv_pool_kernel,
        out_shape=jax.ShapeDtypeStruct((N, Q, Cout), out_dtype),
        grid=(N,),
        in_specs=[
            pl.BlockSpec((1, P, Q, F), lambda i: (i, 0, 0, 0)),
            pl.BlockSpec((F, Cout), lambda i: (0, 0)),
            pl.BlockSpec((1, Cout), lambda i: (0, 0)),
        ],
        out_specs=pl.BlockSpec((1, Q, Cout), lambda i: (i, 0, 0)),
        compiler_params=pltpu.CompilerParams(dimension_semantics=("parallel",)),
        cost_estimate=pl.CostEstimate(flops=flops, transcendentals=0,
                                      bytes_accessed=bytes_accessed),
    )(patches, w, b)


def _pick_block_m(m, cap=256):
    """Largest multiple of 8 that divides m and is <= cap (m is 8-aligned)."""
    best = 8
    for bm in range(8, min(m, cap) + 1, 8):
        if m % bm == 0:
            best = bm
    return best


def fc_fused(x, w1, b1, w2, b2):
    """logits = (relu(x @ w1 + b1)) @ w2 + b2, one kernel, bounded row tiles."""
    M, K = x.shape
    H = w1.shape[1]
    O = w2.shape[1]
    Mp = ((M + 7) // 8) * 8            # 8-aligned row count (pad with zero rows)
    if Mp != M:
        x = jnp.pad(x, ((0, Mp - M), (0, 0)))
    bm = _pick_block_m(Mp)             # bounded block -> VMEM-safe on v7x
    flops = 2 * Mp * K * H + 2 * Mp * H * O
    bytes_accessed = int(x.size * x.dtype.itemsize
                         + w1.size * w1.dtype.itemsize
                         + w2.size * w2.dtype.itemsize + Mp * O * 4)
    out = pl.pallas_call(
        _fc_fused_kernel,
        out_shape=jax.ShapeDtypeStruct((Mp, O), jnp.float32),
        grid=(Mp // bm,),
        in_specs=[
            pl.BlockSpec((bm, K), lambda i: (i, 0)),
            pl.BlockSpec((K, H), lambda i: (0, 0)),
            pl.BlockSpec((1, H), lambda i: (0, 0)),
            pl.BlockSpec((H, O), lambda i: (0, 0)),
            pl.BlockSpec((1, O), lambda i: (0, 0)),
        ],
        out_specs=pl.BlockSpec((bm, O), lambda i: (i, 0)),
        compiler_params=pltpu.CompilerParams(dimension_semantics=("parallel",)),
        cost_estimate=pl.CostEstimate(flops=flops, transcendentals=0,
                                      bytes_accessed=bytes_accessed),
    )(x, w1, b1, w2, b2)
    return out[:M] if Mp != M else out


# ------------------------------ XLA glue ------------------------------------

def _pool_ordered_patches(x_nhwc):
    """im2col for a 3x3 / pad-1 conv, rows grouped by 2x2-pool parity.

    Returns (N, 4, Ho*Wo, 9*Cin): axis 1 = pooling-window parity (dh, dw);
    rows within a parity are the pooled positions (ho, wo); features ordered
    (kh, kw, ci) to match w_hwio.reshape(9*Cin, Cout).  One fused XLA
    pad/strided-slice/concat produces the single patch buffer fed to Pallas.
    """
    N, H, W, Cin = x_nhwc.shape
    assert H % 2 == 0 and W % 2 == 0
    Ho, Wo = H // 2, W // 2
    xp = jnp.pad(x_nhwc, ((0, 0), (1, 1), (1, 1), (0, 0)))
    blocks = []
    for dh in (0, 1):
        for dw in (0, 1):
            taps = [xp[:, dh + kh:dh + kh + H:2, dw + kw:dw + kw + W:2, :]
                    for kh in range(3) for kw in range(3)]
            blocks.append(
                jnp.concatenate(taps, axis=-1).reshape(N, Ho * Wo, 9 * Cin))
    return jnp.stack(blocks, axis=1)


# ------------------------------ forward pass --------------------------------

def number_classifier_forward(x_nchw, kp):
    """Matches NumberClassifier.forward: returns f32 logits of shape (N, 10)."""
    N = x_nchw.shape[0]
    x = jnp.transpose(x_nchw, (0, 2, 3, 1))                   # (N, 28, 28, 1)
    # conv1 + ReLU + pool -> (N, 14*14, 32) bf16, rows in (ho, wo) order
    y1 = conv_pool(_pool_ordered_patches(x), kp["w1"], kp["b1"])
    # conv2 + ReLU + pool -> (N, 7*7, 64) bf16
    x2 = y1.reshape(N, 14, 14, 32)
    y2 = conv_pool(_pool_ordered_patches(x2), kp["w2"], kp["b2"])
    # flatten in NHWC order; kp["wf1"] rows were permuted once to match
    # PyTorch's NCHW view(-1, 64*7*7) -- no transpose on the hot path.
    xf = y2.reshape(N, 64 * 7 * 7)
    return fc_fused(xf, kp["wf1"], kp["bf1"], kp["wf2"], kp["bf2"])


# ------------------------------ parameters ----------------------------------

def init_params(key):
    """Deterministic synthetic params in the PyTorch convention:
    conv weights HWIO (3,3,Cin,Cout); wf1 rows in NCHW-flatten order."""
    ks = jax.random.split(key, 8)

    def u(k, shape, fan_in):
        bound = 1.0 / jnp.sqrt(jnp.float32(fan_in))
        return jax.random.uniform(k, shape, jnp.float32, -bound, bound)

    return dict(
        w1=u(ks[0], (3, 3, 1, 32), 9 * 1),     b1=u(ks[1], (32,), 9 * 1),
        w2=u(ks[2], (3, 3, 32, 64), 9 * 32),   b2=u(ks[3], (64,), 9 * 32),
        wf1=u(ks[4], (64 * 7 * 7, 128), 64 * 7 * 7),
        bf1=u(ks[5], (128,), 64 * 7 * 7),
        wf2=u(ks[6], (128, 10), 128),          bf2=u(ks[7], (10,), 128),
    )


def prepare_params(params):
    """One-time (off the hot path) conversion into kernel layout:
      * conv weights reshaped to (9*Cin, Cout) matrices, cast to bf16;
      * wf1 rows permuted from NCHW-flatten (c*49 + s) to NHWC-flatten
        (s*64 + c) so the forward pass needs no transpose before fc1;
      * fc weights cast to bf16 (halves weight DMA); biases kept f32, (1, C)."""
    wf1 = params["wf1"].reshape(64, 7 * 7, 128).transpose(1, 0, 2)
    wf1 = wf1.reshape(64 * 7 * 7, 128)
    return dict(
        w1=params["w1"].reshape(9 * 1, 32).astype(jnp.bfloat16),
        b1=params["b1"].reshape(1, 32).astype(jnp.float32),
        w2=params["w2"].reshape(9 * 32, 64).astype(jnp.bfloat16),
        b2=params["b2"].reshape(1, 64).astype(jnp.float32),
        wf1=wf1.astype(jnp.bfloat16),
        bf1=params["bf1"].reshape(1, 128).astype(jnp.float32),
        wf2=params["wf2"].astype(jnp.bfloat16),
        bf2=params["bf2"].reshape(1, 10).astype(jnp.float32),
    )


if __name__ == "__main__":
    key = jax.random.PRNGKey(0)
    pkey, xkey = jax.random.split(key)
    params = init_params(pkey)
    kernel_params = prepare_params(params)      # one-time, outside the hot path
    # NCHW input, as in PyTorch (MNIST spatial dims are required by fc1).
    x = jax.random.normal(xkey, (2, 1, 28, 28), jnp.float32)
    fwd = jax.jit(number_classifier_forward)
    logits = fwd(x, kernel_params)
    jax.block_until_ready(logits)
    assert logits.shape == (2, 10)
    assert logits.dtype == jnp.float32
    print("KERNEL_OK")
</pallas_src>

<mosaic_0001>
module attributes {stable_mosaic.version = 11 : i64} {
  func.func @_conv_pool_kernel(%arg0: i32, %arg1: memref<1x4x196x9xf32, #tpu.memory_space<vmem>>, %arg2: memref<9x32xbf16, #tpu.memory_space<vmem>>, %arg3: memref<1x32xf32, #tpu.memory_space<vmem>>, %arg4: memref<1x196x32xbf16, #tpu.memory_space<vmem>>) attributes {dimension_semantics = [#tpu.dimension_semantics<parallel>], iteration_bounds = array<i64: 2>, scalar_prefetch = 0 : i64, scratch_operands = 0 : i64, tpu.core_type = #tpu.core_type<tc>, window_params = [{transform_indices = @transform_0, window_bounds = array<i64: 1, 4, 196, 9>}, {pipeline_mode = #tpu.pipeline_mode<synchronous>, transform_indices = @transform_1, window_bounds = array<i64: 9, 32>}, {pipeline_mode = #tpu.pipeline_mode<synchronous>, transform_indices = @transform_2, window_bounds = array<i64: 1, 32>}, {transform_indices = @transform_3, window_bounds = array<i64: 1, 196, 32>}]} {
    %c0 = arith.constant 0 : index
    %c0_0 = arith.constant 0 : index
    %0 = vector.load %arg2[%c0, %c0_0] : memref<9x32xbf16, #tpu.memory_space<vmem>>, vector<9x32xbf16>
    %c0_1 = arith.constant 0 : index
    %c0_2 = arith.constant 0 : index
    %c0_3 = arith.constant 0 : index
    %c0_4 = arith.constant 0 : index
    %1 = vector.load %arg1[%c0_1, %c0_2, %c0_3, %c0_4] : memref<1x4x196x9xf32, #tpu.memory_space<vmem>>, vector<1x1x196x9xf32>
    %2 = vector.shape_cast %1 : vector<1x1x196x9xf32> to vector<196x9xf32>
    %3 = arith.truncf %2 : vector<196x9xf32> to vector<196x9xbf16>
    %cst = arith.constant dense<0.000000e+00> : vector<196x32xf32>
    %4 = tpu.matmul %3, %0, %cst {dimension_numbers = #tpu.dot_dimension_numbers<[1], [0], [0], [1], [0, 0, 1, 1], [], []>} : vector<196x9xbf16>, vector<9x32xbf16>, vector<196x32xf32> -> vector<196x32xf32>
    %c0_5 = arith.constant 0 : index
    %c1 = arith.constant 1 : index
    %c0_6 = arith.constant 0 : index
    %c0_7 = arith.constant 0 : index
    %5 = vector.load %arg1[%c0_5, %c1, %c0_6, %c0_7] : memref<1x4x196x9xf32, #tpu.memory_space<vmem>>, vector<1x1x196x9xf32>
    %6 = vector.shape_cast %5 : vector<1x1x196x9xf32> to vector<196x9xf32>
    %7 = arith.truncf %6 : vector<196x9xf32> to vector<196x9xbf16>
    %cst_8 = arith.constant dense<0.000000e+00> : vector<196x32xf32>
    %8 = tpu.matmul %7, %0, %cst_8 {dimension_numbers = #tpu.dot_dimension_numbers<[1], [0], [0], [1], [0, 0, 1, 1], [], []>} : vector<196x9xbf16>, vector<9x32xbf16>, vector<196x32xf32> -> vector<196x32xf32>
    %c0_9 = arith.constant 0 : index
    %c2 = arith.constant 2 : index
    %c0_10 = arith.constant 0 : index
    %c0_11 = arith.constant 0 : index
    %9 = vector.load %arg1[%c0_9, %c2, %c0_10, %c0_11] : memref<1x4x196x9xf32, #tpu.memory_space<vmem>>, vector<1x1x196x9xf32>
    %10 = vector.shape_cast %9 : vector<1x1x196x9xf32> to vector<196x9xf32>
    %11 = arith.truncf %10 : vector<196x9xf32> to vector<196x9xbf16>
    %cst_12 = arith.constant dense<0.000000e+00> : vector<196x32xf32>
    %12 = tpu.matmul %11, %0, %cst_12 {dimension_numbers = #tpu.dot_dimension_numbers<[1], [0], [0], [1], [0, 0, 1, 1], [], []>} : vector<196x9xbf16>, vector<9x32xbf16>, vector<196x32xf32> -> vector<196x32xf32>
    %c0_13 = arith.constant 0 : index
    %c3 = arith.constant 3 : index
    %c0_14 = arith.constant 0 : index
    %c0_15 = arith.constant 0 : index
    %13 = vector.load %arg1[%c0_13, %c3, %c0_14, %c0_15] : memref<1x4x196x9xf32, #tpu.memory_space<vmem>>, vector<1x1x196x9xf32>
    %14 = vector.shape_cast %13 : vector<1x1x196x9xf32> to vector<196x9xf32>
    %15 = arith.truncf %14 : vector<196x9xf32> to vector<196x9xbf16>
    %cst_16 = arith.constant dense<0.000000e+00> : vector<196x32xf32>
    %16 = tpu.matmul %15, %0, %cst_16 {dimension_numbers = #tpu.dot_dimension_numbers<[1], [0], [0], [1], [0, 0, 1, 1], [], []>} : vector<196x9xbf16>, vector<9x32xbf16>, vector<196x32xf32> -> vector<196x32xf32>
    %17 = arith.maximumf %4, %8 : vector<196x32xf32>
    %18 = arith.maximumf %12, %16 : vector<196x32xf32>
    %19 = arith.maximumf %17, %18 : vector<196x32xf32>
    %c0_17 = arith.constant 0 : index
    %c0_18 = arith.constant 0 : index
    %20 = vector.load %arg3[%c0_17, %c0_18] : memref<1x32xf32, #tpu.memory_space<vmem>>, vector<1x32xf32>
    %21 = vector.broadcast %20 : vector<1x32xf32> to vector<196x32xf32>
    %22 = arith.addf %19, %21 : vector<196x32xf32>
    %cst_19 = arith.constant 0.000000e+00 : f32
    %23 = vector.broadcast %cst_19 : f32 to vector<196x32xf32>
    %24 = arith.maximumf %22, %23 : vector<196x32xf32>
    %25 = arith.truncf %24 : vector<196x32xf32> to vector<196x32xbf16>
    %c0_20 = arith.constant 0 : index
    %c0_21 = arith.constant 0 : index
    %c0_22 = arith.constant 0 : index
    %26 = vector.load %arg4[%c0_20, %c0_21, %c0_22] : memref<1x196x32xbf16, #tpu.memory_space<vmem>>, vector<1x196x32xbf16>
    %27 = vector.shape_cast %26 : vector<1x196x32xbf16> to vector<196x32xbf16>
    %28 = vector.shape_cast %25 : vector<196x32xbf16> to vector<1x196x32xbf16>
    tpu.vector_store %arg4[%c0_20, %c0_21, %c0_22], %28 {strides = array<i32>} : memref<1x196x32xbf16, #tpu.memory_space<vmem>>, vector<1x196x32xbf16>,
    return
  }
  func.func @transform_0(%arg0: i32) -> (i32, i32, i32, i32) {
    %c0_i32 = arith.constant 0 : i32
    %c0_i32_0 = arith.constant 0 : i32
    %c0_i32_1 = arith.constant 0 : i32
    %c0_i32_2 = arith.constant 0 : i32
    return %arg0, %c0_i32, %c0_i32_0, %c0_i32_1 : i32, i32, i32, i32
  }
  func.func @transform_1(%arg0: i32) -> (i32, i32) {
    %c0_i32 = arith.constant 0 : i32
    %c0_i32_0 = arith.constant 0 : i32
    %c0_i32_1 = arith.constant 0 : i32
    return %c0_i32, %c0_i32_0 : i32, i32
  }
  func.func @transform_2(%arg0: i32) -> (i32, i32) {
    %c0_i32 = arith.constant 0 : i32
    %c0_i32_0 = arith.constant 0 : i32
    %c0_i32_1 = arith.constant 0 : i32
    return %c0_i32, %c0_i32_0 : i32, i32
  }
  func.func @transform_3(%arg0: i32) -> (i32, i32, i32) {
    %c0_i32 = arith.constant 0 : i32
    %c0_i32_0 = arith.constant 0 : i32
    %c0_i32_1 = arith.constant 0 : i32
    return %arg0, %c0_i32, %c0_i32_0 : i32, i32, i32
  }
}

module attributes {stable_mosaic.version = 11 : i64} {
  func.func @_conv_pool_kernel(%arg0: i32, %arg1: memref<1x4x49x288xbf16, #tpu.memory_space<vmem>>, %arg2: memref<288x64xbf16, #tpu.memory_space<vmem>>, %arg3: memref<1x64xf32, #tpu.memory_space<vmem>>, %arg4: memref<1x49x64xbf16, #tpu.memory_space<vmem>>) attributes {dimension_semantics = [#tpu.dimension_semantics<parallel>], iteration_bounds = array<i64: 2>, scalar_prefetch = 0 : i64, scratch_operands = 0 : i64, tpu.core_type = #tpu.core_type<tc>, window_params = [{transform_indices = @transform_0, window_bounds = array<i64: 1, 4, 49, 288>}, {pipeline_mode = #tpu.pipeline_mode<synchronous>, transform_indices = @transform_1, window_bounds = array<i64: 288, 64>}, {pipeline_mode = #tpu.pipeline_mode<synchronous>, transform_indices = @transform_2, window_bounds = array<i64: 1, 64>}, {transform_indices = @transform_3, window_bounds = array<i64: 1, 49, 64>}]} {
    %c0 = arith.constant 0 : index
    %c0_0 = arith.constant 0 : index
    %0 = vector.load %arg2[%c0, %c0_0] : memref<288x64xbf16, #tpu.memory_space<vmem>>, vector<288x64xbf16>
    %c0_1 = arith.constant 0 : index
    %c0_2 = arith.constant 0 : index
    %c0_3 = arith.constant 0 : index
    %c0_4 = arith.constant 0 : index
    %1 = vector.load %arg1[%c0_1, %c0_2, %c0_3, %c0_4] : memref<1x4x49x288xbf16, #tpu.memory_space<vmem>>, vector<1x1x49x288xbf16>
    %2 = vector.shape_cast %1 : vector<1x1x49x288xbf16> to vector<49x288xbf16>
    %cst = arith.constant dense<0.000000e+00> : vector<49x64xf32>
    %3 = tpu.matmul %2, %0, %cst {dimension_numbers = #tpu.dot_dimension_numbers<[1], [0], [0], [1], [0, 0, 1, 1], [], []>} : vector<49x288xbf16>, vector<288x64xbf16>, vector<49x64xf32> -> vector<49x64xf32>
    %c0_5 = arith.constant 0 : index
    %c1 = arith.constant 1 : index
    %c0_6 = arith.constant 0 : index
    %c0_7 = arith.constant 0 : index
    %4 = vector.load %arg1[%c0_5, %c1, %c0_6, %c0_7] : memref<1x4x49x288xbf16, #tpu.memory_space<vmem>>, vector<1x1x49x288xbf16>
    %5 = vector.shape_cast %4 : vector<1x1x49x288xbf16> to vector<49x288xbf16>
    %cst_8 = arith.constant dense<0.000000e+00> : vector<49x64xf32>
    %6 = tpu.matmul %5, %0, %cst_8 {dimension_numbers = #tpu.dot_dimension_numbers<[1], [0], [0], [1], [0, 0, 1, 1], [], []>} : vector<49x288xbf16>, vector<288x64xbf16>, vector<49x64xf32> -> vector<49x64xf32>
    %c0_9 = arith.constant 0 : index
    %c2 = arith.constant 2 : index
    %c0_10 = arith.constant 0 : index
    %c0_11 = arith.constant 0 : index
    %7 = vector.load %arg1[%c0_9, %c2, %c0_10, %c0_11] : memref<1x4x49x288xbf16, #tpu.memory_space<vmem>>, vector<1x1x49x288xbf16>
    %8 = vector.shape_cast %7 : vector<1x1x49x288xbf16> to vector<49x288xbf16>
    %cst_12 = arith.constant dense<0.000000e+00> : vector<49x64xf32>
    %9 = tpu.matmul %8, %0, %cst_12 {dimension_numbers = #tpu.dot_dimension_numbers<[1], [0], [0], [1], [0, 0, 1, 1], [], []>} : vector<49x288xbf16>, vector<288x64xbf16>, vector<49x64xf32> -> vector<49x64xf32>
    %c0_13 = arith.constant 0 : index
    %c3 = arith.constant 3 : index
    %c0_14 = arith.constant 0 : index
    %c0_15 = arith.constant 0 : index
    %10 = vector.load %arg1[%c0_13, %c3, %c0_14, %c0_15] : memref<1x4x49x288xbf16, #tpu.memory_space<vmem>>, vector<1x1x49x288xbf16>
    %11 = vector.shape_cast %10 : vector<1x1x49x288xbf16> to vector<49x288xbf16>
    %cst_16 = arith.constant dense<0.000000e+00> : vector<49x64xf32>
    %12 = tpu.matmul %11, %0, %cst_16 {dimension_numbers = #tpu.dot_dimension_numbers<[1], [0], [0], [1], [0, 0, 1, 1], [], []>} : vector<49x288xbf16>, vector<288x64xbf16>, vector<49x64xf32> -> vector<49x64xf32>
    %13 = arith.maximumf %3, %6 : vector<49x64xf32>
    %14 = arith.maximumf %9, %12 : vector<49x64xf32>
    %15 = arith.maximumf %13, %14 : vector<49x64xf32>
    %c0_17 = arith.constant 0 : index
    %c0_18 = arith.constant 0 : index
    %16 = vector.load %arg3[%c0_17, %c0_18] : memref<1x64xf32, #tpu.memory_space<vmem>>, vector<1x64xf32>
    %17 = vector.broadcast %16 : vector<1x64xf32> to vector<49x64xf32>
    %18 = arith.addf %15, %17 : vector<49x64xf32>
    %cst_19 = arith.constant 0.000000e+00 : f32
    %19 = vector.broadcast %cst_19 : f32 to vector<49x64xf32>
    %20 = arith.maximumf %18, %19 : vector<49x64xf32>
    %21 = arith.truncf %20 : vector<49x64xf32> to vector<49x64xbf16>
    %c0_20 = arith.constant 0 : index
    %c0_21 = arith.constant 0 : index
    %c0_22 = arith.constant 0 : index
    %22 = vector.load %arg4[%c0_20, %c0_21, %c0_22] : memref<1x49x64xbf16, #tpu.memory_space<vmem>>, vector<1x49x64xbf16>
    %23 = vector.shape_cast %22 : vector<1x49x64xbf16> to vector<49x64xbf16>
    %24 = vector.shape_cast %21 : vector<49x64xbf16> to vector<1x49x64xbf16>
    tpu.vector_store %arg4[%c0_20, %c0_21, %c0_22], %24 {strides = array<i32>} : memref<1x49x64xbf16, #tpu.memory_space<vmem>>, vector<1x49x64xbf16>,
    return
  }
  func.func @transform_0(%arg0: i32) -> (i32, i32, i32, i32) {
    %c0_i32 = arith.constant 0 : i32
    %c0_i32_0 = arith.constant 0 : i32
    %c0_i32_1 = arith.constant 0 : i32
    %c0_i32_2 = arith.constant 0 : i32
    return %arg0, %c0_i32, %c0_i32_0, %c0_i32_1 : i32, i32, i32, i32
  }
  func.func @transform_1(%arg0: i32) -> (i32, i32) {
    %c0_i32 = arith.constant 0 : i32
    %c0_i32_0 = arith.constant 0 : i32
    %c0_i32_1 = arith.constant 0 : i32
    return %c0_i32, %c0_i32_0 : i32, i32
  }
  func.func @transform_2(%arg0: i32) -> (i32, i32) {
    %c0_i32 = arith.constant 0 : i32
    %c0_i32_0 = arith.constant 0 : i32
    %c0_i32_1 = arith.constant 0 : i32
    return %c0_i32, %c0_i32_0 : i32, i32
  }
  func.func @transform_3(%arg0: i32) -> (i32, i32, i32) {
    %c0_i32 = arith.constant 0 : i32
    %c0_i32_0 = arith.constant 0 : i32
    %c0_i32_1 = arith.constant 0 : i32
    return %arg0, %c0_i32, %c0_i32_0 : i32, i32, i32
  }
}

module attributes {stable_mosaic.version = 11 : i64} {
  func.func @_fc_fused_kernel(%arg0: i32, %arg1: memref<8x3136xbf16, #tpu.memory_space<vmem>>, %arg2: memref<3136x128xbf16, #tpu.memory_space<vmem>>, %arg3: memref<1x128xf32, #tpu.memory_space<vmem>>, %arg4: memref<128x10xbf16, #tpu.memory_space<vmem>>, %arg5: memref<1x10xf32, #tpu.memory_space<vmem>>, %arg6: memref<8x10xf32, #tpu.memory_space<vmem>>) attributes {dimension_semantics = [#tpu.dimension_semantics<parallel>], iteration_bounds = array<i64: 1>, scalar_prefetch = 0 : i64, scratch_operands = 0 : i64, tpu.core_type = #tpu.core_type<tc>, window_params = [{transform_indices = @transform_0, window_bounds = array<i64: 8, 3136>}, {pipeline_mode = #tpu.pipeline_mode<synchronous>, transform_indices = @transform_1, window_bounds = array<i64: 3136, 128>}, {pipeline_mode = #tpu.pipeline_mode<synchronous>, transform_indices = @transform_2, window_bounds = array<i64: 1, 128>}, {pipeline_mode = #tpu.pipeline_mode<synchronous>, transform_indices = @transform_3, window_bounds = array<i64: 128, 10>}, {pipeline_mode = #tpu.pipeline_mode<synchronous>, transform_indices = @transform_4, window_bounds = array<i64: 1, 10>}, {transform_indices = @transform_5, window_bounds = array<i64: 8, 10>}]} {
    %c0 = arith.constant 0 : index
    %c0_0 = arith.constant 0 : index
    %0 = vector.load %arg1[%c0, %c0_0] : memref<8x3136xbf16, #tpu.memory_space<vmem>>, vector<8x3136xbf16>
    %c0_1 = arith.constant 0 : index
    %c0_2 = arith.constant 0 : index
    %1 = vector.load %arg2[%c0_1, %c0_2] : memref<3136x128xbf16, #tpu.memory_space<vmem>>, vector<3136x128xbf16>
    %cst = arith.constant dense<0.000000e+00> : vector<8x128xf32>
    %2 = tpu.matmul %0, %1, %cst {dimension_numbers = #tpu.dot_dimension_numbers<[1], [0], [0], [1], [0, 0, 1, 1], [], []>} : vector<8x3136xbf16>, vector<3136x128xbf16>, vector<8x128xf32> -> vector<8x128xf32>
    %c0_3 = arith.constant 0 : index
    %c0_4 = arith.constant 0 : index
    %3 = vector.load %arg3[%c0_3, %c0_4] : memref<1x128xf32, #tpu.memory_space<vmem>>, vector<1x128xf32>
    %4 = vector.broadcast %3 : vector<1x128xf32> to vector<8x128xf32>
    %5 = arith.addf %2, %4 : vector<8x128xf32>
    %cst_5 = arith.constant 0.000000e+00 : f32
    %6 = vector.broadcast %cst_5 : f32 to vector<8x128xf32>
    %7 = arith.maximumf %5, %6 : vector<8x128xf32>
    %8 = arith.truncf %7 : vector<8x128xf32> to vector<8x128xbf16>
    %c0_6 = arith.constant 0 : index
    %c0_7 = arith.constant 0 : index
    %9 = vector.load %arg4[%c0_6, %c0_7] : memref<128x10xbf16, #tpu.memory_space<vmem>>, vector<128x10xbf16>
    %cst_8 = arith.constant dense<0.000000e+00> : vector<8x10xf32>
    %10 = tpu.matmul %8, %9, %cst_8 {dimension_numbers = #tpu.dot_dimension_numbers<[1], [0], [0], [1], [0, 0, 1, 1], [], []>} : vector<8x128xbf16>, vector<128x10xbf16>, vector<8x10xf32> -> vector<8x10xf32>
    %c0_9 = arith.constant 0 : index
    %c0_10 = arith.constant 0 : index
    %11 = vector.load %arg5[%c0_9, %c0_10] : memref<1x10xf32, #tpu.memory_space<vmem>>, vector<1x10xf32>
    %12 = vector.broadcast %11 : vector<1x10xf32> to vector<8x10xf32>
    %13 = arith.addf %10, %12 : vector<8x10xf32>
    %c0_11 = arith.constant 0 : index
    %c0_12 = arith.constant 0 : index
    %14 = vector.load %arg6[%c0_11, %c0_12] : memref<8x10xf32, #tpu.memory_space<vmem>>, vector<8x10xf32>
    tpu.vector_store %arg6[%c0_11, %c0_12], %13 {strides = array<i32>} : memref<8x10xf32, #tpu.memory_space<vmem>>, vector<8x10xf32>,
    return
  }
  func.func @transform_0(%arg0: i32) -> (i32, i32) {
    %c0_i32 = arith.constant 0 : i32
    %c0_i32_0 = arith.constant 0 : i32
    return %arg0, %c0_i32 : i32, i32
  }
  func.func @transform_1(%arg0: i32) -> (i32, i32) {
    %c0_i32 = arith.constant 0 : i32
    %c0_i32_0 = arith.constant 0 : i32
    %c0_i32_1 = arith.constant 0 : i32
    return %c0_i32, %c0_i32_0 : i32, i32
  }
  func.func @transform_2(%arg0: i32) -> (i32, i32) {
    %c0_i32 = arith.constant 0 : i32
    %c0_i32_0 = arith.constant 0 : i32
    %c0_i32_1 = arith.constant 0 : i32
    return %c0_i32, %c0_i32_0 : i32, i32
  }
  func.func @transform_3(%arg0: i32) -> (i32, i32) {
    %c0_i32 = arith.constant 0 : i32
    %c0_i32_0 = arith.constant 0 : i32
    %c0_i32_1 = arith.constant 0 : i32
    return %c0_i32, %c0_i32_0 : i32, i32
  }
  func.func @transform_4(%arg0: i32) -> (i32, i32) {
    %c0_i32 = arith.constant 0 : i32
    %c0_i32_0 = arith.constant 0 : i32
    %c0_i32_1 = arith.constant 0 : i32
    return %c0_i32, %c0_i32_0 : i32, i32
  }
  func.func @transform_5(%arg0: i32) -> (i32, i32) {
    %c0_i32 = arith.constant 0 : i32
    %c0_i32_0 = arith.constant 0 : i32
    return %arg0, %c0_i32 : i32, i32
  }
}

</mosaic_0001>

<llo_original>
// kernel: number_classifier_forward.3
$region0: #{number_classifier_forward.3}
  #allocation0 [shape = 'u32[]', space=smem, size = 0x4, offset = 0x4, fixed_abs, tag = 'smem constant byte address 0x4 - core index']
  #allocation1 [shape = 'u32[72,128]{1,0:T(1,128)}', space=vmem, size = 0x9000, scoped, tag = 'internal scratch']
  %s0 = inlined_call_operand.vmem [shape: f32[2,4,196,9], index: 0, kind: input, shape index: {}]
  %s1 = inlined_call_operand.vmem [shape: bf16[9,32], index: 1, kind: input, shape index: {}]
  %s2 = inlined_call_operand.vmem [shape: f32[1,32], index: 2, kind: input, shape index: {}]
  %s3 = inlined_call_operand.vmem [shape: bf16[2,196,32], index: 3, kind: output, shape index: {}]
  %s4 = sld [smem:[#allocation0]]
  $region45: #{number_classifier_forward.3} parent=0
    _
  %s6 = ssub.s32 1, %s4
  %s7 = scalar_select 0, %s6, %s4
  loop: start=0, step=1, limit=4
  $region2: #{number_classifier_forward.3} parent=0 // loop_pre_header
    _
  $region3: #{number_classifier_forward.3} parent=0 // loop_header
    %s9 = sphi 0, %s13
    %p10 = scmp.ge.s32.totalorder %s9, 4
    %s19 = sphi 0, %s21
    %s22 = sphi 0, %s19
    %s23 = sphi 0, %s22
    %s39 = sphi 0, %s23
    %s43 = sphi 0, %s43
    %s45 = sphi 0, %s43
    %s46 = sphi 0, %s45
    %s60 = sphi 0, %s46
    %s64 = sphi 0, %s64
    %s66 = sphi 0, %s64
    %s67 = sphi 0, %s66
    %s81 = sphi 0, %s67
    %s87 = sphi 0, %s89
    %s90 = sphi 0, %s87
    %s91 = sphi 0, %s90
    %s107 = sphi 0, %s91
  $region4: #{number_classifier_forward.3} parent=0 // loop_header_branch
    %12 = sbr.rel (%p10) target = $region8
  $region5: #{number_classifier_forward.3} parent=0 // loop_body
    %s14 = ssub.s32 %s9, 1
    %s15 = ssub.s32 %s9, 2
    %s16 = sadd.s32 %s9, 1
    %s17 = ssub.s32 %s9, %s16
    %p18 = scmp.eq.s32.totalorder %s17, 0
    %s20 = sadd.s32 %s19, 1
    %s21 = scalar_select %p18, %s19, %s20
    %p24 = pneg %p18
    %p25 = scmp.eq.s32.totalorder %s9, 1
    %p26 = por %p24, %p25
    %p27 = scmp.ne.s32.totalorder %s19, %s22
    %p28 = scmp.eq.s32.totalorder %s9, 0
    %p29 = por %p27, %p28
    %p30 = scmp.ne.s32.totalorder %s19, %s22
    %p31 = scmp.eq.s32.totalorder %s14, 1
    %p32 = por %p30, %p31
    %p33 = scmp.ne.s32.totalorder %s22, %s23
    %p34 = scmp.eq.s32.totalorder %s14, 0
    %p35 = por %p33, %p34
    %p36 = scmp.ne.s32.totalorder %s22, %s23
    %p37 = scmp.eq.s32.totalorder %s15, 1
    %p38 = por %p36, %p37
    %p40 = scmp.ne.s32.totalorder %s23, %s39
    %p41 = scmp.eq.s32.totalorder %s15, 0
    %p42 = por %p40, %p41
    %s44 = sadd.s32 %s43, 1
    %p47 = scmp.eq.s32.totalorder %s9, 1
    %p48 = scmp.ne.s32.totalorder %s43, %s45
    %p49 = scmp.eq.s32.totalorder %s9, 0
    %p50 = por %p48, %p49
    %p51 = scmp.ne.s32.totalorder %s43, %s45
    %p52 = scmp.eq.s32.totalorder %s14, 1
    %p53 = por %p51, %p52
    %p54 = scmp.ne.s32.totalorder %s45, %s46
    %p55 = scmp.eq.s32.totalorder %s14, 0
    %p56 = por %p54, %p55
    %p57 = scmp.ne.s32.totalorder %s45, %s46
    %p58 = scmp.eq.s32.totalorder %s15, 1
    %p59 = por %p57, %p58
    %p61 = scmp.ne.s32.totalorder %s46, %s60
    %p62 = scmp.eq.s32.totalorder %s15, 0
    %p63 = por %p61, %p62
    %s65 = sadd.s32 %s64, 1
    %p68 = scmp.eq.s32.totalorder %s9, 1
    %p69 = scmp.ne.s32.totalorder %s64, %s66
    %p70 = scmp.eq.s32.totalorder %s9, 0
    %p71 = por %p69, %p70
    %p72 = scmp.ne.s32.totalorder %s64, %s66
    %p73 = scmp.eq.s32.totalorder %s14, 1
    %p74 = por %p72, %p73
    %p75 = scmp.ne.s32.totalorder %s66, %s67
    %p76 = scmp.eq.s32.totalorder %s14, 0
    %p77 = por %p75, %p76
    %p78 = scmp.ne.s32.totalorder %s66, %s67
    %p79 = scmp.eq.s32.totalorder %s15, 1
    %p80 = por %p78, %p79
    %p82 = scmp.ne.s32.totalorder %s67, %s81
    %p83 = scmp.eq.s32.totalorder %s15, 0
    %p84 = por %p82, %p83
    %s85 = ssub.s32 %s9, %s16
    %p86 = scmp.eq.s32.totalorder %s85, 0
    %s88 = sadd.s32 %s87, 1
    %s89 = scalar_select %p86, %s87, %s88
    %p92 = pneg %p86
    %p93 = scmp.eq.s32.totalorder %s9, 1
    %p94 = por %p92, %p93
    %p95 = scmp.ne.s32.totalorder %s87, %s90
    %p96 = scmp.eq.s32.totalorder %s9, 0
    %p97 = por %p95, %p96
    %p98 = scmp.ne.s32.totalorder %s87, %s90
    %p99 = scmp.eq.s32.totalorder %s14, 1
    %p100 = por %p98, %p99
    %p101 = scmp.ne.s32.totalorder %s90, %s91
    %p102 = scmp.eq.s32.totalorder %s14, 0
    %p103 = por %p101, %p102
    %p104 = scmp.ne.s32.totalorder %s90, %s91
    %p105 = scmp.eq.s32.totalorder %s15, 1
    %p106 = por %p104, %p105
    %p108 = scmp.ne.s32.totalorder %s91, %s107
    %p109 = scmp.eq.s32.totalorder %s15, 0
    %p110 = por %p108, %p109
    %p111 = scmp.le.s32.totalorder 1, %s9
    %p112 = scmp.lt.s32.totalorder %s9, 3
    %p113 = pnand %p111, %p112
    %p114 = pneg %p113
    // Predicated region
    $region9: #{number_classifier_forward.3} parent=5 // pred_check
      _
    $region10: #{number_classifier_forward.3} parent=5 // pred_check_branch
      %116 = sbr.rel (%p113) target = $region12
    $region11: #{number_classifier_forward.3} parent=5 // pred_region
      %s117 = ssub.s32 %s9, 1
      // Predicated region
      $region13: #{number_classifier_forward.3} parent=11 // pred_check
        %p118 = pneg %p56
      $region14: #{number_classifier_forward.3} parent=11 // pred_check_branch
        %120 = sbr.rel (%p118) target = $region16
      $region15: #{number_classifier_forward.3} parent=11 // pred_region
        _
      $region16: #{number_classifier_forward.3} parent=11 // pred_fallthru
        _
      // Predicated region
      $region17: #{number_classifier_forward.3} parent=11 // pred_check
        %p121 = pneg %p77
      $region18: #{number_classifier_forward.3} parent=11 // pred_check_branch
        %123 = sbr.rel (%p121) target = $region20
      $region19: #{number_classifier_forward.3} parent=11 // pred_region
        _
      $region20: #{number_classifier_forward.3} parent=11 // pred_fallthru
        _
    $region12: #{number_classifier_forward.3} parent=5 // pred_fallthru
      _
    %p124 = scmp.lt.s32.totalorder %s9, 2
    // Predicated region
    $region21: #{number_classifier_forward.3} parent=5 // pred_check
      %p125 = pneg %p124
    $region22: #{number_classifier_forward.3} parent=5 // pred_check_branch
      %127 = sbr.rel (%p125) target = $region24
    $region23: #{number_classifier_forward.3} parent=5 // pred_region
      // Predicated region
      $region25: #{number_classifier_forward.3} parent=23 // pred_check
        %p128 = pneg %p29
      $region26: #{number_classifier_forward.3} parent=23 // pred_check_branch
        %130 = sbr.rel (%p128) target = $region28
      $region27: #{number_classifier_forward.3} parent=23 // pred_region
        %p131 = scmp.lt.s32.totalorder %s9, 1
        %s132 = scalar_select %p131, %s9, 1
        %s133 = smul.addr %s132, 100
        %s134 = smul.addr %s133, 8
        %s135 = scalar_lea.vmem %s0, %s134
      $region28: #{number_classifier_forward.3} parent=23 // pred_fallthru
        _
    $region24: #{number_classifier_forward.3} parent=5 // pred_fallthru
      _
    %p136 = scmp.le.s32.totalorder 1, %s9
    %p137 = scmp.lt.s32.totalorder %s9, 3
    %p138 = pnand %p136, %p137
    %p139 = pneg %p138
    // Predicated region
    $region29: #{number_classifier_forward.3} parent=5 // pred_check
      _
    $region30: #{number_classifier_forward.3} parent=5 // pred_check_branch
      %141 = sbr.rel (%p138) target = $region32
    $region31: #{number_classifier_forward.3} parent=5 // pred_region
      %s142 = ssub.s32 %s9, 1
      %p143 = scmp.lt.s32.totalorder %s14, 1
      %s144 = scalar_select %p143, %s14, 1
      %s145 = smul.addr %s144, 100
      %s146 = smul.addr %s145, 8
      %s147 = scalar_lea.vmem %s0, %s146
      %p148 = pneg %p35
      %p149 = pneg %p32
      %p150 = pneg %p56
      %p151 = pneg %p53
      %p152 = pneg %p77
      %p153 = pneg %p74
      %p154 = pneg %p103
      %p155 = pneg %p100
      %p156 = scmp.lt.s32.totalorder %s14, 1
      %s157 = scalar_select %p156, %s14, 1
      %s158 = smul.addr %s157, 25
      %s159 = smul.addr %s158, 4
      %s160 = scalar_lea.vmem %s3, %s159
      %p161 = scmp.lt.s32.totalorder %s14, 1
      %s162 = scalar_select %p161, %s14, 1
      %s163 = smul.addr %s162, 100
      %s164 = smul.addr %s163, 8
      %s165 = scalar_lea.vmem %s0, %s164
      %p166 = scmp.lt.s32.totalorder %s14, 1
      %s167 = scalar_select %p166, %s14, 1
      %s168 = smul.addr %s167, 25
      %s169 = smul.addr %s168, 4
      %s170 = scalar_lea.vmem %s3, %s169
      %v172 = vld [vmem:[%s1] sm:$0xf]
      %v173 = vld [vmem:[%s1 + $0x4] sm:$0x1]
      %v174 = vld [vmem:[%s165] sm:$0xff]
      %v175 = vld [vmem:[%s165 + $0x8] sm:$0xff]
      %v176 = vld [vmem:[%s165 + $0x10] sm:$0xff]
      %v177 = vld [vmem:[%s165 + $0x18] sm:$0xff]
      %v178 = vld [vmem:[%s165 + $0x20] sm:$0xff]
      %v179 = vld [vmem:[%s165 + $0x28] sm:$0xff]
      %v180 = vld [vmem:[%s165 + $0x30] sm:$0xff]
      %v181 = vld [vmem:[%s165 + $0x38] sm:$0xff]
      %v182 = vld [vmem:[%s165 + $0x40] sm:$0xff]
      %v183 = vld [vmem:[%s165 + $0x48] sm:$0xff]
      %v184 = vld [vmem:[%s165 + $0x50] sm:$0xff]
      %v185 = vld [vmem:[%s165 + $0x58] sm:$0xff]
      %v186 = vld [vmem:[%s165 + $0x60] sm:$0xff]
      %v187 = vld [vmem:[%s165 + $0x68] sm:$0xff]
      %v188 = vld [vmem:[%s165 + $0x70] sm:$0xff]
      %v189 = vld [vmem:[%s165 + $0x78] sm:$0xff]
      %v190 = vld [vmem:[%s165 + $0x80] sm:$0xff]
      %v191 = vld [vmem:[%s165 + $0x88] sm:$0xff]
      %v192 = vld [vmem:[%s165 + $0x90] sm:$0xff]
      %v193 = vld [vmem:[%s165 + $0x98] sm:$0xff]
      %v194 = vld [vmem:[%s165 + $0xa0] sm:$0xff]
      %v195 = vld [vmem:[%s165 + $0xa8] sm:$0xff]
      %v196 = vld [vmem:[%s165 + $0xb0] sm:$0xff]
      %v197 = vld [vmem:[%s165 + $0xb8] sm:$0xff]
      %v198 = vld [vmem:[%s165 + $0xc0] sm:$0xf]
      %v199 = vpack.c.bf16 %v175, %v174
      %v200 = vpack.c.bf16 %v177, %v176
      %v201 = vpack.c.bf16 %v179, %v178
      %v202 = vpack.c.bf16 %v181, %v180
      %v203 = vpack.c.bf16 %v183, %v182
      %v204 = vpack.c.bf16 %v185, %v184
      %v205 = vpack.c.bf16 %v187, %v186
      %v206 = vpack.c.bf16 %v189, %v188
      %v207 = vpack.c.bf16 %v191, %v190
      %v208 = vpack.c.bf16 %v193, %v192
      %v209 = vpack.c.bf16 %v195, %v194
      %v210 = vpack.c.bf16 %v197, %v196
      %v211 = vpack.c.bf16 %v198, %v198
      %v214 = vunpack.c.l.b16 %v172
      %v215 = vunpack.c.l.b16 %v173
      %v216 = vpack.c.b16 %v215, %v214
      %vm217 = vcmask 72704
      %v219 = vsel %vm217, %v199, 0
      %v222 = vsel %vm217, %v200, 0
      %v225 = vsel %vm217, %v201, 0
      %v228 = vsel %vm217, %v202, 0
      %v231 = vsel %vm217, %v203, 0
      %v234 = vsel %vm217, %v204, 0
      %v237 = vsel %vm217, %v205, 0
      %v240 = vsel %vm217, %v206, 0
      %v243 = vsel %vm217, %v207, 0
      %v246 = vsel %vm217, %v208, 0
      %v249 = vsel %vm217, %v209, 0
      %v252 = vsel %vm217, %v210, 0
      %v255 = vsel %vm217, %v211, 0
      %vm257 = vcmask 1043456
      %vm258 = vcmask 1044480
      %v259 = vsel %vm257, 4294967295, 65535
      %v260 = vsel %vm258, %v259, 0
      %v262 = vand.u32 %v216, %v260
      %264 = vmatpush.bf16.msra.mxu0 0
      %265 = vmatpush.bf16.msra.mxu0 0
      %266 = vmatpush.bf16.msra.mxu0 0
      %267 = vmatpush.bf16.msra.mxu0 0
      %268 = vmatpush.bf16.msra.mxu0 0
      %269 = vmatpush.bf16.msra.mxu0 0
      %270 = vmatpush.bf16.msra.mxu0 0
      %271 = vmatpush.bf16.msra.mxu0 %v262
      %272 = vmatmul.bf16.gmra.mxu0 %v219
      %v273 = vpop.f32.mrf.mxu0
      %v274 = vadd.f32 0.0, %v273
      %v275 = vpop.f32.mrf.mxu0
      %v276 = vadd.f32 0.0, %v275
      %277 = vmatmul.bf16.gmra.mxu0 %v222
      %v278 = vpop.f32.mrf.mxu0
      %v279 = vadd.f32 0.0, %v278
      %v280 = vpop.f32.mrf.mxu0
      %v281 = vadd.f32 0.0, %v280
      %282 = vmatmul.bf16.gmra.mxu0 %v225
      %v283 = vpop.f32.mrf.mxu0
      %v284 = vadd.f32 0.0, %v283
      %v285 = vpop.f32.mrf.mxu0
      %v286 = vadd.f32 0.0, %v285
      %287 = vmatmul.bf16.gmra.mxu0 %v228
      %v288 = vpop.f32.mrf.mxu0
      %v289 = vadd.f32 0.0, %v288
      %v290 = vpop.f32.mrf.mxu0
      %v291 = vadd.f32 0.0, %v290
      %292 = vmatmul.bf16.gmra.mxu0 %v231
      %v293 = vpop.f32.mrf.mxu0
      %v294 = vadd.f32 0.0, %v293
      %v295 = vpop.f32.mrf.mxu0
      %v296 = vadd.f32 0.0, %v295
      %297 = vmatmul.bf16.gmra.mxu0 %v234
      %v298 = vpop.f32.mrf.mxu0
      %v299 = vadd.f32 0.0, %v298
      %v300 = vpop.f32.mrf.mxu0
      %v301 = vadd.f32 0.0, %v300
      %302 = vmatmul.bf16.gmra.mxu0 %v237
      %v303 = vpop.f32.mrf.mxu0
      %v304 = vadd.f32 0.0, %v303
      %v305 = vpop.f32.mrf.mxu0
      %v306 = vadd.f32 0.0, %v305
      %307 = vmatmul.bf16.gmra.mxu0 %v240
      %v308 = vpop.f32.mrf.mxu0
      %v309 = vadd.f32 0.0, %v308
      %v310 = vpop.f32.mrf.mxu0
      %v311 = vadd.f32 0.0, %v310
      %312 = vmatmul.bf16.gmra.mxu0 %v243
      %v313 = vpop.f32.mrf.mxu0
      %v314 = vadd.f32 0.0, %v313
      %v315 = vpop.f32.mrf.mxu0
      %v316 = vadd.f32 0.0, %v315
      %317 = vmatmul.bf16.gmra.mxu0 %v246
      %v318 = vpop.f32.mrf.mxu0
      %v319 = vadd.f32 0.0, %v318
      %v320 = vpop.f32.mrf.mxu0
      %v321 = vadd.f32 0.0, %v320
      %322 = vmatmul.bf16.gmra.mxu0 %v249
      %v323 = vpop.f32.mrf.mxu0
      %v324 = vadd.f32 0.0, %v323
      %v325 = vpop.f32.mrf.mxu0
      %v326 = vadd.f32 0.0, %v325
      %327 = vmatmul.bf16.gmra.mxu0 %v252
      %v328 = vpop.f32.mrf.mxu0
      %v329 = vadd.f32 0.0, %v328
      %v330 = vpop.f32.mrf.mxu0
      %v331 = vadd.f32 0.0, %v330
      %332 = vmatmul.bf16.gmra.mxu0 %v255
      %v333 = vpop.f32.mrf.mxu0
      %v334 = vadd.f32 0.0, %v333
      %v335 = vpop.f32.mrf.mxu0
      %336 = vdwg.mxu0
      %s337 = scalar_lea.vmem %s165, 200
      %v338 = vld [vmem:[%s337] sm:$0xff]
      %v339 = vld [vmem:[%s337 + $0x8] sm:$0xff]
      %v340 = vld [vmem:[%s337 + $0x10] sm:$0xff]
      %v341 = vld [vmem:[%s337 + $0x18] sm:$0xff]
      %v342 = vld [vmem:[%s337 + $0x20] sm:$0xff]
      %v343 = vld [vmem:[%s337 + $0x28] sm:$0xff]
      %v344 = vld [vmem:[%s337 + $0x30] sm:$0xff]
      %v345 = vld [vmem:[%s337 + $0x38] sm:$0xff]
      %v346 = vld [vmem:[%s337 + $0x40] sm:$0xff]
      %v347 = vld [vmem:[%s337 + $0x48] sm:$0xff]
      %v348 = vld [vmem:[%s337 + $0x50] sm:$0xff]
      %v349 = vld [vmem:[%s337 + $0x58] sm:$0xff]
      %v350 = vld [vmem:[%s337 + $0x60] sm:$0xff]
      %v351 = vld [vmem:[%s337 + $0x68] sm:$0xff]
      %v352 = vld [vmem:[%s337 + $0x70] sm:$0xff]
      %v353 = vld [vmem:[%s337 + $0x78] sm:$0xff]
      %v354 = vld [vmem:[%s337 + $0x80] sm:$0xff]
      %v355 = vld [vmem:[%s337 + $0x88] sm:$0xff]
      %v356 = vld [vmem:[%s337 + $0x90] sm:$0xff]
      %v357 = vld [vmem:[%s337 + $0x98] sm:$0xff]
      %v358 = vld [vmem:[%s337 + $0xa0] sm:$0xff]
      %v359 = vld [vmem:[%s337 + $0xa8] sm:$0xff]
      %v360 = vld [vmem:[%s337 + $0xb0] sm:$0xff]
      %v361 = vld [vmem:[%s337 + $0xb8] sm:$0xff]
      %v362 = vld [vmem:[%s337 + $0xc0] sm:$0xf]
      %v363 = vpack.c.bf16 %v339, %v338
      %v364 = vpack.c.bf16 %v341, %v340
      %v365 = vpack.c.bf16 %v343, %v342
      %v366 = vpack.c.bf16 %v345, %v344
      %v367 = vpack.c.bf16 %v347, %v346
      %v368 = vpack.c.bf16 %v349, %v348
      %v369 = vpack.c.bf16 %v351, %v350
      %v370 = vpack.c.bf16 %v353, %v352
      %v371 = vpack.c.bf16 %v355, %v354
      %v372 = vpack.c.bf16 %v357, %v356
      %v373 = vpack.c.bf16 %v359, %v358
      %v374 = vpack.c.bf16 %v361, %v360
      %v375 = vpack.c.bf16 %v362, %v362
      %v377 = vsel %vm217, %v363, 0
      %v380 = vsel %vm217, %v364, 0
      %v383 = vsel %vm217, %v365, 0
      %v386 = vsel %vm217, %v366, 0
      %v389 = vsel %vm217, %v367, 0
      %v392 = vsel %vm217, %v368, 0
      %v395 = vsel %vm217, %v369, 0
      %v398 = vsel %vm217, %v370, 0
      %v401 = vsel %vm217, %v371, 0
      %v404 = vsel %vm217, %v372, 0
      %v407 = vsel %vm217, %v373, 0
      %v410 = vsel %vm217, %v374, 0
      %v413 = vsel %vm217, %v375, 0
      %415 = vmatpush.bf16.msra.mxu0 0
      %416 = vmatpush.bf16.msra.mxu0 0
      %417 = vmatpush.bf16.msra.mxu0 0
      %418 = vmatpush.bf16.msra.mxu0 0
      %419 = vmatpush.bf16.msra.mxu0 0
      %420 = vmatpush.bf16.msra.mxu0 0
      %421 = vmatpush.bf16.msra.mxu0 0
      %422 = vmatpush.bf16.msra.mxu0 %v262
      %423 = vmatmul.bf16.gmra.mxu0 %v377
      %v424 = vpop.f32.mrf.mxu0
      %v425 = vadd.f32 0.0, %v424
      %v426 = vpop.f32.mrf.mxu0
      %v427 = vadd.f32 0.0, %v426
      %428 = vmatmul.bf16.gmra.mxu0 %v380
      %v429 = vpop.f32.mrf.mxu0
      %v430 = vadd.f32 0.0, %v429
      %v431 = vpop.f32.mrf.mxu0
      %v432 = vadd.f32 0.0, %v431
      %433 = vmatmul.bf16.gmra.mxu0 %v383
      %v434 = vpop.f32.mrf.mxu0
      %v435 = vadd.f32 0.0, %v434
      %v436 = vpop.f32.mrf.mxu0
      %v437 = vadd.f32 0.0, %v436
      %438 = vmatmul.bf16.gmra.mxu0 %v386
      %v439 = vpop.f32.mrf.mxu0
      %v440 = vadd.f32 0.0, %v439
      %v441 = vpop.f32.mrf.mxu0
      %v442 = vadd.f32 0.0, %v441
      %443 = vmatmul.bf16.gmra.mxu0 %v389
      %v444 = vpop.f32.mrf.mxu0
      %v445 = vadd.f32 0.0, %v444
      %v446 = vpop.f32.mrf.mxu0
      %v447 = vadd.f32 0.0, %v446
      %448 = vmatmul.bf16.gmra.mxu0 %v392
      %v449 = vpop.f32.mrf.mxu0
      %v450 = vadd.f32 0.0, %v449
      %v451 = vpop.f32.mrf.mxu0
      %v452 = vadd.f32 0.0, %v451
      %453 = vmatmul.bf16.gmra.mxu0 %v395
      %v454 = vpop.f32.mrf.mxu0
      %v455 = vadd.f32 0.0, %v454
      %v456 = vpop.f32.mrf.mxu0
      %v457 = vadd.f32 0.0, %v456
      %458 = vmatmul.bf16.gmra.mxu0 %v398
      %v459 = vpop.f32.mrf.mxu0
      %v460 = vadd.f32 0.0, %v459
      %v461 = vpop.f32.mrf.mxu0
      %v462 = vadd.f32 0.0, %v461
      %463 = vmatmul.bf16.gmra.mxu0 %v401
      %v464 = vpop.f32.mrf.mxu0
      %v465 = vadd.f32 0.0, %v464
      %v466 = vpop.f32.mrf.mxu0
      %v467 = vadd.f32 0.0, %v466
      %468 = vmatmul.bf16.gmra.mxu0 %v404
      %v469 = vpop.f32.mrf.mxu0
      %v470 = vadd.f32 0.0, %v469
      %v471 = vpop.f32.mrf.mxu0
      %v472 = vadd.f32 0.0, %v471
      %473 = vmatmul.bf16.gmra.mxu0 %v407
      %v474 = vpop.f32.mrf.mxu0
      %v475 = vadd.f32 0.0, %v474
      %v476 = vpop.f32.mrf.mxu0
      %v477 = vadd.f32 0.0, %v476
      %478 = vmatmul.bf16.gmra.mxu0 %v410
      %v479 = vpop.f32.mrf.mxu0
      %v480 = vadd.f32 0.0, %v479
      %v481 = vpop.f32.mrf.mxu0
      %v482 = vadd.f32 0.0, %v481
      %483 = vmatmul.bf16.gmra.mxu0 %v413
      %v484 = vpop.f32.mrf.mxu0
      %v485 = vadd.f32 0.0, %v484
      %v486 = vpop.f32.mrf.mxu0
      %487 = vdwg.mxu0
      %s488 = scalar_lea.vmem %s165, 400
      %v489 = vld [vmem:[%s488] sm:$0xff]
      %v490 = vld [vmem:[%s488 + $0x8] sm:$0xff]
      %v491 = vld [vmem:[%s488 + $0x10] sm:$0xff]
      %v492 = vld [vmem:[%s488 + $0x18] sm:$0xff]
      %v493 = vld [vmem:[%s488 + $0x20] sm:$0xff]
      %v494 = vld [vmem:[%s488 + $0x28] sm:$0xff]
      %v495 = vld [vmem:[%s488 + $0x30] sm:$0xff]
      %v496 = vld [vmem:[%s488 + $0x38] sm:$0xff]
      %v497 = vld [vmem:[%s488 + $0x40] sm:$0xff]
      %v498 = vld [vmem:[%s488 + $0x48] sm:$0xff]
      %v499 = vld [vmem:[%s488 + $0x50] sm:$0xff]
      %v500 = vld [vmem:[%s488 + $0x58] sm:$0xff]
      %v501 = vld [vmem:[%s488 + $0x60] sm:$0xff]
      %v502 = vld [vmem:[%s488 + $0x68] sm:$0xff]
      %v503 = vld [vmem:[%s488 + $0x70] sm:$0xff]
      %v504 = vld [vmem:[%s488 + $0x78] sm:$0xff]
      %v505 = vld [vmem:[%s488 + $0x80] sm:$0xff]
      %v506 = vld [vmem:[%s488 + $0x88] sm:$0xff]
      %v507 = vld [vmem:[%s488 + $0x90] sm:$0xff]
      %v508 = vld [vmem:[%s488 + $0x98] sm:$0xff]
      %v509 = vld [vmem:[%s488 + $0xa0] sm:$0xff]
      %v510 = vld [vmem:[%s488 + $0xa8] sm:$0xff]
      %v511 = vld [vmem:[%s488 + $0xb0] sm:$0xff]
      %v512 = vld [vmem:[%s488 + $0xb8] sm:$0xff]
      %v513 = vld [vmem:[%s488 + $0xc0] sm:$0xf]
      %v514 = vpack.c.bf16 %v490, %v489
      %v515 = vpack.c.bf16 %v492, %v491
      %v516 = vpack.c.bf16 %v494, %v493
      %v517 = vpack.c.bf16 %v496, %v495
      %v518 = vpack.c.bf16 %v498, %v497
      %v519 = vpack.c.bf16 %v500, %v499
      %v520 = vpack.c.bf16 %v502, %v501
      %v521 = vpack.c.bf16 %v504, %v503
      %v522 = vpack.c.bf16 %v506, %v505
      %v523 = vpack.c.bf16 %v508, %v507
      %v524 = vpack.c.bf16 %v510, %v509
      %v525 = vpack.c.bf16 %v512, %v511
      %v526 = vpack.c.bf16 %v513, %v513
      %v528 = vsel %vm217, %v514, 0
      %v531 = vsel %vm217, %v515, 0
      %v534 = vsel %vm217, %v516, 0
      %v537 = vsel %vm217, %v517, 0
      %v540 = vsel %vm217, %v518, 0
      %v543 = vsel %vm217, %v519, 0
      %v546 = vsel %vm217, %v520, 0
      %v549 = vsel %vm217, %v521, 0
      %v552 = vsel %vm217, %v522, 0
      %v555 = vsel %vm217, %v523, 0
      %v558 = vsel %vm217, %v524, 0
      %v561 = vsel %vm217, %v525, 0
      %v564 = vsel %vm217, %v526, 0
      %566 = vmatpush.bf16.msra.mxu0 0
      %567 = vmatpush.bf16.msra.mxu0 0
      %568 = vmatpush.bf16.msra.mxu0 0
      %569 = vmatpush.bf16.msra.mxu0 0
      %570 = vmatpush.bf16.msra.mxu0 0
      %571 = vmatpush.bf16.msra.mxu0 0
      %572 = vmatpush.bf16.msra.mxu0 0
      %573 = vmatpush.bf16.msra.mxu0 %v262
      %574 = vmatmul.bf16.gmra.mxu0 %v528
      %v575 = vpop.f32.mrf.mxu0
      %v576 = vadd.f32 0.0, %v575
      %v577 = vpop.f32.mrf.mxu0
      %v578 = vadd.f32 0.0, %v577
      %579 = vmatmul.bf16.gmra.mxu0 %v531
      %v580 = vpop.f32.mrf.mxu0
      %v581 = vadd.f32 0.0, %v580
      %v582 = vpop.f32.mrf.mxu0
      %v583 = vadd.f32 0.0, %v582
      %584 = vmatmul.bf16.gmra.mxu0 %v534
      %v585 = vpop.f32.mrf.mxu0
      %v586 = vadd.f32 0.0, %v585
      %v587 = vpop.f32.mrf.mxu0
      %v588 = vadd.f32 0.0, %v587
      %589 = vmatmul.bf16.gmra.mxu0 %v537
      %v590 = vpop.f32.mrf.mxu0
      %v591 = vadd.f32 0.0, %v590
      %v592 = vpop.f32.mrf.mxu0
      %v593 = vadd.f32 0.0, %v592
      %594 = vmatmul.bf16.gmra.mxu0 %v540
      %v595 = vpop.f32.mrf.mxu0
      %v596 = vadd.f32 0.0, %v595
      %v597 = vpop.f32.mrf.mxu0
      %v598 = vadd.f32 0.0, %v597
      %599 = vmatmul.bf16.gmra.mxu0 %v543
      %v600 = vpop.f32.mrf.mxu0
      %v601 = vadd.f32 0.0, %v600
      %v602 = vpop.f32.mrf.mxu0
      %v603 = vadd.f32 0.0, %v602
      %604 = vmatmul.bf16.gmra.mxu0 %v546
      %v605 = vpop.f32.mrf.mxu0
      %v606 = vadd.f32 0.0, %v605
      %v607 = vpop.f32.mrf.mxu0
      %v608 = vadd.f32 0.0, %v607
      %609 = vmatmul.bf16.gmra.mxu0 %v549
      %v610 = vpop.f32.mrf.mxu0
      %v611 = vadd.f32 0.0, %v610
      %v612 = vpop.f32.mrf.mxu0
      %v613 = vadd.f32 0.0, %v612
      %614 = vmatmul.bf16.gmra.mxu0 %v552
      %v615 = vpop.f32.mrf.mxu0
      %v616 = vadd.f32 0.0, %v615
      %v617 = vpop.f32.mrf.mxu0
      %v618 = vadd.f32 0.0, %v617
      %619 = vmatmul.bf16.gmra.mxu0 %v555
      %v620 = vpop.f32.mrf.mxu0
      %v621 = vadd.f32 0.0, %v620
      %v622 = vpop.f32.mrf.mxu0
      %v623 = vadd.f32 0.0, %v622
      %624 = vmatmul.bf16.gmra.mxu0 %v558
      %v625 = vpop.f32.mrf.mxu0
      %v626 = vadd.f32 0.0, %v625
      %v627 = vpop.f32.mrf.mxu0
      %v628 = vadd.f32 0.0, %v627
      %629 = vmatmul.bf16.gmra.mxu0 %v561
      %v630 = vpop.f32.mrf.mxu0
      %v631 = vadd.f32 0.0, %v630
      %v632 = vpop.f32.mrf.mxu0
      %v633 = vadd.f32 0.0, %v632
      %634 = vmatmul.bf16.gmra.mxu0 %v564
      %v635 = vpop.f32.mrf.mxu0
      %v636 = vadd.f32 0.0, %v635
      %v637 = vpop.f32.mrf.mxu0
      %638 = vdwg.mxu0
      %s639 = scalar_lea.vmem %s165, 600
      %v640 = vld [vmem:[%s639] sm:$0xff]
      %v641 = vld [vmem:[%s639 + $0x8] sm:$0xff]
      %v642 = vld [vmem:[%s639 + $0x10] sm:$0xff]
      %v643 = vld [vmem:[%s639 + $0x18] sm:$0xff]
      %v644 = vld [vmem:[%s639 + $0x20] sm:$0xff]
      %v645 = vld [vmem:[%s639 + $0x28] sm:$0xff]
      %v646 = vld [vmem:[%s639 + $0x30] sm:$0xff]
      %v647 = vld [vmem:[%s639 + $0x38] sm:$0xff]
      %v648 = vld [vmem:[%s639 + $0x40] sm:$0xff]
      %v649 = vld [vmem:[%s639 + $0x48] sm:$0xff]
      %v650 = vld [vmem:[%s639 + $0x50] sm:$0xff]
      %v651 = vld [vmem:[%s639 + $0x58] sm:$0xff]
      %v652 = vld [vmem:[%s639 + $0x60] sm:$0xff]
      %v653 = vld [vmem:[%s639 + $0x68] sm:$0xff]
      %v654 = vld [vmem:[%s639 + $0x70] sm:$0xff]
      %v655 = vld [vmem:[%s639 + $0x78] sm:$0xff]
      %v656 = vld [vmem:[%s639 + $0x80] sm:$0xff]
      %v657 = vld [vmem:[%s639 + $0x88] sm:$0xff]
      %v658 = vld [vmem:[%s639 + $0x90] sm:$0xff]
      %v659 = vld [vmem:[%s639 + $0x98] sm:$0xff]
      %v660 = vld [vmem:[%s639 + $0xa0] sm:$0xff]
      %v661 = vld [vmem:[%s639 + $0xa8] sm:$0xff]
      %v662 = vld [vmem:[%s639 + $0xb0] sm:$0xff]
      %v663 = vld [vmem:[%s639 + $0xb8] sm:$0xff]
      %v664 = vld [vmem:[%s639 + $0xc0] sm:$0xf]
      %v665 = vpack.c.bf16 %v641, %v640
      %v666 = vpack.c.bf16 %v643, %v642
      %v667 = vpack.c.bf16 %v645, %v644
      %v668 = vpack.c.bf16 %v647, %v646
      %v669 = vpack.c.bf16 %v649, %v648
      %v670 = vpack.c.bf16 %v651, %v650
      %v671 = vpack.c.bf16 %v653, %v652
      %v672 = vpack.c.bf16 %v655, %v654
      %v673 = vpack.c.bf16 %v657, %v656
      %v674 = vpack.c.bf16 %v659, %v658
      %v675 = vpack.c.bf16 %v661, %v660
      %v676 = vpack.c.bf16 %v663, %v662
      %v677 = vpack.c.bf16 %v664, %v664
      %v679 = vsel %vm217, %v665, 0
      %v682 = vsel %vm217, %v666, 0
      %v685 = vsel %vm217, %v667, 0
      %v688 = vsel %vm217, %v668, 0
      %v691 = vsel %vm217, %v669, 0
      %v694 = vsel %vm217, %v670, 0
      %v697 = vsel %vm217, %v671, 0
      %v700 = vsel %vm217, %v672, 0
      %v703 = vsel %vm217, %v673, 0
      %v706 = vsel %vm217, %v674, 0
      %v709 = vsel %vm217, %v675, 0
      %v712 = vsel %vm217, %v676, 0
      %v715 = vsel %vm217, %v677, 0
      %717 = vmatpush.bf16.msra.mxu0 0
      %718 = vmatpush.bf16.msra.mxu0 0
      %719 = vmatpush.bf16.msra.mxu0 0
      %720 = vmatpush.bf16.msra.mxu0 0
      %721 = vmatpush.bf16.msra.mxu0 0
      %722 = vmatpush.bf16.msra.mxu0 0
      %723 = vmatpush.bf16.msra.mxu0 0
      %724 = vmatpush.bf16.msra.mxu0 %v262
      %725 = vmatmul.bf16.gmra.mxu0 %v679
      %v726 = vpop.f32.mrf.mxu0
      %v727 = vadd.f32 0.0, %v726
      %v728 = vpop.f32.mrf.mxu0
      %v729 = vadd.f32 0.0, %v728
      %730 = vmatmul.bf16.gmra.mxu0 %v682
      %v731 = vpop.f32.mrf.mxu0
      %v732 = vadd.f32 0.0, %v731
      %v733 = vpop.f32.mrf.mxu0
      %v734 = vadd.f32 0.0, %v733
      %735 = vmatmul.bf16.gmra.mxu0 %v685
      %v736 = vpop.f32.mrf.mxu0
      %v737 = vadd.f32 0.0, %v736
      %v738 = vpop.f32.mrf.mxu0
      %v739 = vadd.f32 0.0, %v738
      %740 = vmatmul.bf16.gmra.mxu0 %v688
      %v741 = vpop.f32.mrf.mxu0
      %v742 = vadd.f32 0.0, %v741
      %v743 = vpop.f32.mrf.mxu0
      %v744 = vadd.f32 0.0, %v743
      %745 = vmatmul.bf16.gmra.mxu0 %v691
      %v746 = vpop.f32.mrf.mxu0
      %v747 = vadd.f32 0.0, %v746
      %v748 = vpop.f32.mrf.mxu0
      %v749 = vadd.f32 0.0, %v748
      %750 = vmatmul.bf16.gmra.mxu0 %v694
      %v751 = vpop.f32.mrf.mxu0
      %v752 = vadd.f32 0.0, %v751
      %v753 = vpop.f32.mrf.mxu0
      %v754 = vadd.f32 0.0, %v753
      %755 = vmatmul.bf16.gmra.mxu0 %v697
      %v756 = vpop.f32.mrf.mxu0
      %v757 = vadd.f32 0.0, %v756
      %v758 = vpop.f32.mrf.mxu0
      %v759 = vadd.f32 0.0, %v758
      %760 = vmatmul.bf16.gmra.mxu0 %v700
      %v761 = vpop.f32.mrf.mxu0
      %v762 = vadd.f32 0.0, %v761
      %v763 = vpop.f32.mrf.mxu0
      %v764 = vadd.f32 0.0, %v763
      %765 = vmatmul.bf16.gmra.mxu0 %v703
      %v766 = vpop.f32.mrf.mxu0
      %v767 = vadd.f32 0.0, %v766
      %v768 = vpop.f32.mrf.mxu0
      %v769 = vadd.f32 0.0, %v768
      %770 = vmatmul.bf16.gmra.mxu0 %v706
      %v771 = vpop.f32.mrf.mxu0
      %v772 = vadd.f32 0.0, %v771
      %v773 = vpop.f32.mrf.mxu0
      %v774 = vadd.f32 0.0, %v773
      %775 = vmatmul.bf16.gmra.mxu0 %v709
      %v776 = vpop.f32.mrf.mxu0
      %v777 = vadd.f32 0.0, %v776
      %v778 = vpop.f32.mrf.mxu0
      %v779 = vadd.f32 0.0, %v778
      %780 = vmatmul.bf16.gmra.mxu0 %v712
      %v781 = vpop.f32.mrf.mxu0
      %v782 = vadd.f32 0.0, %v781
      %v783 = vpop.f32.mrf.mxu0
      %v784 = vadd.f32 0.0, %v783
      %785 = vmatmul.bf16.gmra.mxu0 %v715
      %v786 = vpop.f32.mrf.mxu0
      %v787 = vadd.f32 0.0, %v786
      %v788 = vpop.f32.mrf.mxu0
      %789 = vdwg.mxu0
      %v790 = vmax.f32 %v274, %v425
      %v791 = vmax.f32 %v276, %v427
      %v792 = vmax.f32 %v279, %v430
      %v793 = vmax.f32 %v281, %v432
      %v794 = vmax.f32 %v284, %v435
      %v795 = vmax.f32 %v286, %v437
      %v796 = vmax.f32 %v289, %v440
      %v797 = vmax.f32 %v291, %v442
      %v798 = vmax.f32 %v294, %v445
      %v799 = vmax.f32 %v296, %v447
      %v800 = vmax.f32 %v299, %v450
      %v801 = vmax.f32 %v301, %v452
      %v802 = vmax.f32 %v304, %v455
      %v803 = vmax.f32 %v306, %v457
      %v804 = vmax.f32 %v309, %v460
      %v805 = vmax.f32 %v311, %v462
      %v806 = vmax.f32 %v314, %v465
      %v807 = vmax.f32 %v316, %v467
      %v808 = vmax.f32 %v319, %v470
      %v809 = vmax.f32 %v321, %v472
      %v810 = vmax.f32 %v324, %v475
      %v811 = vmax.f32 %v326, %v477
      %v812 = vmax.f32 %v329, %v480
      %v813 = vmax.f32 %v331, %v482
      %v814 = vmax.f32 %v334, %v485
      %v815 = vmax.f32 %v576, %v727
      %v816 = vmax.f32 %v578, %v729
      %v817 = vmax.f32 %v581, %v732
      %v818 = vmax.f32 %v583, %v734
      %v819 = vmax.f32 %v586, %v737
      %v820 = vmax.f32 %v588, %v739
      %v821 = vmax.f32 %v591, %v742
      %v822 = vmax.f32 %v593, %v744
      %v823 = vmax.f32 %v596, %v747
      %v824 = vmax.f32 %v598, %v749
      %v825 = vmax.f32 %v601, %v752
      %v826 = vmax.f32 %v603, %v754
      %v827 = vmax.f32 %v606, %v757
      %v828 = vmax.f32 %v608, %v759
      %v829 = vmax.f32 %v611, %v762
      %v830 = vmax.f32 %v613, %v764
      %v831 = vmax.f32 %v616, %v767
      %v832 = vmax.f32 %v618, %v769
      %v833 = vmax.f32 %v621, %v772
      %v834 = vmax.f32 %v623, %v774
      %v835 = vmax.f32 %v626, %v777
      %v836 = vmax.f32 %v628, %v779
      %v837 = vmax.f32 %v631, %v782
      %v838 = vmax.f32 %v633, %v784
      %v839 = vmax.f32 %v636, %v787
      %v840 = vmax.f32 %v790, %v815
      %v841 = vmax.f32 %v791, %v816
      %v842 = vmax.f32 %v792, %v817
      %v843 = vmax.f32 %v793, %v818
      %v844 = vmax.f32 %v794, %v819
      %v845 = vmax.f32 %v795, %v820
      %v846 = vmax.f32 %v796, %v821
      %v847 = vmax.f32 %v797, %v822
      %v848 = vmax.f32 %v798, %v823
      %v849 = vmax.f32 %v799, %v824
      %v850 = vmax.f32 %v800, %v825
      %v851 = vmax.f32 %v801, %v826
      %v852 = vmax.f32 %v802, %v827
      %v853 = vmax.f32 %v803, %v828
      %v854 = vmax.f32 %v804, %v829
      %v855 = vmax.f32 %v805, %v830
      %v856 = vmax.f32 %v806, %v831
      %v857 = vmax.f32 %v807, %v832
      %v858 = vmax.f32 %v808, %v833
      %v859 = vmax.f32 %v809, %v834
      %v860 = vmax.f32 %v810, %v835
      %v861 = vmax.f32 %v811, %v836
      %v862 = vmax.f32 %v812, %v837
      %v863 = vmax.f32 %v813, %v838
      %v864 = vmax.f32 %v814, %v839
      %v865 = vld [vmem:[%s2] sm:$0x1]
      %v867 = vperm.slane %v865, 0
      %v869 = vadd.f32 %v840, %v867
      %v870 = vadd.f32 %v841, %v867
      %v871 = vadd.f32 %v842, %v867
      %v872 = vadd.f32 %v843, %v867
      %v873 = vadd.f32 %v844, %v867
      %v874 = vadd.f32 %v845, %v867
      %v875 = vadd.f32 %v846, %v867
      %v876 = vadd.f32 %v847, %v867
      %v877 = vadd.f32 %v848, %v867
      %v878 = vadd.f32 %v849, %v867
      %v879 = vadd.f32 %v850, %v867
      %v880 = vadd.f32 %v851, %v867
      %v881 = vadd.f32 %v852, %v867
      %v882 = vadd.f32 %v853, %v867
      %v883 = vadd.f32 %v854, %v867
      %v884 = vadd.f32 %v855, %v867
      %v885 = vadd.f32 %v856, %v867
      %v886 = vadd.f32 %v857, %v867
      %v887 = vadd.f32 %v858, %v867
      %v888 = vadd.f32 %v859, %v867
      %v889 = vadd.f32 %v860, %v867
      %v890 = vadd.f32 %v861, %v867
      %v891 = vadd.f32 %v862, %v867
      %v892 = vadd.f32 %v863, %v867
      %v893 = vadd.f32 %v864, %v867
      %v894 = vmax.f32 %v869, 0.0
      %v895 = vmax.f32 %v870, 0.0
      %v896 = vmax.f32 %v871, 0.0
      %v897 = vmax.f32 %v872, 0.0
      %v898 = vmax.f32 %v873, 0.0
      %v899 = vmax.f32 %v874, 0.0
      %v900 = vmax.f32 %v875, 0.0
      %v901 = vmax.f32 %v876, 0.0
      %v902 = vmax.f32 %v877, 0.0
      %v903 = vmax.f32 %v878, 0.0
      %v904 = vmax.f32 %v879, 0.0
      %v905 = vmax.f32 %v880, 0.0
      %v906 = vmax.f32 %v881, 0.0
      %v907 = vmax.f32 %v882, 0.0
      %v908 = vmax.f32 %v883, 0.0
      %v909 = vmax.f32 %v884, 0.0
      %v910 = vmax.f32 %v885, 0.0
      %v911 = vmax.f32 %v886, 0.0
      %v912 = vmax.f32 %v887, 0.0
      %v913 = vmax.f32 %v888, 0.0
      %v914 = vmax.f32 %v889, 0.0
      %v915 = vmax.f32 %v890, 0.0
      %v916 = vmax.f32 %v891, 0.0
      %v917 = vmax.f32 %v892, 0.0
      %v918 = vmax.f32 %v893, 0.0
      %v919 = vpack.c.bf16 %v894, %v894
      %v920 = vpack.c.bf16 %v895, %v895
      %v921 = vpack.c.bf16 %v896, %v896
      %v922 = vpack.c.bf16 %v897, %v897
      %v923 = vpack.c.bf16 %v898, %v898
      %v924 = vpack.c.bf16 %v899, %v899
      %v925 = vpack.c.bf16 %v900, %v900
      %v926 = vpack.c.bf16 %v901, %v901
      %v927 = vpack.c.bf16 %v902, %v902
      %v928 = vpack.c.bf16 %v903, %v903
      %v929 = vpack.c.bf16 %v904, %v904
      %v930 = vpack.c.bf16 %v905, %v905
      %v931 = vpack.c.bf16 %v906, %v906
      %v932 = vpack.c.bf16 %v907, %v907
      %v933 = vpack.c.bf16 %v908, %v908
      %v934 = vpack.c.bf16 %v909, %v909
      %v935 = vpack.c.bf16 %v910, %v910
      %v936 = vpack.c.bf16 %v911, %v911
      %v937 = vpack.c.bf16 %v912, %v912
      %v938 = vpack.c.bf16 %v913, %v913
      %v939 = vpack.c.bf16 %v914, %v914
      %v940 = vpack.c.bf16 %v915, %v915
      %v941 = vpack.c.bf16 %v916, %v916
      %v942 = vpack.c.bf16 %v917, %v917
      %v943 = vpack.c.bf16 %v918, %v918
      %vm944 = vcmask 257024
      %945 = vst.msk [vmem:[%s170] sm:$0xf] %vm944, %v919
      %946 = vst.msk [vmem:[%s170 + $0x4] sm:$0xf] %vm944, %v920
      %947 = vst.msk [vmem:[%s170 + $0x8] sm:$0xf] %vm944, %v921
      %948 = vst.msk [vmem:[%s170 + $0xc] sm:$0xf] %vm944, %v922
      %949 = vst.msk [vmem:[%s170 + $0x10] sm:$0xf] %vm944, %v923
      %950 = vst.msk [vmem:[%s170 + $0x14] sm:$0xf] %vm944, %v924
      %951 = vst.msk [vmem:[%s170 + $0x18] sm:$0xf] %vm944, %v925
      %952 = vst.msk [vmem:[%s170 + $0x1c] sm:$0xf] %vm944, %v926
      %953 = vst.msk [vmem:[%s170 + $0x20] sm:$0xf] %vm944, %v927
      %954 = vst.msk [vmem:[%s170 + $0x24] sm:$0xf] %vm944, %v928
      %955 = vst.msk [vmem:[%s170 + $0x28] sm:$0xf] %vm944, %v929
      %956 = vst.msk [vmem:[%s170 + $0x2c] sm:$0xf] %vm944, %v930
      %957 = vst.msk [vmem:[%s170 + $0x30] sm:$0xf] %vm944, %v931
      %958 = vst.msk [vmem:[%s170 + $0x34] sm:$0xf] %vm944, %v932
      %959 = vst.msk [vmem:[%s170 + $0x38] sm:$0xf] %vm944, %v933
      %960 = vst.msk [vmem:[%s170 + $0x3c] sm:$0xf] %vm944, %v934
      %961 = vst.msk [vmem:[%s170 + $0x40] sm:$0xf] %vm944, %v935
      %962 = vst.msk [vmem:[%s170 + $0x44] sm:$0xf] %vm944, %v936
      %963 = vst.msk [vmem:[%s170 + $0x48] sm:$0xf] %vm944, %v937
      %964 = vst.msk [vmem:[%s170 + $0x4c] sm:$0xf] %vm944, %v938
      %965 = vst.msk [vmem:[%s170 + $0x50] sm:$0xf] %vm944, %v939
      %966 = vst.msk [vmem:[%s170 + $0x54] sm:$0xf] %vm944, %v940
      %967 = vst.msk [vmem:[%s170 + $0x58] sm:$0xf] %vm944, %v941
      %968 = vst.msk [vmem:[%s170 + $0x5c] sm:$0xf] %vm944, %v942
      %vm969 = vcmask 254976
      %970 = vst.msk [vmem:[%s170 + $0x60] sm:$0x3] %vm969, %v943
      %p971 = scmp.lt.s32.totalorder %s14, 1
      %s972 = scalar_select %p971, %s14, 1
      %s973 = smul.addr %s972, 25
      %s974 = smul.addr %s973, 4
      %s975 = scalar_lea.vmem %s3, %s974
      // Predicated region
      $region33: #{number_classifier_forward.3} parent=31 // pred_check
        %p976 = pneg %p100
      $region34: #{number_classifier_forward.3} parent=31 // pred_check_branch
        %978 = sbr.rel (%p976) target = $region36
      $region35: #{number_classifier_forward.3} parent=31 // pred_region
        _
      $region36: #{number_classifier_forward.3} parent=31 // pred_fallthru
        _
    $region32: #{number_classifier_forward.3} parent=5 // pred_fallthru
      _
    %p979 = scmp.le.s32.totalorder 2, %s9
    // Predicated region
    $region37: #{number_classifier_forward.3} parent=5 // pred_check
      %p980 = pneg %p979
    $region38: #{number_classifier_forward.3} parent=5 // pred_check_branch
      %982 = sbr.rel (%p980) target = $region40
    $region39: #{number_classifier_forward.3} parent=5 // pred_region
      %s983 = ssub.s32 %s9, 2
      // Predicated region
      $region41: #{number_classifier_forward.3} parent=39 // pred_check
        %p984 = pneg %p106
      $region42: #{number_classifier_forward.3} parent=39 // pred_check_branch
        %986 = sbr.rel (%p984) target = $region44
      $region43: #{number_classifier_forward.3} parent=39 // pred_region
        %p987 = scmp.lt.s32.totalorder %s15, 1
        %s988 = scalar_select %p987, %s15, 1
        %s989 = smul.addr %s988, 25
        %s990 = smul.addr %s989, 4
        %s991 = scalar_lea.vmem %s3, %s990
      $region44: #{number_classifier_forward.3} parent=39 // pred_fallthru
        _
    $region40: #{number_classifier_forward.3} parent=5 // pred_fallthru
      _
  $region6: #{number_classifier_forward.3} parent=0 // loop_footer
    %s13 = sadd.s32 1, %s9
  $region7: #{number_classifier_forward.3} parent=0 // loop_footer_branch
    %8 = sbr.rel target = $region3
  $region8: #{number_classifier_forward.3} parent=0 // loop_exit
    _

// kernel: number_classifier_forward.4
$region0: #{number_classifier_forward.4}
  #allocation0 [shape = 'u32[]', space=smem, size = 0x4, offset = 0x4, fixed_abs, tag = 'smem constant byte address 0x4 - core index']
  #allocation1 [shape = 'u32[72,128]{1,0:T(1,128)}', space=vmem, size = 0x9000, scoped, tag = 'internal scratch']
  %s0 = inlined_call_operand.vmem [shape: bf16[2,4,49,288], index: 0, kind: input, shape index: {}]
  %s1 = inlined_call_operand.vmem [shape: bf16[288,64], index: 1, kind: input, shape index: {}]
  %s2 = inlined_call_operand.vmem [shape: f32[1,64], index: 2, kind: input, shape index: {}]
  %s3 = inlined_call_operand.vmem [shape: bf16[2,49,64], index: 3, kind: output, shape index: {}]
  %s4 = sld [smem:[#allocation0]]
  $region45: #{number_classifier_forward.4} parent=0
    _
  %s6 = ssub.s32 1, %s4
  %s7 = scalar_select 0, %s6, %s4
  loop: start=0, step=1, limit=4
  $region2: #{number_classifier_forward.4} parent=0 // loop_pre_header
    _
  $region3: #{number_classifier_forward.4} parent=0 // loop_header
    %s9 = sphi 0, %s13
    %p10 = scmp.ge.s32.totalorder %s9, 4
    %s19 = sphi 0, %s21
    %s22 = sphi 0, %s19
    %s23 = sphi 0, %s22
    %s39 = sphi 0, %s23
    %s43 = sphi 0, %s43
    %s45 = sphi 0, %s43
    %s46 = sphi 0, %s45
    %s60 = sphi 0, %s46
    %s64 = sphi 0, %s64
    %s66 = sphi 0, %s64
    %s67 = sphi 0, %s66
    %s81 = sphi 0, %s67
    %s87 = sphi 0, %s89
    %s90 = sphi 0, %s87
    %s91 = sphi 0, %s90
    %s107 = sphi 0, %s91
  $region4: #{number_classifier_forward.4} parent=0 // loop_header_branch
    %12 = sbr.rel (%p10) target = $region8
  $region5: #{number_classifier_forward.4} parent=0 // loop_body
    %s14 = ssub.s32 %s9, 1
    %s15 = ssub.s32 %s9, 2
    %s16 = sadd.s32 %s9, 1
    %s17 = ssub.s32 %s9, %s16
    %p18 = scmp.eq.s32.totalorder %s17, 0
    %s20 = sadd.s32 %s19, 1
    %s21 = scalar_select %p18, %s19, %s20
    %p24 = pneg %p18
    %p25 = scmp.eq.s32.totalorder %s9, 1
    %p26 = por %p24, %p25
    %p27 = scmp.ne.s32.totalorder %s19, %s22
    %p28 = scmp.eq.s32.totalorder %s9, 0
    %p29 = por %p27, %p28
    %p30 = scmp.ne.s32.totalorder %s19, %s22
    %p31 = scmp.eq.s32.totalorder %s14, 1
    %p32 = por %p30, %p31
    %p33 = scmp.ne.s32.totalorder %s22, %s23
    %p34 = scmp.eq.s32.totalorder %s14, 0
    %p35 = por %p33, %p34
    %p36 = scmp.ne.s32.totalorder %s22, %s23
    %p37 = scmp.eq.s32.totalorder %s15, 1
    %p38 = por %p36, %p37
    %p40 = scmp.ne.s32.totalorder %s23, %s39
    %p41 = scmp.eq.s32.totalorder %s15, 0
    %p42 = por %p40, %p41
    %s44 = sadd.s32 %s43, 1
    %p47 = scmp.eq.s32.totalorder %s9, 1
    %p48 = scmp.ne.s32.totalorder %s43, %s45
    %p49 = scmp.eq.s32.totalorder %s9, 0
    %p50 = por %p48, %p49
    %p51 = scmp.ne.s32.totalorder %s43, %s45
    %p52 = scmp.eq.s32.totalorder %s14, 1
    %p53 = por %p51, %p52
    %p54 = scmp.ne.s32.totalorder %s45, %s46
    %p55 = scmp.eq.s32.totalorder %s14, 0
    %p56 = por %p54, %p55
    %p57 = scmp.ne.s32.totalorder %s45, %s46
    %p58 = scmp.eq.s32.totalorder %s15, 1
    %p59 = por %p57, %p58
    %p61 = scmp.ne.s32.totalorder %s46, %s60
    %p62 = scmp.eq.s32.totalorder %s15, 0
    %p63 = por %p61, %p62
    %s65 = sadd.s32 %s64, 1
    %p68 = scmp.eq.s32.totalorder %s9, 1
    %p69 = scmp.ne.s32.totalorder %s64, %s66
    %p70 = scmp.eq.s32.totalorder %s9, 0
    %p71 = por %p69, %p70
    %p72 = scmp.ne.s32.totalorder %s64, %s66
    %p73 = scmp.eq.s32.totalorder %s14, 1
    %p74 = por %p72, %p73
    %p75 = scmp.ne.s32.totalorder %s66, %s67
    %p76 = scmp.eq.s32.totalorder %s14, 0
    %p77 = por %p75, %p76
    %p78 = scmp.ne.s32.totalorder %s66, %s67
    %p79 = scmp.eq.s32.totalorder %s15, 1
    %p80 = por %p78, %p79
    %p82 = scmp.ne.s32.totalorder %s67, %s81
    %p83 = scmp.eq.s32.totalorder %s15, 0
    %p84 = por %p82, %p83
    %s85 = ssub.s32 %s9, %s16
    %p86 = scmp.eq.s32.totalorder %s85, 0
    %s88 = sadd.s32 %s87, 1
    %s89 = scalar_select %p86, %s87, %s88
    %p92 = pneg %p86
    %p93 = scmp.eq.s32.totalorder %s9, 1
    %p94 = por %p92, %p93
    %p95 = scmp.ne.s32.totalorder %s87, %s90
    %p96 = scmp.eq.s32.totalorder %s9, 0
    %p97 = por %p95, %p96
    %p98 = scmp.ne.s32.totalorder %s87, %s90
    %p99 = scmp.eq.s32.totalorder %s14, 1
    %p100 = por %p98, %p99
    %p101 = scmp.ne.s32.totalorder %s90, %s91
    %p102 = scmp.eq.s32.totalorder %s14, 0
    %p103 = por %p101, %p102
    %p104 = scmp.ne.s32.totalorder %s90, %s91
    %p105 = scmp.eq.s32.totalorder %s15, 1
    %p106 = por %p104, %p105
    %p108 = scmp.ne.s32.totalorder %s91, %s107
    %p109 = scmp.eq.s32.totalorder %s15, 0
    %p110 = por %p108, %p109
    %p111 = scmp.le.s32.totalorder 1, %s9
    %p112 = scmp.lt.s32.totalorder %s9, 3
    %p113 = pnand %p111, %p112
    %p114 = pneg %p113
    // Predicated region
    $region9: #{number_classifier_forward.4} parent=5 // pred_check
      _
    $region10: #{number_classifier_forward.4} parent=5 // pred_check_branch
      %116 = sbr.rel (%p113) target = $region12
    $region11: #{number_classifier_forward.4} parent=5 // pred_region
      %s117 = ssub.s32 %s9, 1
      // Predicated region
      $region13: #{number_classifier_forward.4} parent=11 // pred_check
        %p118 = pneg %p56
      $region14: #{number_classifier_forward.4} parent=11 // pred_check_branch
        %120 = sbr.rel (%p118) target = $region16
      $region15: #{number_classifier_forward.4} parent=11 // pred_region
        _
      $region16: #{number_classifier_forward.4} parent=11 // pred_fallthru
        _
      // Predicated region
      $region17: #{number_classifier_forward.4} parent=11 // pred_check
        %p121 = pneg %p77
      $region18: #{number_classifier_forward.4} parent=11 // pred_check_branch
        %123 = sbr.rel (%p121) target = $region20
      $region19: #{number_classifier_forward.4} parent=11 // pred_region
        _
      $region20: #{number_classifier_forward.4} parent=11 // pred_fallthru
        _
    $region12: #{number_classifier_forward.4} parent=5 // pred_fallthru
      _
    %p124 = scmp.lt.s32.totalorder %s9, 2
    // Predicated region
    $region21: #{number_classifier_forward.4} parent=5 // pred_check
      %p125 = pneg %p124
    $region22: #{number_classifier_forward.4} parent=5 // pred_check_branch
      %127 = sbr.rel (%p125) target = $region24
    $region23: #{number_classifier_forward.4} parent=5 // pred_region
      // Predicated region
      $region25: #{number_classifier_forward.4} parent=23 // pred_check
        %p128 = pneg %p29
      $region26: #{number_classifier_forward.4} parent=23 // pred_check_branch
        %130 = sbr.rel (%p128) target = $region28
      $region27: #{number_classifier_forward.4} parent=23 // pred_region
        %p131 = scmp.lt.s32.totalorder %s9, 1
        %s132 = scalar_select %p131, %s9, 1
        %s133 = smul.addr %s132, 84
        %s134 = smul.addr %s133, 4
        %s135 = scalar_lea.vmem %s0, %s134
      $region28: #{number_classifier_forward.4} parent=23 // pred_fallthru
        _
    $region24: #{number_classifier_forward.4} parent=5 // pred_fallthru
      _
    %p136 = scmp.le.s32.totalorder 1, %s9
    %p137 = scmp.lt.s32.totalorder %s9, 3
    %p138 = pnand %p136, %p137
    %p139 = pneg %p138
    // Predicated region
    $region29: #{number_classifier_forward.4} parent=5 // pred_check
      _
    $region30: #{number_classifier_forward.4} parent=5 // pred_check_branch
      %141 = sbr.rel (%p138) target = $region32
    $region31: #{number_classifier_forward.4} parent=5 // pred_region
      %s142 = ssub.s32 %s9, 1
      %p143 = scmp.lt.s32.totalorder %s14, 1
      %s144 = scalar_select %p143, %s14, 1
      %s145 = smul.addr %s144, 84
      %s146 = smul.addr %s145, 4
      %s147 = scalar_lea.vmem %s0, %s146
      %p148 = pneg %p35
      %p149 = pneg %p32
      %p150 = pneg %p56
      %p151 = pneg %p53
      %p152 = pneg %p77
      %p153 = pneg %p74
      %p154 = pneg %p103
      %p155 = pneg %p100
      %p156 = scmp.lt.s32.totalorder %s14, 1
      %s157 = scalar_select %p156, %s14, 1
      %s158 = smul.addr %s157, 7
      %s159 = smul.addr %s158, 4
      %s160 = scalar_lea.vmem %s3, %s159
      %p161 = scmp.lt.s32.totalorder %s14, 1
      %s162 = scalar_select %p161, %s14, 1
      %s163 = smul.addr %s162, 84
      %s164 = smul.addr %s163, 4
      %s165 = scalar_lea.vmem %s0, %s164
      %p166 = scmp.lt.s32.totalorder %s14, 1
      %s167 = scalar_select %p166, %s14, 1
      %s168 = smul.addr %s167, 7
      %s169 = smul.addr %s168, 4
      %s170 = scalar_lea.vmem %s3, %s169
      %v172 = vld [vmem:[%s1] sm:$0xf]
      %v173 = vld [vmem:[%s1 + $0x4] sm:$0xf]
      %v174 = vld [vmem:[%s1 + $0x8] sm:$0xf]
      %v175 = vld [vmem:[%s1 + $0xc] sm:$0xf]
      %v176 = vld [vmem:[%s1 + $0x10] sm:$0xf]
      %v177 = vld [vmem:[%s1 + $0x14] sm:$0xf]
      %v178 = vld [vmem:[%s1 + $0x18] sm:$0xf]
      %v179 = vld [vmem:[%s1 + $0x1c] sm:$0xf]
      %v180 = vld [vmem:[%s1 + $0x20] sm:$0xf]
      %v181 = vld [vmem:[%s1 + $0x24] sm:$0xf]
      %v182 = vld [vmem:[%s1 + $0x28] sm:$0xf]
      %v183 = vld [vmem:[%s1 + $0x2c] sm:$0xf]
      %v184 = vld [vmem:[%s1 + $0x30] sm:$0xf]
      %v185 = vld [vmem:[%s1 + $0x34] sm:$0xf]
      %v186 = vld [vmem:[%s1 + $0x38] sm:$0xf]
      %v187 = vld [vmem:[%s1 + $0x3c] sm:$0xf]
      %v188 = vld [vmem:[%s1 + $0x40] sm:$0xf]
      %v189 = vld [vmem:[%s1 + $0x44] sm:$0xf]
      %v190 = vld [vmem:[%s1 + $0x48] sm:$0xf]
      %v191 = vld [vmem:[%s1 + $0x4c] sm:$0xf]
      %v192 = vld [vmem:[%s1 + $0x50] sm:$0xf]
      %v193 = vld [vmem:[%s1 + $0x54] sm:$0xf]
      %v194 = vld [vmem:[%s1 + $0x58] sm:$0xf]
      %v195 = vld [vmem:[%s1 + $0x5c] sm:$0xf]
      %v196 = vld [vmem:[%s1 + $0x60] sm:$0xf]
      %v197 = vld [vmem:[%s1 + $0x64] sm:$0xf]
      %v198 = vld [vmem:[%s1 + $0x68] sm:$0xf]
      %v199 = vld [vmem:[%s1 + $0x6c] sm:$0xf]
      %v200 = vld [vmem:[%s1 + $0x70] sm:$0xf]
      %v201 = vld [vmem:[%s1 + $0x74] sm:$0xf]
      %v202 = vld [vmem:[%s1 + $0x78] sm:$0xf]
      %v203 = vld [vmem:[%s1 + $0x7c] sm:$0xf]
      %v204 = vld [vmem:[%s1 + $0x80] sm:$0xf]
      %v205 = vld [vmem:[%s1 + $0x84] sm:$0xf]
      %v206 = vld [vmem:[%s1 + $0x88] sm:$0xf]
      %v207 = vld [vmem:[%s1 + $0x8c] sm:$0xf]
      %v208 = vld [vmem:[%s165] sm:$0xff]
      %v209 = vld [vmem:[%s165 + $0x8] sm:$0xf]
      %v210 = vld [vmem:[%s165 + $0xc] sm:$0xff]
      %v211 = vld [vmem:[%s165 + $0x14] sm:$0xf]
      %v212 = vld [vmem:[%s165 + $0x18] sm:$0xff]
      %v213 = vld [vmem:[%s165 + $0x20] sm:$0xf]
      %v214 = vld [vmem:[%s165 + $0x24] sm:$0xff]
      %v215 = vld [vmem:[%s165 + $0x2c] sm:$0xf]
      %v216 = vld [vmem:[%s165 + $0x30] sm:$0xff]
      %v217 = vld [vmem:[%s165 + $0x38] sm:$0xf]
      %v218 = vld [vmem:[%s165 + $0x3c] sm:$0xff]
      %v219 = vld [vmem:[%s165 + $0x44] sm:$0xf]
      %v220 = vld [vmem:[%s165 + $0x48] sm:$0x11]
      %v221 = vld [vmem:[%s165 + $0x50] sm:$0x1]
      %v236 = vunpack.c.l.b16 %v208
      %v237 = vunpack.c.h.b16 %v208
      %v238 = vunpack.c.l.b16 %v209
      %v239 = vunpack.c.l.b16 %v210
      %v240 = vunpack.c.h.b16 %v210
      %v241 = vunpack.c.l.b16 %v211
      %v242 = vunpack.c.l.b16 %v212
      %v243 = vunpack.c.h.b16 %v212
      %v244 = vunpack.c.l.b16 %v213
      %v245 = vunpack.c.l.b16 %v214
      %v246 = vunpack.c.h.b16 %v214
      %v247 = vunpack.c.l.b16 %v215
      %v248 = vunpack.c.l.b16 %v216
      %v249 = vunpack.c.h.b16 %v216
      %v250 = vunpack.c.l.b16 %v217
      %v251 = vunpack.c.l.b16 %v218
      %v252 = vunpack.c.h.b16 %v218
      %v253 = vunpack.c.l.b16 %v219
      %v254 = vunpack.c.l.b16 %v220
      %v255 = vunpack.c.h.b16 %v220
      %v256 = vunpack.c.l.b16 %v221
      %v257 = vpack.c.b16 %v239, %v236
      %v258 = vpack.c.b16 %v240, %v237
      %v259 = vpack.c.b16 %v241, %v238
      %v260 = vpack.c.b16 %v245, %v242
      %v261 = vpack.c.b16 %v246, %v243
      %v262 = vpack.c.b16 %v247, %v244
      %v263 = vpack.c.b16 %v251, %v248
      %v264 = vpack.c.b16 %v252, %v249
      %v265 = vpack.c.b16 %v253, %v250
      %v266 = vpack.c.b16 %v254, %v254
      %v267 = vpack.c.b16 %v255, %v255
      %v268 = vpack.c.b16 %v256, %v256
      %v313 = vunpack.c.l.b16 %v172
      %v314 = vunpack.c.l.b16 %v173
      %v315 = vunpack.c.l.b16 %v174
      %v316 = vunpack.c.l.b16 %v175
      %v317 = vunpack.c.l.b16 %v176
      %v318 = vunpack.c.l.b16 %v177
      %v319 = vunpack.c.l.b16 %v178
      %v320 = vunpack.c.l.b16 %v179
      %v321 = vunpack.c.l.b16 %v180
      %v322 = vunpack.c.l.b16 %v181
      %v323 = vunpack.c.l.b16 %v182
      %v324 = vunpack.c.l.b16 %v183
      %v325 = vunpack.c.l.b16 %v184
      %v326 = vunpack.c.l.b16 %v185
      %v327 = vunpack.c.l.b16 %v186
      %v328 = vunpack.c.l.b16 %v187
      %v329 = vunpack.c.l.b16 %v188
      %v330 = vunpack.c.l.b16 %v189
      %v331 = vunpack.c.l.b16 %v190
      %v332 = vunpack.c.l.b16 %v191
      %v333 = vunpack.c.l.b16 %v192
      %v334 = vunpack.c.l.b16 %v193
      %v335 = vunpack.c.l.b16 %v194
      %v336 = vunpack.c.l.b16 %v195
      %v337 = vunpack.c.l.b16 %v196
      %v338 = vunpack.c.l.b16 %v197
      %v339 = vunpack.c.l.b16 %v198
      %v340 = vunpack.c.l.b16 %v199
      %v341 = vunpack.c.l.b16 %v200
      %v342 = vunpack.c.l.b16 %v201
      %v343 = vunpack.c.l.b16 %v202
      %v344 = vunpack.c.l.b16 %v203
      %v345 = vunpack.c.l.b16 %v204
      %v346 = vunpack.c.l.b16 %v205
      %v347 = vunpack.c.l.b16 %v206
      %v348 = vunpack.c.l.b16 %v207
      %v349 = vpack.c.b16 %v314, %v313
      %v350 = vpack.c.b16 %v316, %v315
      %v351 = vpack.c.b16 %v318, %v317
      %v352 = vpack.c.b16 %v320, %v319
      %v353 = vpack.c.b16 %v322, %v321
      %v354 = vpack.c.b16 %v324, %v323
      %v355 = vpack.c.b16 %v326, %v325
      %v356 = vpack.c.b16 %v328, %v327
      %v357 = vpack.c.b16 %v330, %v329
      %v358 = vpack.c.b16 %v332, %v331
      %v359 = vpack.c.b16 %v334, %v333
      %v360 = vpack.c.b16 %v336, %v335
      %v361 = vpack.c.b16 %v338, %v337
      %v362 = vpack.c.b16 %v340, %v339
      %v363 = vpack.c.b16 %v342, %v341
      %v364 = vpack.c.b16 %v344, %v343
      %v365 = vpack.c.b16 %v346, %v345
      %v366 = vpack.c.b16 %v348, %v347
      %vm385 = vcmask 261120
      %v387 = vsel %vm385, %v259, 0
      %v390 = vsel %vm385, %v262, 0
      %v393 = vsel %vm385, %v265, 0
      %v396 = vsel %vm385, %v268, 0
      %398 = vmatpush.bf16.msra.mxu0 %v356
      %399 = vmatpush.bf16.msra.mxu0 %v355
      %400 = vmatpush.bf16.msra.mxu0 %v354
      %401 = vmatpush.bf16.msra.mxu0 %v353
      %402 = vmatpush.bf16.msra.mxu0 %v352
      %403 = vmatpush.bf16.msra.mxu0 %v351
      %404 = vmatpush.bf16.msra.mxu0 %v350
      %405 = vmatpush.bf16.msra.mxu0 %v349
      %406 = vmatmul.bf16.gmra.mxu0 %v257
      %v407 = vpop.f32.mrf.mxu0
      %v408 = vadd.f32 0.0, %v407
      %v409 = vpop.f32.mrf.mxu0
      %v410 = vadd.f32 0.0, %v409
      %411 = vmatmul.bf16.gmra.mxu0 %v260
      %v412 = vpop.f32.mrf.mxu0
      %v413 = vadd.f32 0.0, %v412
      %v414 = vpop.f32.mrf.mxu0
      %v415 = vadd.f32 0.0, %v414
      %416 = vmatmul.bf16.gmra.mxu0 %v263
      %v417 = vpop.f32.mrf.mxu0
      %v418 = vadd.f32 0.0, %v417
      %v419 = vpop.f32.mrf.mxu0
      %v420 = vadd.f32 0.0, %v419
      %421 = vmatmul.bf16.gmra.mxu0 %v266
      %v422 = vpop.f32.mrf.mxu0
      %v423 = vadd.f32 0.0, %v422
      %v424 = vpop.f32.mrf.mxu0
      %425 = vdwg.mxu0
      %426 = vmatpush.bf16.msra.mxu0 %v364
      %427 = vmatpush.bf16.msra.mxu0 %v363
      %428 = vmatpush.bf16.msra.mxu0 %v362
      %429 = vmatpush.bf16.msra.mxu0 %v361
      %430 = vmatpush.bf16.msra.mxu0 %v360
      %431 = vmatpush.bf16.msra.mxu0 %v359
      %432 = vmatpush.bf16.msra.mxu0 %v358
      %433 = vmatpush.bf16.msra.mxu0 %v357
      %434 = vmatmul.bf16.gmra.mxu0 %v258
      %v435 = vpop.f32.mrf.mxu0
      %v436 = vadd.f32 %v408, %v435
      %v437 = vpop.f32.mrf.mxu0
      %v438 = vadd.f32 %v410, %v437
      %439 = vmatmul.bf16.gmra.mxu0 %v261
      %v440 = vpop.f32.mrf.mxu0
      %v441 = vadd.f32 %v413, %v440
      %v442 = vpop.f32.mrf.mxu0
      %v443 = vadd.f32 %v415, %v442
      %444 = vmatmul.bf16.gmra.mxu0 %v264
      %v445 = vpop.f32.mrf.mxu0
      %v446 = vadd.f32 %v418, %v445
      %v447 = vpop.f32.mrf.mxu0
      %v448 = vadd.f32 %v420, %v447
      %449 = vmatmul.bf16.gmra.mxu0 %v267
      %v450 = vpop.f32.mrf.mxu0
      %v451 = vadd.f32 %v423, %v450
      %v452 = vpop.f32.mrf.mxu0
      %453 = vdwg.mxu0
      %454 = vmatpush.bf16.msra.mxu0 0
      %455 = vmatpush.bf16.msra.mxu0 0
      %456 = vmatpush.bf16.msra.mxu0 0
      %457 = vmatpush.bf16.msra.mxu0 0
      %458 = vmatpush.bf16.msra.mxu0 0
      %459 = vmatpush.bf16.msra.mxu0 0
      %460 = vmatpush.bf16.msra.mxu0 %v366
      %461 = vmatpush.bf16.msra.mxu0 %v365
      %462 = vmatmul.bf16.gmra.mxu0 %v387
      %v463 = vpop.f32.mrf.mxu0
      %v464 = vadd.f32 %v436, %v463
      %v465 = vpop.f32.mrf.mxu0
      %v466 = vadd.f32 %v438, %v465
      %467 = vmatmul.bf16.gmra.mxu0 %v390
      %v468 = vpop.f32.mrf.mxu0
      %v469 = vadd.f32 %v441, %v468
      %v470 = vpop.f32.mrf.mxu0
      %v471 = vadd.f32 %v443, %v470
      %472 = vmatmul.bf16.gmra.mxu0 %v393
      %v473 = vpop.f32.mrf.mxu0
      %v474 = vadd.f32 %v446, %v473
      %v475 = vpop.f32.mrf.mxu0
      %v476 = vadd.f32 %v448, %v475
      %477 = vmatmul.bf16.gmra.mxu0 %v396
      %v478 = vpop.f32.mrf.mxu0
      %v479 = vadd.f32 %v451, %v478
      %v480 = vpop.f32.mrf.mxu0
      %481 = vdwg.mxu0
      %s482 = scalar_lea.vmem %s165, 84
      %v483 = vld [vmem:[%s482] sm:$0xff]
      %v484 = vld [vmem:[%s482 + $0x8] sm:$0xf]
      %v485 = vld [vmem:[%s482 + $0xc] sm:$0xff]
      %v486 = vld [vmem:[%s482 + $0x14] sm:$0xf]
      %v487 = vld [vmem:[%s482 + $0x18] sm:$0xff]
      %v488 = vld [vmem:[%s482 + $0x20] sm:$0xf]
      %v489 = vld [vmem:[%s482 + $0x24] sm:$0xff]
      %v490 = vld [vmem:[%s482 + $0x2c] sm:$0xf]
      %v491 = vld [vmem:[%s482 + $0x30] sm:$0xff]
      %v492 = vld [vmem:[%s482 + $0x38] sm:$0xf]
      %v493 = vld [vmem:[%s482 + $0x3c] sm:$0xff]
      %v494 = vld [vmem:[%s482 + $0x44] sm:$0xf]
      %v495 = vld [vmem:[%s482 + $0x48] sm:$0x11]
      %v496 = vld [vmem:[%s482 + $0x50] sm:$0x1]
      %v511 = vunpack.c.l.b16 %v483
      %v512 = vunpack.c.h.b16 %v483
      %v513 = vunpack.c.l.b16 %v484
      %v514 = vunpack.c.l.b16 %v485
      %v515 = vunpack.c.h.b16 %v485
      %v516 = vunpack.c.l.b16 %v486
      %v517 = vunpack.c.l.b16 %v487
      %v518 = vunpack.c.h.b16 %v487
      %v519 = vunpack.c.l.b16 %v488
      %v520 = vunpack.c.l.b16 %v489
      %v521 = vunpack.c.h.b16 %v489
      %v522 = vunpack.c.l.b16 %v490
      %v523 = vunpack.c.l.b16 %v491
      %v524 = vunpack.c.h.b16 %v491
      %v525 = vunpack.c.l.b16 %v492
      %v526 = vunpack.c.l.b16 %v493
      %v527 = vunpack.c.h.b16 %v493
      %v528 = vunpack.c.l.b16 %v494
      %v529 = vunpack.c.l.b16 %v495
      %v530 = vunpack.c.h.b16 %v495
      %v531 = vunpack.c.l.b16 %v496
      %v532 = vpack.c.b16 %v514, %v511
      %v533 = vpack.c.b16 %v515, %v512
      %v534 = vpack.c.b16 %v516, %v513
      %v535 = vpack.c.b16 %v520, %v517
      %v536 = vpack.c.b16 %v521, %v518
      %v537 = vpack.c.b16 %v522, %v519
      %v538 = vpack.c.b16 %v526, %v523
      %v539 = vpack.c.b16 %v527, %v524
      %v540 = vpack.c.b16 %v528, %v525
      %v541 = vpack.c.b16 %v529, %v529
      %v542 = vpack.c.b16 %v530, %v530
      %v543 = vpack.c.b16 %v531, %v531
      %v553 = vsel %vm385, %v534, 0
      %v556 = vsel %vm385, %v537, 0
      %v559 = vsel %vm385, %v540, 0
      %v562 = vsel %vm385, %v543, 0
      %564 = vmatpush.bf16.msra.mxu0 %v356
      %565 = vmatpush.bf16.msra.mxu0 %v355
      %566 = vmatpush.bf16.msra.mxu0 %v354
      %567 = vmatpush.bf16.msra.mxu0 %v353
      %568 = vmatpush.bf16.msra.mxu0 %v352
      %569 = vmatpush.bf16.msra.mxu0 %v351
      %570 = vmatpush.bf16.msra.mxu0 %v350
      %571 = vmatpush.bf16.msra.mxu0 %v349
      %572 = vmatmul.bf16.gmra.mxu0 %v532
      %v573 = vpop.f32.mrf.mxu0
      %v574 = vadd.f32 0.0, %v573
      %v575 = vpop.f32.mrf.mxu0
      %v576 = vadd.f32 0.0, %v575
      %577 = vmatmul.bf16.gmra.mxu0 %v535
      %v578 = vpop.f32.mrf.mxu0
      %v579 = vadd.f32 0.0, %v578
      %v580 = vpop.f32.mrf.mxu0
      %v581 = vadd.f32 0.0, %v580
      %582 = vmatmul.bf16.gmra.mxu0 %v538
      %v583 = vpop.f32.mrf.mxu0
      %v584 = vadd.f32 0.0, %v583
      %v585 = vpop.f32.mrf.mxu0
      %v586 = vadd.f32 0.0, %v585
      %587 = vmatmul.bf16.gmra.mxu0 %v541
      %v588 = vpop.f32.mrf.mxu0
      %v589 = vadd.f32 0.0, %v588
      %v590 = vpop.f32.mrf.mxu0
      %591 = vdwg.mxu0
      %592 = vmatpush.bf16.msra.mxu0 %v364
      %593 = vmatpush.bf16.msra.mxu0 %v363
      %594 = vmatpush.bf16.msra.mxu0 %v362
      %595 = vmatpush.bf16.msra.mxu0 %v361
      %596 = vmatpush.bf16.msra.mxu0 %v360
      %597 = vmatpush.bf16.msra.mxu0 %v359
      %598 = vmatpush.bf16.msra.mxu0 %v358
      %599 = vmatpush.bf16.msra.mxu0 %v357
      %600 = vmatmul.bf16.gmra.mxu0 %v533
      %v601 = vpop.f32.mrf.mxu0
      %v602 = vadd.f32 %v574, %v601
      %v603 = vpop.f32.mrf.mxu0
      %v604 = vadd.f32 %v576, %v603
      %605 = vmatmul.bf16.gmra.mxu0 %v536
      %v606 = vpop.f32.mrf.mxu0
      %v607 = vadd.f32 %v579, %v606
      %v608 = vpop.f32.mrf.mxu0
      %v609 = vadd.f32 %v581, %v608
      %610 = vmatmul.bf16.gmra.mxu0 %v539
      %v611 = vpop.f32.mrf.mxu0
      %v612 = vadd.f32 %v584, %v611
      %v613 = vpop.f32.mrf.mxu0
      %v614 = vadd.f32 %v586, %v613
      %615 = vmatmul.bf16.gmra.mxu0 %v542
      %v616 = vpop.f32.mrf.mxu0
      %v617 = vadd.f32 %v589, %v616
      %v618 = vpop.f32.mrf.mxu0
      %619 = vdwg.mxu0
      %620 = vmatpush.bf16.msra.mxu0 0
      %621 = vmatpush.bf16.msra.mxu0 0
      %622 = vmatpush.bf16.msra.mxu0 0
      %623 = vmatpush.bf16.msra.mxu0 0
      %624 = vmatpush.bf16.msra.mxu0 0
      %625 = vmatpush.bf16.msra.mxu0 0
      %626 = vmatpush.bf16.msra.mxu0 %v366
      %627 = vmatpush.bf16.msra.mxu0 %v365
      %628 = vmatmul.bf16.gmra.mxu0 %v553
      %v629 = vpop.f32.mrf.mxu0
      %v630 = vadd.f32 %v602, %v629
      %v631 = vpop.f32.mrf.mxu0
      %v632 = vadd.f32 %v604, %v631
      %633 = vmatmul.bf16.gmra.mxu0 %v556
      %v634 = vpop.f32.mrf.mxu0
      %v635 = vadd.f32 %v607, %v634
      %v636 = vpop.f32.mrf.mxu0
      %v637 = vadd.f32 %v609, %v636
      %638 = vmatmul.bf16.gmra.mxu0 %v559
      %v639 = vpop.f32.mrf.mxu0
      %v640 = vadd.f32 %v612, %v639
      %v641 = vpop.f32.mrf.mxu0
      %v642 = vadd.f32 %v614, %v641
      %643 = vmatmul.bf16.gmra.mxu0 %v562
      %v644 = vpop.f32.mrf.mxu0
      %v645 = vadd.f32 %v617, %v644
      %v646 = vpop.f32.mrf.mxu0
      %647 = vdwg.mxu0
      %s648 = scalar_lea.vmem %s165, 168
      %v649 = vld [vmem:[%s648] sm:$0xff]
      %v650 = vld [vmem:[%s648 + $0x8] sm:$0xf]
      %v651 = vld [vmem:[%s648 + $0xc] sm:$0xff]
      %v652 = vld [vmem:[%s648 + $0x14] sm:$0xf]
      %v653 = vld [vmem:[%s648 + $0x18] sm:$0xff]
      %v654 = vld [vmem:[%s648 + $0x20] sm:$0xf]
      %v655 = vld [vmem:[%s648 + $0x24] sm:$0xff]
      %v656 = vld [vmem:[%s648 + $0x2c] sm:$0xf]
      %v657 = vld [vmem:[%s648 + $0x30] sm:$0xff]
      %v658 = vld [vmem:[%s648 + $0x38] sm:$0xf]
      %v659 = vld [vmem:[%s648 + $0x3c] sm:$0xff]
      %v660 = vld [vmem:[%s648 + $0x44] sm:$0xf]
      %v661 = vld [vmem:[%s648 + $0x48] sm:$0x11]
      %v662 = vld [vmem:[%s648 + $0x50] sm:$0x1]
      %v677 = vunpack.c.l.b16 %v649
      %v678 = vunpack.c.h.b16 %v649
      %v679 = vunpack.c.l.b16 %v650
      %v680 = vunpack.c.l.b16 %v651
      %v681 = vunpack.c.h.b16 %v651
      %v682 = vunpack.c.l.b16 %v652
      %v683 = vunpack.c.l.b16 %v653
      %v684 = vunpack.c.h.b16 %v653
      %v685 = vunpack.c.l.b16 %v654
      %v686 = vunpack.c.l.b16 %v655
      %v687 = vunpack.c.h.b16 %v655
      %v688 = vunpack.c.l.b16 %v656
      %v689 = vunpack.c.l.b16 %v657
      %v690 = vunpack.c.h.b16 %v657
      %v691 = vunpack.c.l.b16 %v658
      %v692 = vunpack.c.l.b16 %v659
      %v693 = vunpack.c.h.b16 %v659
      %v694 = vunpack.c.l.b16 %v660
      %v695 = vunpack.c.l.b16 %v661
      %v696 = vunpack.c.h.b16 %v661
      %v697 = vunpack.c.l.b16 %v662
      %v698 = vpack.c.b16 %v680, %v677
      %v699 = vpack.c.b16 %v681, %v678
      %v700 = vpack.c.b16 %v682, %v679
      %v701 = vpack.c.b16 %v686, %v683
      %v702 = vpack.c.b16 %v687, %v684
      %v703 = vpack.c.b16 %v688, %v685
      %v704 = vpack.c.b16 %v692, %v689
      %v705 = vpack.c.b16 %v693, %v690
      %v706 = vpack.c.b16 %v694, %v691
      %v707 = vpack.c.b16 %v695, %v695
      %v708 = vpack.c.b16 %v696, %v696
      %v709 = vpack.c.b16 %v697, %v697
      %v719 = vsel %vm385, %v700, 0
      %v722 = vsel %vm385, %v703, 0
      %v725 = vsel %vm385, %v706, 0
      %v728 = vsel %vm385, %v709, 0
      %730 = vmatpush.bf16.msra.mxu0 %v356
      %731 = vmatpush.bf16.msra.mxu0 %v355
      %732 = vmatpush.bf16.msra.mxu0 %v354
      %733 = vmatpush.bf16.msra.mxu0 %v353
      %734 = vmatpush.bf16.msra.mxu0 %v352
      %735 = vmatpush.bf16.msra.mxu0 %v351
      %736 = vmatpush.bf16.msra.mxu0 %v350
      %737 = vmatpush.bf16.msra.mxu0 %v349
      %738 = vmatmul.bf16.gmra.mxu0 %v698
      %v739 = vpop.f32.mrf.mxu0
      %v740 = vadd.f32 0.0, %v739
      %v741 = vpop.f32.mrf.mxu0
      %v742 = vadd.f32 0.0, %v741
      %743 = vmatmul.bf16.gmra.mxu0 %v701
      %v744 = vpop.f32.mrf.mxu0
      %v745 = vadd.f32 0.0, %v744
      %v746 = vpop.f32.mrf.mxu0
      %v747 = vadd.f32 0.0, %v746
      %748 = vmatmul.bf16.gmra.mxu0 %v704
      %v749 = vpop.f32.mrf.mxu0
      %v750 = vadd.f32 0.0, %v749
      %v751 = vpop.f32.mrf.mxu0
      %v752 = vadd.f32 0.0, %v751
      %753 = vmatmul.bf16.gmra.mxu0 %v707
      %v754 = vpop.f32.mrf.mxu0
      %v755 = vadd.f32 0.0, %v754
      %v756 = vpop.f32.mrf.mxu0
      %757 = vdwg.mxu0
      %758 = vmatpush.bf16.msra.mxu0 %v364
      %759 = vmatpush.bf16.msra.mxu0 %v363
      %760 = vmatpush.bf16.msra.mxu0 %v362
      %761 = vmatpush.bf16.msra.mxu0 %v361
      %762 = vmatpush.bf16.msra.mxu0 %v360
      %763 = vmatpush.bf16.msra.mxu0 %v359
      %764 = vmatpush.bf16.msra.mxu0 %v358
      %765 = vmatpush.bf16.msra.mxu0 %v357
      %766 = vmatmul.bf16.gmra.mxu0 %v699
      %v767 = vpop.f32.mrf.mxu0
      %v768 = vadd.f32 %v740, %v767
      %v769 = vpop.f32.mrf.mxu0
      %v770 = vadd.f32 %v742, %v769
      %771 = vmatmul.bf16.gmra.mxu0 %v702
      %v772 = vpop.f32.mrf.mxu0
      %v773 = vadd.f32 %v745, %v772
      %v774 = vpop.f32.mrf.mxu0
      %v775 = vadd.f32 %v747, %v774
      %776 = vmatmul.bf16.gmra.mxu0 %v705
      %v777 = vpop.f32.mrf.mxu0
      %v778 = vadd.f32 %v750, %v777
      %v779 = vpop.f32.mrf.mxu0
      %v780 = vadd.f32 %v752, %v779
      %781 = vmatmul.bf16.gmra.mxu0 %v708
      %v782 = vpop.f32.mrf.mxu0
      %v783 = vadd.f32 %v755, %v782
      %v784 = vpop.f32.mrf.mxu0
      %785 = vdwg.mxu0
      %786 = vmatpush.bf16.msra.mxu0 0
      %787 = vmatpush.bf16.msra.mxu0 0
      %788 = vmatpush.bf16.msra.mxu0 0
      %789 = vmatpush.bf16.msra.mxu0 0
      %790 = vmatpush.bf16.msra.mxu0 0
      %791 = vmatpush.bf16.msra.mxu0 0
      %792 = vmatpush.bf16.msra.mxu0 %v366
      %793 = vmatpush.bf16.msra.mxu0 %v365
      %794 = vmatmul.bf16.gmra.mxu0 %v719
      %v795 = vpop.f32.mrf.mxu0
      %v796 = vadd.f32 %v768, %v795
      %v797 = vpop.f32.mrf.mxu0
      %v798 = vadd.f32 %v770, %v797
      %799 = vmatmul.bf16.gmra.mxu0 %v722
      %v800 = vpop.f32.mrf.mxu0
      %v801 = vadd.f32 %v773, %v800
      %v802 = vpop.f32.mrf.mxu0
      %v803 = vadd.f32 %v775, %v802
      %804 = vmatmul.bf16.gmra.mxu0 %v725
      %v805 = vpop.f32.mrf.mxu0
      %v806 = vadd.f32 %v778, %v805
      %v807 = vpop.f32.mrf.mxu0
      %v808 = vadd.f32 %v780, %v807
      %809 = vmatmul.bf16.gmra.mxu0 %v728
      %v810 = vpop.f32.mrf.mxu0
      %v811 = vadd.f32 %v783, %v810
      %v812 = vpop.f32.mrf.mxu0
      %813 = vdwg.mxu0
      %s814 = scalar_lea.vmem %s165, 252
      %v815 = vld [vmem:[%s814] sm:$0xff]
      %v816 = vld [vmem:[%s814 + $0x8] sm:$0xf]
      %v817 = vld [vmem:[%s814 + $0xc] sm:$0xff]
      %v818 = vld [vmem:[%s814 + $0x14] sm:$0xf]
      %v819 = vld [vmem:[%s814 + $0x18] sm:$0xff]
      %v820 = vld [vmem:[%s814 + $0x20] sm:$0xf]
      %v821 = vld [vmem:[%s814 + $0x24] sm:$0xff]
      %v822 = vld [vmem:[%s814 + $0x2c] sm:$0xf]
      %v823 = vld [vmem:[%s814 + $0x30] sm:$0xff]
      %v824 = vld [vmem:[%s814 + $0x38] sm:$0xf]
      %v825 = vld [vmem:[%s814 + $0x3c] sm:$0xff]
      %v826 = vld [vmem:[%s814 + $0x44] sm:$0xf]
      %v827 = vld [vmem:[%s814 + $0x48] sm:$0x11]
      %v828 = vld [vmem:[%s814 + $0x50] sm:$0x1]
      %v843 = vunpack.c.l.b16 %v815
      %v844 = vunpack.c.h.b16 %v815
      %v845 = vunpack.c.l.b16 %v816
      %v846 = vunpack.c.l.b16 %v817
      %v847 = vunpack.c.h.b16 %v817
      %v848 = vunpack.c.l.b16 %v818
      %v849 = vunpack.c.l.b16 %v819
      %v850 = vunpack.c.h.b16 %v819
      %v851 = vunpack.c.l.b16 %v820
      %v852 = vunpack.c.l.b16 %v821
      %v853 = vunpack.c.h.b16 %v821
      %v854 = vunpack.c.l.b16 %v822
      %v855 = vunpack.c.l.b16 %v823
      %v856 = vunpack.c.h.b16 %v823
      %v857 = vunpack.c.l.b16 %v824
      %v858 = vunpack.c.l.b16 %v825
      %v859 = vunpack.c.h.b16 %v825
      %v860 = vunpack.c.l.b16 %v826
      %v861 = vunpack.c.l.b16 %v827
      %v862 = vunpack.c.h.b16 %v827
      %v863 = vunpack.c.l.b16 %v828
      %v864 = vpack.c.b16 %v846, %v843
      %v865 = vpack.c.b16 %v847, %v844
      %v866 = vpack.c.b16 %v848, %v845
      %v867 = vpack.c.b16 %v852, %v849
      %v868 = vpack.c.b16 %v853, %v850
      %v869 = vpack.c.b16 %v854, %v851
      %v870 = vpack.c.b16 %v858, %v855
      %v871 = vpack.c.b16 %v859, %v856
      %v872 = vpack.c.b16 %v860, %v857
      %v873 = vpack.c.b16 %v861, %v861
      %v874 = vpack.c.b16 %v862, %v862
      %v875 = vpack.c.b16 %v863, %v863
      %v885 = vsel %vm385, %v866, 0
      %v888 = vsel %vm385, %v869, 0
      %v891 = vsel %vm385, %v872, 0
      %v894 = vsel %vm385, %v875, 0
      %896 = vmatpush.bf16.msra.mxu0 %v356
      %897 = vmatpush.bf16.msra.mxu0 %v355
      %898 = vmatpush.bf16.msra.mxu0 %v354
      %899 = vmatpush.bf16.msra.mxu0 %v353
      %900 = vmatpush.bf16.msra.mxu0 %v352
      %901 = vmatpush.bf16.msra.mxu0 %v351
      %902 = vmatpush.bf16.msra.mxu0 %v350
      %903 = vmatpush.bf16.msra.mxu0 %v349
      %904 = vmatmul.bf16.gmra.mxu0 %v864
      %v905 = vpop.f32.mrf.mxu0
      %v906 = vadd.f32 0.0, %v905
      %v907 = vpop.f32.mrf.mxu0
      %v908 = vadd.f32 0.0, %v907
      %909 = vmatmul.bf16.gmra.mxu0 %v867
      %v910 = vpop.f32.mrf.mxu0
      %v911 = vadd.f32 0.0, %v910
      %v912 = vpop.f32.mrf.mxu0
      %v913 = vadd.f32 0.0, %v912
      %914 = vmatmul.bf16.gmra.mxu0 %v870
      %v915 = vpop.f32.mrf.mxu0
      %v916 = vadd.f32 0.0, %v915
      %v917 = vpop.f32.mrf.mxu0
      %v918 = vadd.f32 0.0, %v917
      %919 = vmatmul.bf16.gmra.mxu0 %v873
      %v920 = vpop.f32.mrf.mxu0
      %v921 = vadd.f32 0.0, %v920
      %v922 = vpop.f32.mrf.mxu0
      %923 = vdwg.mxu0
      %924 = vmatpush.bf16.msra.mxu0 %v364
      %925 = vmatpush.bf16.msra.mxu0 %v363
      %926 = vmatpush.bf16.msra.mxu0 %v362
      %927 = vmatpush.bf16.msra.mxu0 %v361
      %928 = vmatpush.bf16.msra.mxu0 %v360
      %929 = vmatpush.bf16.msra.mxu0 %v359
      %930 = vmatpush.bf16.msra.mxu0 %v358
      %931 = vmatpush.bf16.msra.mxu0 %v357
      %932 = vmatmul.bf16.gmra.mxu0 %v865
      %v933 = vpop.f32.mrf.mxu0
      %v934 = vadd.f32 %v906, %v933
      %v935 = vpop.f32.mrf.mxu0
      %v936 = vadd.f32 %v908, %v935
      %937 = vmatmul.bf16.gmra.mxu0 %v868
      %v938 = vpop.f32.mrf.mxu0
      %v939 = vadd.f32 %v911, %v938
      %v940 = vpop.f32.mrf.mxu0
      %v941 = vadd.f32 %v913, %v940
      %942 = vmatmul.bf16.gmra.mxu0 %v871
      %v943 = vpop.f32.mrf.mxu0
      %v944 = vadd.f32 %v916, %v943
      %v945 = vpop.f32.mrf.mxu0
      %v946 = vadd.f32 %v918, %v945
      %947 = vmatmul.bf16.gmra.mxu0 %v874
      %v948 = vpop.f32.mrf.mxu0
      %v949 = vadd.f32 %v921, %v948
      %v950 = vpop.f32.mrf.mxu0
      %951 = vdwg.mxu0
      %952 = vmatpush.bf16.msra.mxu0 0
      %953 = vmatpush.bf16.msra.mxu0 0
      %954 = vmatpush.bf16.msra.mxu0 0
      %955 = vmatpush.bf16.msra.mxu0 0
      %956 = vmatpush.bf16.msra.mxu0 0
      %957 = vmatpush.bf16.msra.mxu0 0
      %958 = vmatpush.bf16.msra.mxu0 %v366
      %959 = vmatpush.bf16.msra.mxu0 %v365
      %960 = vmatmul.bf16.gmra.mxu0 %v885
      %v961 = vpop.f32.mrf.mxu0
      %v962 = vadd.f32 %v934, %v961
      %v963 = vpop.f32.mrf.mxu0
      %v964 = vadd.f32 %v936, %v963
      %965 = vmatmul.bf16.gmra.mxu0 %v888
      %v966 = vpop.f32.mrf.mxu0
      %v967 = vadd.f32 %v939, %v966
      %v968 = vpop.f32.mrf.mxu0
      %v969 = vadd.f32 %v941, %v968
      %970 = vmatmul.bf16.gmra.mxu0 %v891
      %v971 = vpop.f32.mrf.mxu0
      %v972 = vadd.f32 %v944, %v971
      %v973 = vpop.f32.mrf.mxu0
      %v974 = vadd.f32 %v946, %v973
      %975 = vmatmul.bf16.gmra.mxu0 %v894
      %v976 = vpop.f32.mrf.mxu0
      %v977 = vadd.f32 %v949, %v976
      %v978 = vpop.f32.mrf.mxu0
      %979 = vdwg.mxu0
      %v980 = vmax.f32 %v464, %v630
      %v981 = vmax.f32 %v466, %v632
      %v982 = vmax.f32 %v469, %v635
      %v983 = vmax.f32 %v471, %v637
      %v984 = vmax.f32 %v474, %v640
      %v985 = vmax.f32 %v476, %v642
      %v986 = vmax.f32 %v479, %v645
      %v987 = vmax.f32 %v796, %v962
      %v988 = vmax.f32 %v798, %v964
      %v989 = vmax.f32 %v801, %v967
      %v990 = vmax.f32 %v803, %v969
      %v991 = vmax.f32 %v806, %v972
      %v992 = vmax.f32 %v808, %v974
      %v993 = vmax.f32 %v811, %v977
      %v994 = vmax.f32 %v980, %v987
      %v995 = vmax.f32 %v981, %v988
      %v996 = vmax.f32 %v982, %v989
      %v997 = vmax.f32 %v983, %v990
      %v998 = vmax.f32 %v984, %v991
      %v999 = vmax.f32 %v985, %v992
      %v1000 = vmax.f32 %v986, %v993
      %v1001 = vld [vmem:[%s2] sm:$0x1]
      %v1003 = vperm.slane %v1001, 0
      %v1005 = vadd.f32 %v994, %v1003
      %v1006 = vadd.f32 %v995, %v1003
      %v1007 = vadd.f32 %v996, %v1003
      %v1008 = vadd.f32 %v997, %v1003
      %v1009 = vadd.f32 %v998, %v1003
      %v1010 = vadd.f32 %v999, %v1003
      %v1011 = vadd.f32 %v1000, %v1003
      %v1012 = vmax.f32 %v1005, 0.0
      %v1013 = vmax.f32 %v1006, 0.0
      %v1014 = vmax.f32 %v1007, 0.0
      %v1015 = vmax.f32 %v1008, 0.0
      %v1016 = vmax.f32 %v1009, 0.0
      %v1017 = vmax.f32 %v1010, 0.0
      %v1018 = vmax.f32 %v1011, 0.0
      %v1019 = vpack.c.bf16 %v1012, %v1012
      %v1020 = vpack.c.bf16 %v1013, %v1013
      %v1021 = vpack.c.bf16 %v1014, %v1014
      %v1022 = vpack.c.bf16 %v1015, %v1015
      %v1023 = vpack.c.bf16 %v1016, %v1016
      %v1024 = vpack.c.bf16 %v1017, %v1017
      %v1025 = vpack.c.bf16 %v1018, %v1018
      %vm1026 = vcmask 519168
      %1027 = vst.msk [vmem:[%s170] sm:$0xf] %vm1026, %v1019
      %1028 = vst.msk [vmem:[%s170 + $0x4] sm:$0xf] %vm1026, %v1020
      %1029 = vst.msk [vmem:[%s170 + $0x8] sm:$0xf] %vm1026, %v1021
      %1030 = vst.msk [vmem:[%s170 + $0xc] sm:$0xf] %vm1026, %v1022
      %1031 = vst.msk [vmem:[%s170 + $0x10] sm:$0xf] %vm1026, %v1023
      %1032 = vst.msk [vmem:[%s170 + $0x14] sm:$0xf] %vm1026, %v1024
      %vm1033 = vcmask 516096
      %vm1034 = vsmask.f32 256
      %vm1035 = vmand %vm1033, %vm1034
      %v1036 = vld [vmem:[%s170 + $0x18] sm:$0x1]
      %v1037 = vsel %vm1035, %v1025, %v1036
      %1038 = vst [vmem:[%s170 + $0x18] sm:$0x1] %v1037
      %p1039 = scmp.lt.s32.totalorder %s14, 1
      %s1040 = scalar_select %p1039, %s14, 1
      %s1041 = smul.addr %s1040, 7
      %s1042 = smul.addr %s1041, 4
      %s1043 = scalar_lea.vmem %s3, %s1042
      // Predicated region
      $region33: #{number_classifier_forward.4} parent=31 // pred_check
        %p1044 = pneg %p100
      $region34: #{number_classifier_forward.4} parent=31 // pred_check_branch
        %1046 = sbr.rel (%p1044) target = $region36
      $region35: #{number_classifier_forward.4} parent=31 // pred_region
        _
      $region36: #{number_classifier_forward.4} parent=31 // pred_fallthru
        _
    $region32: #{number_classifier_forward.4} parent=5 // pred_fallthru
      _
    %p1047 = scmp.le.s32.totalorder 2, %s9
    // Predicated region
    $region37: #{number_classifier_forward.4} parent=5 // pred_check
      %p1048 = pneg %p1047
    $region38: #{number_classifier_forward.4} parent=5 // pred_check_branch
      %1050 = sbr.rel (%p1048) target = $region40
    $region39: #{number_classifier_forward.4} parent=5 // pred_region
      %s1051 = ssub.s32 %s9, 2
      // Predicated region
      $region41: #{number_classifier_forward.4} parent=39 // pred_check
        %p1052 = pneg %p106
      $region42: #{number_classifier_forward.4} parent=39 // pred_check_branch
        %1054 = sbr.rel (%p1052) target = $region44
      $region43: #{number_classifier_forward.4} parent=39 // pred_region
        %p1055 = scmp.lt.s32.totalorder %s15, 1
        %s1056 = scalar_select %p1055, %s15, 1
        %s1057 = smul.addr %s1056, 7
        %s1058 = smul.addr %s1057, 4
        %s1059 = scalar_lea.vmem %s3, %s1058
      $region44: #{number_classifier_forward.4} parent=39 // pred_fallthru
        _
    $region40: #{number_classifier_forward.4} parent=5 // pred_fallthru
      _
  $region6: #{number_classifier_forward.4} parent=0 // loop_footer
    %s13 = sadd.s32 1, %s9
  $region7: #{number_classifier_forward.4} parent=0 // loop_footer_branch
    %8 = sbr.rel target = $region3
  $region8: #{number_classifier_forward.4} parent=0 // loop_exit
    _

// kernel: number_classifier_forward.5
$region0: #{number_classifier_forward.5}
  #allocation0 [shape = 'u32[]', space=smem, size = 0x4, offset = 0x4, fixed_abs, tag = 'smem constant byte address 0x4 - core index']
  #allocation1 [shape = 'u32[72,128]{1,0:T(1,128)}', space=vmem, size = 0x9000, scoped, tag = 'internal scratch']
  %s0 = inlined_call_operand.vmem [shape: bf16[8,3136], index: 0, kind: input, shape index: {}]
  %s1 = inlined_call_operand.vmem [shape: bf16[3136,128], index: 1, kind: input, shape index: {}]
  %s2 = inlined_call_operand.vmem [shape: f32[1,128], index: 2, kind: input, shape index: {}]
  %s3 = inlined_call_operand.vmem [shape: bf16[128,10], index: 3, kind: input, shape index: {}]
  %s4 = inlined_call_operand.vmem [shape: f32[1,10], index: 4, kind: input, shape index: {}]
  %s5 = inlined_call_operand.vmem [shape: f32[8,10], index: 5, kind: output, shape index: {}]
  %s6 = sld [smem:[#allocation0]]
  $region30: #{number_classifier_forward.5} parent=0
    _
  %s8 = ssub.s32 1, %s6
  %s9 = scalar_select 0, %s8, %s6
  // Predicated region
  $region2: #{number_classifier_forward.5} parent=0 // pred_check
    _
  $region3: #{number_classifier_forward.5} parent=0 // pred_check_branch
    %11 = sbr.rel (0) target = $region5
  $region4: #{number_classifier_forward.5} parent=0 // pred_region
    _
  $region5: #{number_classifier_forward.5} parent=0 // pred_fallthru
    _
  // Predicated region
  $region6: #{number_classifier_forward.5} parent=0 // pred_check
    _
  $region7: #{number_classifier_forward.5} parent=0 // pred_check_branch
    %13 = sbr.rel (0) target = $region9
  $region8: #{number_classifier_forward.5} parent=0 // pred_region
    _
  $region9: #{number_classifier_forward.5} parent=0 // pred_fallthru
    _
  // Predicated region
  $region10: #{number_classifier_forward.5} parent=0 // pred_check
    _
  $region11: #{number_classifier_forward.5} parent=0 // pred_check_branch
    %15 = sbr.rel (0) target = $region13
  $region12: #{number_classifier_forward.5} parent=0 // pred_region
    _
  $region13: #{number_classifier_forward.5} parent=0 // pred_fallthru
    _
  // Predicated region
  $region14: #{number_classifier_forward.5} parent=0 // pred_check
    _
  $region15: #{number_classifier_forward.5} parent=0 // pred_check_branch
    %17 = sbr.rel (0) target = $region17
  $region16: #{number_classifier_forward.5} parent=0 // pred_region
    _
  $region17: #{number_classifier_forward.5} parent=0 // pred_fallthru
    _
  // Predicated region
  $region18: #{number_classifier_forward.5} parent=0 // pred_check
    _
  $region19: #{number_classifier_forward.5} parent=0 // pred_check_branch
    %19 = sbr.rel (0) target = $region21
  $region20: #{number_classifier_forward.5} parent=0 // pred_region
    _
  $region21: #{number_classifier_forward.5} parent=0 // pred_fallthru
    _
  %v21 = vld [vmem:[%s0] sm:$0xff]
  %v22 = vld [vmem:[%s0 + $0x8] sm:$0xff]
  %v23 = vld [vmem:[%s0 + $0x10] sm:$0xff]
  %v24 = vld [vmem:[%s0 + $0x18] sm:$0xff]
  %v25 = vld [vmem:[%s0 + $0x20] sm:$0xff]
  %v26 = vld [vmem:[%s0 + $0x28] sm:$0xff]
  %v27 = vld [vmem:[%s0 + $0x30] sm:$0xff]
  %v28 = vld [vmem:[%s0 + $0x38] sm:$0xff]
  %v29 = vld [vmem:[%s0 + $0x40] sm:$0xff]
  %v30 = vld [vmem:[%s0 + $0x48] sm:$0xff]
  %v31 = vld [vmem:[%s0 + $0x50] sm:$0xff]
  %v32 = vld [vmem:[%s0 + $0x58] sm:$0xff]
  %v33 = vld [vmem:[%s0 + $0x60] sm:$0xf]
  %v34 = vld [vmem:[%s1] sm:$0xf]
  %v35 = vld [vmem:[%s1 + $0x4] sm:$0xf]
  %v36 = vld [vmem:[%s1 + $0x8] sm:$0xf]
  %v37 = vld [vmem:[%s1 + $0xc] sm:$0xf]
  %v38 = vld [vmem:[%s1 + $0x10] sm:$0xf]
  %v39 = vld [vmem:[%s1 + $0x14] sm:$0xf]
  %v40 = vld [vmem:[%s1 + $0x18] sm:$0xf]
  %v41 = vld [vmem:[%s1 + $0x1c] sm:$0xf]
  %v42 = vld [vmem:[%s1 + $0x20] sm:$0xf]
  %v43 = vld [vmem:[%s1 + $0x24] sm:$0xf]
  %v44 = vld [vmem:[%s1 + $0x28] sm:$0xf]
  %v45 = vld [vmem:[%s1 + $0x2c] sm:$0xf]
  %v46 = vld [vmem:[%s1 + $0x30] sm:$0xf]
  %v47 = vld [vmem:[%s1 + $0x34] sm:$0xf]
  %v48 = vld [vmem:[%s1 + $0x38] sm:$0xf]
  %v49 = vld [vmem:[%s1 + $0x3c] sm:$0xf]
  %v50 = vld [vmem:[%s1 + $0x40] sm:$0xf]
  %v51 = vld [vmem:[%s1 + $0x44] sm:$0xf]
  %v52 = vld [vmem:[%s1 + $0x48] sm:$0xf]
  %v53 = vld [vmem:[%s1 + $0x4c] sm:$0xf]
  %v54 = vld [vmem:[%s1 + $0x50] sm:$0xf]
  %v55 = vld [vmem:[%s1 + $0x54] sm:$0xf]
  %v56 = vld [vmem:[%s1 + $0x58] sm:$0xf]
  %v57 = vld [vmem:[%s1 + $0x5c] sm:$0xf]
  %v58 = vld [vmem:[%s1 + $0x60] sm:$0xf]
  %v59 = vld [vmem:[%s1 + $0x64] sm:$0xf]
  %v60 = vld [vmem:[%s1 + $0x68] sm:$0xf]
  %v61 = vld [vmem:[%s1 + $0x6c] sm:$0xf]
  %v62 = vld [vmem:[%s1 + $0x70] sm:$0xf]
  %v63 = vld [vmem:[%s1 + $0x74] sm:$0xf]
  %v64 = vld [vmem:[%s1 + $0x78] sm:$0xf]
  %v65 = vld [vmem:[%s1 + $0x7c] sm:$0xf]
  %v66 = vld [vmem:[%s1 + $0x80] sm:$0xf]
  %v67 = vld [vmem:[%s1 + $0x84] sm:$0xf]
  %v68 = vld [vmem:[%s1 + $0x88] sm:$0xf]
  %v69 = vld [vmem:[%s1 + $0x8c] sm:$0xf]
  %v70 = vld [vmem:[%s1 + $0x90] sm:$0xf]
  %v71 = vld [vmem:[%s1 + $0x94] sm:$0xf]
  %v72 = vld [vmem:[%s1 + $0x98] sm:$0xf]
  %v73 = vld [vmem:[%s1 + $0x9c] sm:$0xf]
  %v74 = vld [vmem:[%s1 + $0xa0] sm:$0xf]
  %v75 = vld [vmem:[%s1 + $0xa4] sm:$0xf]
  %v76 = vld [vmem:[%s1 + $0xa8] sm:$0xf]
  %v77 = vld [vmem:[%s1 + $0xac] sm:$0xf]
  %v78 = vld [vmem:[%s1 + $0xb0] sm:$0xf]
  %v79 = vld [vmem:[%s1 + $0xb4] sm:$0xf]
  %v80 = vld [vmem:[%s1 + $0xb8] sm:$0xf]
  %v81 = vld [vmem:[%s1 + $0xbc] sm:$0xf]
  %v82 = vld [vmem:[%s1 + $0xc0] sm:$0xf]
  %v83 = vld [vmem:[%s1 + $0xc4] sm:$0xf]
  %v84 = vld [vmem:[%s1 + $0xc8] sm:$0xf]
  %v85 = vld [vmem:[%s1 + $0xcc] sm:$0xf]
  %v86 = vld [vmem:[%s1 + $0xd0] sm:$0xf]
  %v87 = vld [vmem:[%s1 + $0xd4] sm:$0xf]
  %v88 = vld [vmem:[%s1 + $0xd8] sm:$0xf]
  %v89 = vld [vmem:[%s1 + $0xdc] sm:$0xf]
  %v90 = vld [vmem:[%s1 + $0xe0] sm:$0xf]
  %v91 = vld [vmem:[%s1 + $0xe4] sm:$0xf]
  %v92 = vld [vmem:[%s1 + $0xe8] sm:$0xf]
  %v93 = vld [vmem:[%s1 + $0xec] sm:$0xf]
  %v94 = vld [vmem:[%s1 + $0xf0] sm:$0xf]
  %v95 = vld [vmem:[%s1 + $0xf4] sm:$0xf]
  %v96 = vld [vmem:[%s1 + $0xf8] sm:$0xf]
  %v97 = vld [vmem:[%s1 + $0xfc] sm:$0xf]
  %v98 = vld [vmem:[%s1 + $0x100] sm:$0xf]
  %v99 = vld [vmem:[%s1 + $0x104] sm:$0xf]
  %v100 = vld [vmem:[%s1 + $0x108] sm:$0xf]
  %v101 = vld [vmem:[%s1 + $0x10c] sm:$0xf]
  %v102 = vld [vmem:[%s1 + $0x110] sm:$0xf]
  %v103 = vld [vmem:[%s1 + $0x114] sm:$0xf]
  %v104 = vld [vmem:[%s1 + $0x118] sm:$0xf]
  %v105 = vld [vmem:[%s1 + $0x11c] sm:$0xf]
  %v106 = vld [vmem:[%s1 + $0x120] sm:$0xf]
  %v107 = vld [vmem:[%s1 + $0x124] sm:$0xf]
  %v108 = vld [vmem:[%s1 + $0x128] sm:$0xf]
  %v109 = vld [vmem:[%s1 + $0x12c] sm:$0xf]
  %v110 = vld [vmem:[%s1 + $0x130] sm:$0xf]
  %v111 = vld [vmem:[%s1 + $0x134] sm:$0xf]
  %v112 = vld [vmem:[%s1 + $0x138] sm:$0xf]
  %v113 = vld [vmem:[%s1 + $0x13c] sm:$0xf]
  %v114 = vld [vmem:[%s1 + $0x140] sm:$0xf]
  %v115 = vld [vmem:[%s1 + $0x144] sm:$0xf]
  %v116 = vld [vmem:[%s1 + $0x148] sm:$0xf]
  %v117 = vld [vmem:[%s1 + $0x14c] sm:$0xf]
  %v118 = vld [vmem:[%s1 + $0x150] sm:$0xf]
  %v119 = vld [vmem:[%s1 + $0x154] sm:$0xf]
  %v120 = vld [vmem:[%s1 + $0x158] sm:$0xf]
  %v121 = vld [vmem:[%s1 + $0x15c] sm:$0xf]
  %v122 = vld [vmem:[%s1 + $0x160] sm:$0xf]
  %v123 = vld [vmem:[%s1 + $0x164] sm:$0xf]
  %v124 = vld [vmem:[%s1 + $0x168] sm:$0xf]
  %v125 = vld [vmem:[%s1 + $0x16c] sm:$0xf]
  %v126 = vld [vmem:[%s1 + $0x170] sm:$0xf]
  %v127 = vld [vmem:[%s1 + $0x174] sm:$0xf]
  %v128 = vld [vmem:[%s1 + $0x178] sm:$0xf]
  %v129 = vld [vmem:[%s1 + $0x17c] sm:$0xf]
  %v130 = vld [vmem:[%s1 + $0x180] sm:$0xf]
  %v131 = vld [vmem:[%s1 + $0x184] sm:$0xf]
  %v132 = vld [vmem:[%s1 + $0x188] sm:$0xf]
  %v133 = vld [vmem:[%s1 + $0x18c] sm:$0xf]
  %v134 = vld [vmem:[%s1 + $0x190] sm:$0xf]
  %v135 = vld [vmem:[%s1 + $0x194] sm:$0xf]
  %v136 = vld [vmem:[%s1 + $0x198] sm:$0xf]
  %v137 = vld [vmem:[%s1 + $0x19c] sm:$0xf]
  %v138 = vld [vmem:[%s1 + $0x1a0] sm:$0xf]
  %v139 = vld [vmem:[%s1 + $0x1a4] sm:$0xf]
  %v140 = vld [vmem:[%s1 + $0x1a8] sm:$0xf]
  %v141 = vld [vmem:[%s1 + $0x1ac] sm:$0xf]
  %v142 = vld [vmem:[%s1 + $0x1b0] sm:$0xf]
  %v143 = vld [vmem:[%s1 + $0x1b4] sm:$0xf]
  %v144 = vld [vmem:[%s1 + $0x1b8] sm:$0xf]
  %v145 = vld [vmem:[%s1 + $0x1bc] sm:$0xf]
  %v146 = vld [vmem:[%s1 + $0x1c0] sm:$0xf]
  %v147 = vld [vmem:[%s1 + $0x1c4] sm:$0xf]
  %v148 = vld [vmem:[%s1 + $0x1c8] sm:$0xf]
  %v149 = vld [vmem:[%s1 + $0x1cc] sm:$0xf]
  %v150 = vld [vmem:[%s1 + $0x1d0] sm:$0xf]
  %v151 = vld [vmem:[%s1 + $0x1d4] sm:$0xf]
  %v152 = vld [vmem:[%s1 + $0x1d8] sm:$0xf]
  %v153 = vld [vmem:[%s1 + $0x1dc] sm:$0xf]
  %v154 = vld [vmem:[%s1 + $0x1e0] sm:$0xf]
  %v155 = vld [vmem:[%s1 + $0x1e4] sm:$0xf]
  %v156 = vld [vmem:[%s1 + $0x1e8] sm:$0xf]
  %v157 = vld [vmem:[%s1 + $0x1ec] sm:$0xf]
  %v158 = vld [vmem:[%s1 + $0x1f0] sm:$0xf]
  %v159 = vld [vmem:[%s1 + $0x1f4] sm:$0xf]
  %v160 = vld [vmem:[%s1 + $0x1f8] sm:$0xf]
  %v161 = vld [vmem:[%s1 + $0x1fc] sm:$0xf]
  %v162 = vld [vmem:[%s1 + $0x200] sm:$0xf]
  %v163 = vld [vmem:[%s1 + $0x204] sm:$0xf]
  %v164 = vld [vmem:[%s1 + $0x208] sm:$0xf]
  %v165 = vld [vmem:[%s1 + $0x20c] sm:$0xf]
  %v166 = vld [vmem:[%s1 + $0x210] sm:$0xf]
  %v167 = vld [vmem:[%s1 + $0x214] sm:$0xf]
  %v168 = vld [vmem:[%s1 + $0x218] sm:$0xf]
  %v169 = vld [vmem:[%s1 + $0x21c] sm:$0xf]
  %v170 = vld [vmem:[%s1 + $0x220] sm:$0xf]
  %v171 = vld [vmem:[%s1 + $0x224] sm:$0xf]
  %v172 = vld [vmem:[%s1 + $0x228] sm:$0xf]
  %v173 = vld [vmem:[%s1 + $0x22c] sm:$0xf]
  %v174 = vld [vmem:[%s1 + $0x230] sm:$0xf]
  %v175 = vld [vmem:[%s1 + $0x234] sm:$0xf]
  %v176 = vld [vmem:[%s1 + $0x238] sm:$0xf]
  %v177 = vld [vmem:[%s1 + $0x23c] sm:$0xf]
  %v178 = vld [vmem:[%s1 + $0x240] sm:$0xf]
  %v179 = vld [vmem:[%s1 + $0x244] sm:$0xf]
  %v180 = vld [vmem:[%s1 + $0x248] sm:$0xf]
  %v181 = vld [vmem:[%s1 + $0x24c] sm:$0xf]
  %v182 = vld [vmem:[%s1 + $0x250] sm:$0xf]
  %v183 = vld [vmem:[%s1 + $0x254] sm:$0xf]
  %v184 = vld [vmem:[%s1 + $0x258] sm:$0xf]
  %v185 = vld [vmem:[%s1 + $0x25c] sm:$0xf]
  %v186 = vld [vmem:[%s1 + $0x260] sm:$0xf]
  %v187 = vld [vmem:[%s1 + $0x264] sm:$0xf]
  %v188 = vld [vmem:[%s1 + $0x268] sm:$0xf]
  %v189 = vld [vmem:[%s1 + $0x26c] sm:$0xf]
  %v190 = vld [vmem:[%s1 + $0x270] sm:$0xf]
  %v191 = vld [vmem:[%s1 + $0x274] sm:$0xf]
  %v192 = vld [vmem:[%s1 + $0x278] sm:$0xf]
  %v193 = vld [vmem:[%s1 + $0x27c] sm:$0xf]
  %v194 = vld [vmem:[%s1 + $0x280] sm:$0xf]
  %v195 = vld [vmem:[%s1 + $0x284] sm:$0xf]
  %v196 = vld [vmem:[%s1 + $0x288] sm:$0xf]
  %v197 = vld [vmem:[%s1 + $0x28c] sm:$0xf]
  %v198 = vld [vmem:[%s1 + $0x290] sm:$0xf]
  %v199 = vld [vmem:[%s1 + $0x294] sm:$0xf]
  %v200 = vld [vmem:[%s1 + $0x298] sm:$0xf]
  %v201 = vld [vmem:[%s1 + $0x29c] sm:$0xf]
  %v202 = vld [vmem:[%s1 + $0x2a0] sm:$0xf]
  %v203 = vld [vmem:[%s1 + $0x2a4] sm:$0xf]
  %v204 = vld [vmem:[%s1 + $0x2a8] sm:$0xf]
  %v205 = vld [vmem:[%s1 + $0x2ac] sm:$0xf]
  %v206 = vld [vmem:[%s1 + $0x2b0] sm:$0xf]
  %v207 = vld [vmem:[%s1 + $0x2b4] sm:$0xf]
  %v208 = vld [vmem:[%s1 + $0x2b8] sm:$0xf]
  %v209 = vld [vmem:[%s1 + $0x2bc] sm:$0xf]
  %v210 = vld [vmem:[%s1 + $0x2c0] sm:$0xf]
  %v211 = vld [vmem:[%s1 + $0x2c4] sm:$0xf]
  %v212 = vld [vmem:[%s1 + $0x2c8] sm:$0xf]
  %v213 = vld [vmem:[%s1 + $0x2cc] sm:$0xf]
  %v214 = vld [vmem:[%s1 + $0x2d0] sm:$0xf]
  %v215 = vld [vmem:[%s1 + $0x2d4] sm:$0xf]
  %v216 = vld [vmem:[%s1 + $0x2d8] sm:$0xf]
  %v217 = vld [vmem:[%s1 + $0x2dc] sm:$0xf]
  %v218 = vld [vmem:[%s1 + $0x2e0] sm:$0xf]
  %v219 = vld [vmem:[%s1 + $0x2e4] sm:$0xf]
  %v220 = vld [vmem:[%s1 + $0x2e8] sm:$0xf]
  %v221 = vld [vmem:[%s1 + $0x2ec] sm:$0xf]
  %v222 = vld [vmem:[%s1 + $0x2f0] sm:$0xf]
  %v223 = vld [vmem:[%s1 + $0x2f4] sm:$0xf]
  %v224 = vld [vmem:[%s1 + $0x2f8] sm:$0xf]
  %v225 = vld [vmem:[%s1 + $0x2fc] sm:$0xf]
  %v226 = vld [vmem:[%s1 + $0x300] sm:$0xf]
  %v227 = vld [vmem:[%s1 + $0x304] sm:$0xf]
  %v228 = vld [vmem:[%s1 + $0x308] sm:$0xf]
  %v229 = vld [vmem:[%s1 + $0x30c] sm:$0xf]
  %v230 = vld [vmem:[%s1 + $0x310] sm:$0xf]
  %v231 = vld [vmem:[%s1 + $0x314] sm:$0xf]
  %v232 = vld [vmem:[%s1 + $0x318] sm:$0xf]
  %v233 = vld [vmem:[%s1 + $0x31c] sm:$0xf]
  %v234 = vld [vmem:[%s1 + $0x320] sm:$0xf]
  %v235 = vld [vmem:[%s1 + $0x324] sm:$0xf]
  %v236 = vld [vmem:[%s1 + $0x328] sm:$0xf]
  %v237 = vld [vmem:[%s1 + $0x32c] sm:$0xf]
  %v238 = vld [vmem:[%s1 + $0x330] sm:$0xf]
  %v239 = vld [vmem:[%s1 + $0x334] sm:$0xf]
  %v240 = vld [vmem:[%s1 + $0x338] sm:$0xf]
  %v241 = vld [vmem:[%s1 + $0x33c] sm:$0xf]
  %v242 = vld [vmem:[%s1 + $0x340] sm:$0xf]
  %v243 = vld [vmem:[%s1 + $0x344] sm:$0xf]
  %v244 = vld [vmem:[%s1 + $0x348] sm:$0xf]
  %v245 = vld [vmem:[%s1 + $0x34c] sm:$0xf]
  %v246 = vld [vmem:[%s1 + $0x350] sm:$0xf]
  %v247 = vld [vmem:[%s1 + $0x354] sm:$0xf]
  %v248 = vld [vmem:[%s1 + $0x358] sm:$0xf]
  %v249 = vld [vmem:[%s1 + $0x35c] sm:$0xf]
  %v250 = vld [vmem:[%s1 + $0x360] sm:$0xf]
  %v251 = vld [vmem:[%s1 + $0x364] sm:$0xf]
  %v252 = vld [vmem:[%s1 + $0x368] sm:$0xf]
  %v253 = vld [vmem:[%s1 + $0x36c] sm:$0xf]
  %v254 = vld [vmem:[%s1 + $0x370] sm:$0xf]
  %v255 = vld [vmem:[%s1 + $0x374] sm:$0xf]
  %v256 = vld [vmem:[%s1 + $0x378] sm:$0xf]
  %v257 = vld [vmem:[%s1 + $0x37c] sm:$0xf]
  %v258 = vld [vmem:[%s1 + $0x380] sm:$0xf]
  %v259 = vld [vmem:[%s1 + $0x384] sm:$0xf]
  %v260 = vld [vmem:[%s1 + $0x388] sm:$0xf]
  %v261 = vld [vmem:[%s1 + $0x38c] sm:$0xf]
  %v262 = vld [vmem:[%s1 + $0x390] sm:$0xf]
  %v263 = vld [vmem:[%s1 + $0x394] sm:$0xf]
  %v264 = vld [vmem:[%s1 + $0x398] sm:$0xf]
  %v265 = vld [vmem:[%s1 + $0x39c] sm:$0xf]
  %v266 = vld [vmem:[%s1 + $0x3a0] sm:$0xf]
  %v267 = vld [vmem:[%s1 + $0x3a4] sm:$0xf]
  %v268 = vld [vmem:[%s1 + $0x3a8] sm:$0xf]
  %v269 = vld [vmem:[%s1 + $0x3ac] sm:$0xf]
  %v270 = vld [vmem:[%s1 + $0x3b0] sm:$0xf]
  %v271 = vld [vmem:[%s1 + $0x3b4] sm:$0xf]
  %v272 = vld [vmem:[%s1 + $0x3b8] sm:$0xf]
  %v273 = vld [vmem:[%s1 + $0x3bc] sm:$0xf]
  %v274 = vld [vmem:[%s1 + $0x3c0] sm:$0xf]
  %v275 = vld [vmem:[%s1 + $0x3c4] sm:$0xf]
  %v276 = vld [vmem:[%s1 + $0x3c8] sm:$0xf]
  %v277 = vld [vmem:[%s1 + $0x3cc] sm:$0xf]
  %v278 = vld [vmem:[%s1 + $0x3d0] sm:$0xf]
  %v279 = vld [vmem:[%s1 + $0x3d4] sm:$0xf]
  %v280 = vld [vmem:[%s1 + $0x3d8] sm:$0xf]
  %v281 = vld [vmem:[%s1 + $0x3dc] sm:$0xf]
  %v282 = vld [vmem:[%s1 + $0x3e0] sm:$0xf]
  %v283 = vld [vmem:[%s1 + $0x3e4] sm:$0xf]
  %v284 = vld [vmem:[%s1 + $0x3e8] sm:$0xf]
  %v285 = vld [vmem:[%s1 + $0x3ec] sm:$0xf]
  %v286 = vld [vmem:[%s1 + $0x3f0] sm:$0xf]
  %v287 = vld [vmem:[%s1 + $0x3f4] sm:$0xf]
  %v288 = vld [vmem:[%s1 + $0x3f8] sm:$0xf]
  %v289 = vld [vmem:[%s1 + $0x3fc] sm:$0xf]
  %v290 = vld [vmem:[%s1 + $0x400] sm:$0xf]
  %v291 = vld [vmem:[%s1 + $0x404] sm:$0xf]
  %v292 = vld [vmem:[%s1 + $0x408] sm:$0xf]
  %v293 = vld [vmem:[%s1 + $0x40c] sm:$0xf]
  %v294 = vld [vmem:[%s1 + $0x410] sm:$0xf]
  %v295 = vld [vmem:[%s1 + $0x414] sm:$0xf]
  %v296 = vld [vmem:[%s1 + $0x418] sm:$0xf]
  %v297 = vld [vmem:[%s1 + $0x41c] sm:$0xf]
  %v298 = vld [vmem:[%s1 + $0x420] sm:$0xf]
  %v299 = vld [vmem:[%s1 + $0x424] sm:$0xf]
  %v300 = vld [vmem:[%s1 + $0x428] sm:$0xf]
  %v301 = vld [vmem:[%s1 + $0x42c] sm:$0xf]
  %v302 = vld [vmem:[%s1 + $0x430] sm:$0xf]
  %v303 = vld [vmem:[%s1 + $0x434] sm:$0xf]
  %v304 = vld [vmem:[%s1 + $0x438] sm:$0xf]
  %v305 = vld [vmem:[%s1 + $0x43c] sm:$0xf]
  %v306 = vld [vmem:[%s1 + $0x440] sm:$0xf]
  %v307 = vld [vmem:[%s1 + $0x444] sm:$0xf]
  %v308 = vld [vmem:[%s1 + $0x448] sm:$0xf]
  %v309 = vld [vmem:[%s1 + $0x44c] sm:$0xf]
  %v310 = vld [vmem:[%s1 + $0x450] sm:$0xf]
  %v311 = vld [vmem:[%s1 + $0x454] sm:$0xf]
  %v312 = vld [vmem:[%s1 + $0x458] sm:$0xf]
  %v313 = vld [vmem:[%s1 + $0x45c] sm:$0xf]
  %v314 = vld [vmem:[%s1 + $0x460] sm:$0xf]
  %v315 = vld [vmem:[%s1 + $0x464] sm:$0xf]
  %v316 = vld [vmem:[%s1 + $0x468] sm:$0xf]
  %v317 = vld [vmem:[%s1 + $0x46c] sm:$0xf]
  %v318 = vld [vmem:[%s1 + $0x470] sm:$0xf]
  %v319 = vld [vmem:[%s1 + $0x474] sm:$0xf]
  %v320 = vld [vmem:[%s1 + $0x478] sm:$0xf]
  %v321 = vld [vmem:[%s1 + $0x47c] sm:$0xf]
  %v322 = vld [vmem:[%s1 + $0x480] sm:$0xf]
  %v323 = vld [vmem:[%s1 + $0x484] sm:$0xf]
  %v324 = vld [vmem:[%s1 + $0x488] sm:$0xf]
  %v325 = vld [vmem:[%s1 + $0x48c] sm:$0xf]
  %v326 = vld [vmem:[%s1 + $0x490] sm:$0xf]
  %v327 = vld [vmem:[%s1 + $0x494] sm:$0xf]
  %v328 = vld [vmem:[%s1 + $0x498] sm:$0xf]
  %v329 = vld [vmem:[%s1 + $0x49c] sm:$0xf]
  %v330 = vld [vmem:[%s1 + $0x4a0] sm:$0xf]
  %v331 = vld [vmem:[%s1 + $0x4a4] sm:$0xf]
  %v332 = vld [vmem:[%s1 + $0x4a8] sm:$0xf]
  %v333 = vld [vmem:[%s1 + $0x4ac] sm:$0xf]
  %v334 = vld [vmem:[%s1 + $0x4b0] sm:$0xf]
  %v335 = vld [vmem:[%s1 + $0x4b4] sm:$0xf]
  %v336 = vld [vmem:[%s1 + $0x4b8] sm:$0xf]
  %v337 = vld [vmem:[%s1 + $0x4bc] sm:$0xf]
  %v338 = vld [vmem:[%s1 + $0x4c0] sm:$0xf]
  %v339 = vld [vmem:[%s1 + $0x4c4] sm:$0xf]
  %v340 = vld [vmem:[%s1 + $0x4c8] sm:$0xf]
  %v341 = vld [vmem:[%s1 + $0x4cc] sm:$0xf]
  %v342 = vld [vmem:[%s1 + $0x4d0] sm:$0xf]
  %v343 = vld [vmem:[%s1 + $0x4d4] sm:$0xf]
  %v344 = vld [vmem:[%s1 + $0x4d8] sm:$0xf]
  %v345 = vld [vmem:[%s1 + $0x4dc] sm:$0xf]
  %v346 = vld [vmem:[%s1 + $0x4e0] sm:$0xf]
  %v347 = vld [vmem:[%s1 + $0x4e4] sm:$0xf]
  %v348 = vld [vmem:[%s1 + $0x4e8] sm:$0xf]
  %v349 = vld [vmem:[%s1 + $0x4ec] sm:$0xf]
  %v350 = vld [vmem:[%s1 + $0x4f0] sm:$0xf]
  %v351 = vld [vmem:[%s1 + $0x4f4] sm:$0xf]
  %v352 = vld [vmem:[%s1 + $0x4f8] sm:$0xf]
  %v353 = vld [vmem:[%s1 + $0x4fc] sm:$0xf]
  %v354 = vld [vmem:[%s1 + $0x500] sm:$0xf]
  %v355 = vld [vmem:[%s1 + $0x504] sm:$0xf]
  %v356 = vld [vmem:[%s1 + $0x508] sm:$0xf]
  %v357 = vld [vmem:[%s1 + $0x50c] sm:$0xf]
  %v358 = vld [vmem:[%s1 + $0x510] sm:$0xf]
  %v359 = vld [vmem:[%s1 + $0x514] sm:$0xf]
  %v360 = vld [vmem:[%s1 + $0x518] sm:$0xf]
  %v361 = vld [vmem:[%s1 + $0x51c] sm:$0xf]
  %v362 = vld [vmem:[%s1 + $0x520] sm:$0xf]
  %v363 = vld [vmem:[%s1 + $0x524] sm:$0xf]
  %v364 = vld [vmem:[%s1 + $0x528] sm:$0xf]
  %v365 = vld [vmem:[%s1 + $0x52c] sm:$0xf]
  %v366 = vld [vmem:[%s1 + $0x530] sm:$0xf]
  %v367 = vld [vmem:[%s1 + $0x534] sm:$0xf]
  %v368 = vld [vmem:[%s1 + $0x538] sm:$0xf]
  %v369 = vld [vmem:[%s1 + $0x53c] sm:$0xf]
  %v370 = vld [vmem:[%s1 + $0x540] sm:$0xf]
  %v371 = vld [vmem:[%s1 + $0x544] sm:$0xf]
  %v372 = vld [vmem:[%s1 + $0x548] sm:$0xf]
  %v373 = vld [vmem:[%s1 + $0x54c] sm:$0xf]
  %v374 = vld [vmem:[%s1 + $0x550] sm:$0xf]
  %v375 = vld [vmem:[%s1 + $0x554] sm:$0xf]
  %v376 = vld [vmem:[%s1 + $0x558] sm:$0xf]
  %v377 = vld [vmem:[%s1 + $0x55c] sm:$0xf]
  %v378 = vld [vmem:[%s1 + $0x560] sm:$0xf]
  %v379 = vld [vmem:[%s1 + $0x564] sm:$0xf]
  %v380 = vld [vmem:[%s1 + $0x568] sm:$0xf]
  %v381 = vld [vmem:[%s1 + $0x56c] sm:$0xf]
  %v382 = vld [vmem:[%s1 + $0x570] sm:$0xf]
  %v383 = vld [vmem:[%s1 + $0x574] sm:$0xf]
  %v384 = vld [vmem:[%s1 + $0x578] sm:$0xf]
  %v385 = vld [vmem:[%s1 + $0x57c] sm:$0xf]
  %v386 = vld [vmem:[%s1 + $0x580] sm:$0xf]
  %v387 = vld [vmem:[%s1 + $0x584] sm:$0xf]
  %v388 = vld [vmem:[%s1 + $0x588] sm:$0xf]
  %v389 = vld [vmem:[%s1 + $0x58c] sm:$0xf]
  %v390 = vld [vmem:[%s1 + $0x590] sm:$0xf]
  %v391 = vld [vmem:[%s1 + $0x594] sm:$0xf]
  %v392 = vld [vmem:[%s1 + $0x598] sm:$0xf]
  %v393 = vld [vmem:[%s1 + $0x59c] sm:$0xf]
  %v394 = vld [vmem:[%s1 + $0x5a0] sm:$0xf]
  %v395 = vld [vmem:[%s1 + $0x5a4] sm:$0xf]
  %v396 = vld [vmem:[%s1 + $0x5a8] sm:$0xf]
  %v397 = vld [vmem:[%s1 + $0x5ac] sm:$0xf]
  %v398 = vld [vmem:[%s1 + $0x5b0] sm:$0xf]
  %v399 = vld [vmem:[%s1 + $0x5b4] sm:$0xf]
  %v400 = vld [vmem:[%s1 + $0x5b8] sm:$0xf]
  %v401 = vld [vmem:[%s1 + $0x5bc] sm:$0xf]
  %v402 = vld [vmem:[%s1 + $0x5c0] sm:$0xf]
  %v403 = vld [vmem:[%s1 + $0x5c4] sm:$0xf]
  %v404 = vld [vmem:[%s1 + $0x5c8] sm:$0xf]
  %v405 = vld [vmem:[%s1 + $0x5cc] sm:$0xf]
  %v406 = vld [vmem:[%s1 + $0x5d0] sm:$0xf]
  %v407 = vld [vmem:[%s1 + $0x5d4] sm:$0xf]
  %v408 = vld [vmem:[%s1 + $0x5d8] sm:$0xf]
  %v409 = vld [vmem:[%s1 + $0x5dc] sm:$0xf]
  %v410 = vld [vmem:[%s1 + $0x5e0] sm:$0xf]
  %v411 = vld [vmem:[%s1 + $0x5e4] sm:$0xf]
  %v412 = vld [vmem:[%s1 + $0x5e8] sm:$0xf]
  %v413 = vld [vmem:[%s1 + $0x5ec] sm:$0xf]
  %v414 = vld [vmem:[%s1 + $0x5f0] sm:$0xf]
  %v415 = vld [vmem:[%s1 + $0x5f4] sm:$0xf]
  %v416 = vld [vmem:[%s1 + $0x5f8] sm:$0xf]
  %v417 = vld [vmem:[%s1 + $0x5fc] sm:$0xf]
  %v418 = vld [vmem:[%s1 + $0x600] sm:$0xf]
  %v419 = vld [vmem:[%s1 + $0x604] sm:$0xf]
  %v420 = vld [vmem:[%s1 + $0x608] sm:$0xf]
  %v421 = vld [vmem:[%s1 + $0x60c] sm:$0xf]
  %v422 = vld [vmem:[%s1 + $0x610] sm:$0xf]
  %v423 = vld [vmem:[%s1 + $0x614] sm:$0xf]
  %v424 = vld [vmem:[%s1 + $0x618] sm:$0xf]
  %v425 = vld [vmem:[%s1 + $0x61c] sm:$0xf]
  %v426 = vld [vmem:[%s2] sm:$0x1]
  %v428 = vperm.slane %v426, 0
  %v443 = vunpack.c.l.b16 %v21
  %v444 = vunpack.c.h.b16 %v21
  %v445 = vunpack.c.l.b16 %v22
  %v446 = vunpack.c.h.b16 %v22
  %v447 = vunpack.c.l.b16 %v23
  %v448 = vunpack.c.h.b16 %v23
  %v449 = vunpack.c.l.b16 %v24
  %v450 = vunpack.c.h.b16 %v24
  %v451 = vunpack.c.l.b16 %v25
  %v452 = vunpack.c.h.b16 %v25
  %v453 = vunpack.c.l.b16 %v26
  %v454 = vunpack.c.h.b16 %v26
  %v455 = vunpack.c.l.b16 %v27
  %v456 = vunpack.c.h.b16 %v27
  %v457 = vunpack.c.l.b16 %v28
  %v458 = vunpack.c.h.b16 %v28
  %v459 = vunpack.c.l.b16 %v29
  %v460 = vunpack.c.h.b16 %v29
  %v461 = vunpack.c.l.b16 %v30
  %v462 = vunpack.c.h.b16 %v30
  %v463 = vunpack.c.l.b16 %v31
  %v464 = vunpack.c.h.b16 %v31
  %v465 = vunpack.c.l.b16 %v32
  %v466 = vunpack.c.h.b16 %v32
  %v467 = vunpack.c.l.b16 %v33
  %v468 = vpack.c.b16 %v443, %v443
  %v469 = vpack.c.b16 %v444, %v444
  %v470 = vpack.c.b16 %v445, %v445
  %v471 = vpack.c.b16 %v446, %v446
  %v472 = vpack.c.b16 %v447, %v447
  %v473 = vpack.c.b16 %v448, %v448
  %v474 = vpack.c.b16 %v449, %v449
  %v475 = vpack.c.b16 %v450, %v450
  %v476 = vpack.c.b16 %v451, %v451
  %v477 = vpack.c.b16 %v452, %v452
  %v478 = vpack.c.b16 %v453, %v453
  %v479 = vpack.c.b16 %v454, %v454
  %v480 = vpack.c.b16 %v455, %v455
  %v481 = vpack.c.b16 %v456, %v456
  %v482 = vpack.c.b16 %v457, %v457
  %v483 = vpack.c.b16 %v458, %v458
  %v484 = vpack.c.b16 %v459, %v459
  %v485 = vpack.c.b16 %v460, %v460
  %v486 = vpack.c.b16 %v461, %v461
  %v487 = vpack.c.b16 %v462, %v462
  %v488 = vpack.c.b16 %v463, %v463
  %v489 = vpack.c.b16 %v464, %v464
  %v490 = vpack.c.b16 %v465, %v465
  %v491 = vpack.c.b16 %v466, %v466
  %v492 = vpack.c.b16 %v467, %v467
  %v909 = vunpack.c.l.b16 %v34
  %v910 = vunpack.c.l.b16 %v35
  %v911 = vunpack.c.l.b16 %v36
  %v912 = vunpack.c.l.b16 %v37
  %v913 = vunpack.c.l.b16 %v38
  %v914 = vunpack.c.l.b16 %v39
  %v915 = vunpack.c.l.b16 %v40
  %v916 = vunpack.c.l.b16 %v41
  %v917 = vunpack.c.l.b16 %v42
  %v918 = vunpack.c.l.b16 %v43
  %v919 = vunpack.c.l.b16 %v44
  %v920 = vunpack.c.l.b16 %v45
  %v921 = vunpack.c.l.b16 %v46
  %v922 = vunpack.c.l.b16 %v47
  %v923 = vunpack.c.l.b16 %v48
  %v924 = vunpack.c.l.b16 %v49
  %v925 = vunpack.c.l.b16 %v50
  %v926 = vunpack.c.l.b16 %v51
  %v927 = vunpack.c.l.b16 %v52
  %v928 = vunpack.c.l.b16 %v53
  %v929 = vunpack.c.l.b16 %v54
  %v930 = vunpack.c.l.b16 %v55
  %v931 = vunpack.c.l.b16 %v56
  %v932 = vunpack.c.l.b16 %v57
  %v933 = vunpack.c.l.b16 %v58
  %v934 = vunpack.c.l.b16 %v59
  %v935 = vunpack.c.l.b16 %v60
  %v936 = vunpack.c.l.b16 %v61
  %v937 = vunpack.c.l.b16 %v62
  %v938 = vunpack.c.l.b16 %v63
  %v939 = vunpack.c.l.b16 %v64
  %v940 = vunpack.c.l.b16 %v65
  %v941 = vunpack.c.l.b16 %v66
  %v942 = vunpack.c.l.b16 %v67
  %v943 = vunpack.c.l.b16 %v68
  %v944 = vunpack.c.l.b16 %v69
  %v945 = vunpack.c.l.b16 %v70
  %v946 = vunpack.c.l.b16 %v71
  %v947 = vunpack.c.l.b16 %v72
  %v948 = vunpack.c.l.b16 %v73
  %v949 = vunpack.c.l.b16 %v74
  %v950 = vunpack.c.l.b16 %v75
  %v951 = vunpack.c.l.b16 %v76
  %v952 = vunpack.c.l.b16 %v77
  %v953 = vunpack.c.l.b16 %v78
  %v954 = vunpack.c.l.b16 %v79
  %v955 = vunpack.c.l.b16 %v80
  %v956 = vunpack.c.l.b16 %v81
  %v957 = vunpack.c.l.b16 %v82
  %v958 = vunpack.c.l.b16 %v83
  %v959 = vunpack.c.l.b16 %v84
  %v960 = vunpack.c.l.b16 %v85
  %v961 = vunpack.c.l.b16 %v86
  %v962 = vunpack.c.l.b16 %v87
  %v963 = vunpack.c.l.b16 %v88
  %v964 = vunpack.c.l.b16 %v89
  %v965 = vunpack.c.l.b16 %v90
  %v966 = vunpack.c.l.b16 %v91
  %v967 = vunpack.c.l.b16 %v92
  %v968 = vunpack.c.l.b16 %v93
  %v969 = vunpack.c.l.b16 %v94
  %v970 = vunpack.c.l.b16 %v95
  %v971 = vunpack.c.l.b16 %v96
  %v972 = vunpack.c.l.b16 %v97
  %v973 = vunpack.c.l.b16 %v98
  %v974 = vunpack.c.l.b16 %v99
  %v975 = vunpack.c.l.b16 %v100
  %v976 = vunpack.c.l.b16 %v101
  %v977 = vunpack.c.l.b16 %v102
  %v978 = vunpack.c.l.b16 %v103
  %v979 = vunpack.c.l.b16 %v104
  %v980 = vunpack.c.l.b16 %v105
  %v981 = vunpack.c.l.b16 %v106
  %v982 = vunpack.c.l.b16 %v107
  %v983 = vunpack.c.l.b16 %v108
  %v984 = vunpack.c.l.b16 %v109
  %v985 = vunpack.c.l.b16 %v110
  %v986 = vunpack.c.l.b16 %v111
  %v987 = vunpack.c.l.b16 %v112
  %v988 = vunpack.c.l.b16 %v113
  %v989 = vunpack.c.l.b16 %v114
  %v990 = vunpack.c.l.b16 %v115
  %v991 = vunpack.c.l.b16 %v116
  %v992 = vunpack.c.l.b16 %v117
  %v993 = vunpack.c.l.b16 %v118
  %v994 = vunpack.c.l.b16 %v119
  %v995 = vunpack.c.l.b16 %v120
  %v996 = vunpack.c.l.b16 %v121
  %v997 = vunpack.c.l.b16 %v122
  %v998 = vunpack.c.l.b16 %v123
  %v999 = vunpack.c.l.b16 %v124
  %v1000 = vunpack.c.l.b16 %v125
  %v1001 = vunpack.c.l.b16 %v126
  %v1002 = vunpack.c.l.b16 %v127
  %v1003 = vunpack.c.l.b16 %v128
  %v1004 = vunpack.c.l.b16 %v129
  %v1005 = vunpack.c.l.b16 %v130
  %v1006 = vunpack.c.l.b16 %v131
  %v1007 = vunpack.c.l.b16 %v132
  %v1008 = vunpack.c.l.b16 %v133
  %v1009 = vunpack.c.l.b16 %v134
  %v1010 = vunpack.c.l.b16 %v135
  %v1011 = vunpack.c.l.b16 %v136
  %v1012 = vunpack.c.l.b16 %v137
  %v1013 = vunpack.c.l.b16 %v138
  %v1014 = vunpack.c.l.b16 %v139
  %v1015 = vunpack.c.l.b16 %v140
  %v1016 = vunpack.c.l.b16 %v141
  %v1017 = vunpack.c.l.b16 %v142
  %v1018 = vunpack.c.l.b16 %v143
  %v1019 = vunpack.c.l.b16 %v144
  %v1020 = vunpack.c.l.b16 %v145
  %v1021 = vunpack.c.l.b16 %v146
  %v1022 = vunpack.c.l.b16 %v147
  %v1023 = vunpack.c.l.b16 %v148
  %v1024 = vunpack.c.l.b16 %v149
  %v1025 = vunpack.c.l.b16 %v150
  %v1026 = vunpack.c.l.b16 %v151
  %v1027 = vunpack.c.l.b16 %v152
  %v1028 = vunpack.c.l.b16 %v153
  %v1029 = vunpack.c.l.b16 %v154
  %v1030 = vunpack.c.l.b16 %v155
  %v1031 = vunpack.c.l.b16 %v156
  %v1032 = vunpack.c.l.b16 %v157
  %v1033 = vunpack.c.l.b16 %v158
  %v1034 = vunpack.c.l.b16 %v159
  %v1035 = vunpack.c.l.b16 %v160
  %v1036 = vunpack.c.l.b16 %v161
  %v1037 = vunpack.c.l.b16 %v162
  %v1038 = vunpack.c.l.b16 %v163
  %v1039 = vunpack.c.l.b16 %v164
  %v1040 = vunpack.c.l.b16 %v165
  %v1041 = vunpack.c.l.b16 %v166
  %v1042 = vunpack.c.l.b16 %v167
  %v1043 = vunpack.c.l.b16 %v168
  %v1044 = vunpack.c.l.b16 %v169
  %v1045 = vunpack.c.l.b16 %v170
  %v1046 = vunpack.c.l.b16 %v171
  %v1047 = vunpack.c.l.b16 %v172
  %v1048 = vunpack.c.l.b16 %v173
  %v1049 = vunpack.c.l.b16 %v174
  %v1050 = vunpack.c.l.b16 %v175
  %v1051 = vunpack.c.l.b16 %v176
  %v1052 = vunpack.c.l.b16 %v177
  %v1053 = vunpack.c.l.b16 %v178
  %v1054 = vunpack.c.l.b16 %v179
  %v1055 = vunpack.c.l.b16 %v180
  %v1056 = vunpack.c.l.b16 %v181
  %v1057 = vunpack.c.l.b16 %v182
  %v1058 = vunpack.c.l.b16 %v183
  %v1059 = vunpack.c.l.b16 %v184
  %v1060 = vunpack.c.l.b16 %v185
  %v1061 = vunpack.c.l.b16 %v186
  %v1062 = vunpack.c.l.b16 %v187
  %v1063 = vunpack.c.l.b16 %v188
  %v1064 = vunpack.c.l.b16 %v189
  %v1065 = vunpack.c.l.b16 %v190
  %v1066 = vunpack.c.l.b16 %v191
  %v1067 = vunpack.c.l.b16 %v192
  %v1068 = vunpack.c.l.b16 %v193
  %v1069 = vunpack.c.l.b16 %v194
  %v1070 = vunpack.c.l.b16 %v195
  %v1071 = vunpack.c.l.b16 %v196
  %v1072 = vunpack.c.l.b16 %v197
  %v1073 = vunpack.c.l.b16 %v198
  %v1074 = vunpack.c.l.b16 %v199
  %v1075 = vunpack.c.l.b16 %v200
  %v1076 = vunpack.c.l.b16 %v201
  %v1077 = vunpack.c.l.b16 %v202
  %v1078 = vunpack.c.l.b16 %v203
  %v1079 = vunpack.c.l.b16 %v204
  %v1080 = vunpack.c.l.b16 %v205
  %v1081 = vunpack.c.l.b16 %v206
  %v1082 = vunpack.c.l.b16 %v207
  %v1083 = vunpack.c.l.b16 %v208
  %v1084 = vunpack.c.l.b16 %v209
  %v1085 = vunpack.c.l.b16 %v210
  %v1086 = vunpack.c.l.b16 %v211
  %v1087 = vunpack.c.l.b16 %v212
  %v1088 = vunpack.c.l.b16 %v213
  %v1089 = vunpack.c.l.b16 %v214
  %v1090 = vunpack.c.l.b16 %v215
  %v1091 = vunpack.c.l.b16 %v216
  %v1092 = vunpack.c.l.b16 %v217
  %v1093 = vunpack.c.l.b16 %v218
  %v1094 = vunpack.c.l.b16 %v219
  %v1095 = vunpack.c.l.b16 %v220
  %v1096 = vunpack.c.l.b16 %v221
  %v1097 = vunpack.c.l.b16 %v222
  %v1098 = vunpack.c.l.b16 %v223
  %v1099 = vunpack.c.l.b16 %v224
  %v1100 = vunpack.c.l.b16 %v225
  %v1101 = vunpack.c.l.b16 %v226
  %v1102 = vunpack.c.l.b16 %v227
  %v1103 = vunpack.c.l.b16 %v228
  %v1104 = vunpack.c.l.b16 %v229
  %v1105 = vunpack.c.l.b16 %v230
  %v1106 = vunpack.c.l.b16 %v231
  %v1107 = vunpack.c.l.b16 %v232
  %v1108 = vunpack.c.l.b16 %v233
  %v1109 = vunpack.c.l.b16 %v234
  %v1110 = vunpack.c.l.b16 %v235
  %v1111 = vunpack.c.l.b16 %v236
  %v1112 = vunpack.c.l.b16 %v237
  %v1113 = vunpack.c.l.b16 %v238
  %v1114 = vunpack.c.l.b16 %v239
  %v1115 = vunpack.c.l.b16 %v240
  %v1116 = vunpack.c.l.b16 %v241
  %v1117 = vunpack.c.l.b16 %v242
  %v1118 = vunpack.c.l.b16 %v243
  %v1119 = vunpack.c.l.b16 %v244
  %v1120 = vunpack.c.l.b16 %v245
  %v1121 = vunpack.c.l.b16 %v246
  %v1122 = vunpack.c.l.b16 %v247
  %v1123 = vunpack.c.l.b16 %v248
  %v1124 = vunpack.c.l.b16 %v249
  %v1125 = vunpack.c.l.b16 %v250
  %v1126 = vunpack.c.l.b16 %v251
  %v1127 = vunpack.c.l.b16 %v252
  %v1128 = vunpack.c.l.b16 %v253
  %v1129 = vunpack.c.l.b16 %v254
  %v1130 = vunpack.c.l.b16 %v255
  %v1131 = vunpack.c.l.b16 %v256
  %v1132 = vunpack.c.l.b16 %v257
  %v1133 = vunpack.c.l.b16 %v258
  %v1134 = vunpack.c.l.b16 %v259
  %v1135 = vunpack.c.l.b16 %v260
  %v1136 = vunpack.c.l.b16 %v261
  %v1137 = vunpack.c.l.b16 %v262
  %v1138 = vunpack.c.l.b16 %v263
  %v1139 = vunpack.c.l.b16 %v264
  %v1140 = vunpack.c.l.b16 %v265
  %v1141 = vunpack.c.l.b16 %v266
  %v1142 = vunpack.c.l.b16 %v267
  %v1143 = vunpack.c.l.b16 %v268
  %v1144 = vunpack.c.l.b16 %v269
  %v1145 = vunpack.c.l.b16 %v270
  %v1146 = vunpack.c.l.b16 %v271
  %v1147 = vunpack.c.l.b16 %v272
  %v1148 = vunpack.c.l.b16 %v273
  %v1149 = vunpack.c.l.b16 %v274
  %v1150 = vunpack.c.l.b16 %v275
  %v1151 = vunpack.c.l.b16 %v276
  %v1152 = vunpack.c.l.b16 %v277
  %v1153 = vunpack.c.l.b16 %v278
  %v1154 = vunpack.c.l.b16 %v279
  %v1155 = vunpack.c.l.b16 %v280
  %v1156 = vunpack.c.l.b16 %v281
  %v1157 = vunpack.c.l.b16 %v282
  %v1158 = vunpack.c.l.b16 %v283
  %v1159 = vunpack.c.l.b16 %v284
  %v1160 = vunpack.c.l.b16 %v285
  %v1161 = vunpack.c.l.b16 %v286
  %v1162 = vunpack.c.l.b16 %v287
  %v1163 = vunpack.c.l.b16 %v288
  %v1164 = vunpack.c.l.b16 %v289
  %v1165 = vunpack.c.l.b16 %v290
  %v1166 = vunpack.c.l.b16 %v291
  %v1167 = vunpack.c.l.b16 %v292
  %v1168 = vunpack.c.l.b16 %v293
  %v1169 = vunpack.c.l.b16 %v294
  %v1170 = vunpack.c.l.b16 %v295
  %v1171 = vunpack.c.l.b16 %v296
  %v1172 = vunpack.c.l.b16 %v297
  %v1173 = vunpack.c.l.b16 %v298
  %v1174 = vunpack.c.l.b16 %v299
  %v1175 = vunpack.c.l.b16 %v300
  %v1176 = vunpack.c.l.b16 %v301
  %v1177 = vunpack.c.l.b16 %v302
  %v1178 = vunpack.c.l.b16 %v303
  %v1179 = vunpack.c.l.b16 %v304
  %v1180 = vunpack.c.l.b16 %v305
  %v1181 = vunpack.c.l.b16 %v306
  %v1182 = vunpack.c.l.b16 %v307
  %v1183 = vunpack.c.l.b16 %v308
  %v1184 = vunpack.c.l.b16 %v309
  %v1185 = vunpack.c.l.b16 %v310
  %v1186 = vunpack.c.l.b16 %v311
  %v1187 = vunpack.c.l.b16 %v312
  %v1188 = vunpack.c.l.b16 %v313
  %v1189 = vunpack.c.l.b16 %v314
  %v1190 = vunpack.c.l.b16 %v315
  %v1191 = vunpack.c.l.b16 %v316
  %v1192 = vunpack.c.l.b16 %v317
  %v1193 = vunpack.c.l.b16 %v318
  %v1194 = vunpack.c.l.b16 %v319
  %v1195 = vunpack.c.l.b16 %v320
  %v1196 = vunpack.c.l.b16 %v321
  %v1197 = vunpack.c.l.b16 %v322
  %v1198 = vunpack.c.l.b16 %v323
  %v1199 = vunpack.c.l.b16 %v324
  %v1200 = vunpack.c.l.b16 %v325
  %v1201 = vunpack.c.l.b16 %v326
  %v1202 = vunpack.c.l.b16 %v327
  %v1203 = vunpack.c.l.b16 %v328
  %v1204 = vunpack.c.l.b16 %v329
  %v1205 = vunpack.c.l.b16 %v330
  %v1206 = vunpack.c.l.b16 %v331
  %v1207 = vunpack.c.l.b16 %v332
  %v1208 = vunpack.c.l.b16 %v333
  %v1209 = vunpack.c.l.b16 %v334
  %v1210 = vunpack.c.l.b16 %v335
  %v1211 = vunpack.c.l.b16 %v336
  %v1212 = vunpack.c.l.b16 %v337
  %v1213 = vunpack.c.l.b16 %v338
  %v1214 = vunpack.c.l.b16 %v339
  %v1215 = vunpack.c.l.b16 %v340
  %v1216 = vunpack.c.l.b16 %v341
  %v1217 = vunpack.c.l.b16 %v342
  %v1218 = vunpack.c.l.b16 %v343
  %v1219 = vunpack.c.l.b16 %v344
  %v1220 = vunpack.c.l.b16 %v345
  %v1221 = vunpack.c.l.b16 %v346
  %v1222 = vunpack.c.l.b16 %v347
  %v1223 = vunpack.c.l.b16 %v348
  %v1224 = vunpack.c.l.b16 %v349
  %v1225 = vunpack.c.l.b16 %v350
  %v1226 = vunpack.c.l.b16 %v351
  %v1227 = vunpack.c.l.b16 %v352
  %v1228 = vunpack.c.l.b16 %v353
  %v1229 = vunpack.c.l.b16 %v354
  %v1230 = vunpack.c.l.b16 %v355
  %v1231 = vunpack.c.l.b16 %v356
  %v1232 = vunpack.c.l.b16 %v357
  %v1233 = vunpack.c.l.b16 %v358
  %v1234 = vunpack.c.l.b16 %v359
  %v1235 = vunpack.c.l.b16 %v360
  %v1236 = vunpack.c.l.b16 %v361
  %v1237 = vunpack.c.l.b16 %v362
  %v1238 = vunpack.c.l.b16 %v363
  %v1239 = vunpack.c.l.b16 %v364
  %v1240 = vunpack.c.l.b16 %v365
  %v1241 = vunpack.c.l.b16 %v366
  %v1242 = vunpack.c.l.b16 %v367
  %v1243 = vunpack.c.l.b16 %v368
  %v1244 = vunpack.c.l.b16 %v369
  %v1245 = vunpack.c.l.b16 %v370
  %v1246 = vunpack.c.l.b16 %v371
  %v1247 = vunpack.c.l.b16 %v372
  %v1248 = vunpack.c.l.b16 %v373
  %v1249 = vunpack.c.l.b16 %v374
  %v1250 = vunpack.c.l.b16 %v375
  %v1251 = vunpack.c.l.b16 %v376
  %v1252 = vunpack.c.l.b16 %v377
  %v1253 = vunpack.c.l.b16 %v378
  %v1254 = vunpack.c.l.b16 %v379
  %v1255 = vunpack.c.l.b16 %v380
  %v1256 = vunpack.c.l.b16 %v381
  %v1257 = vunpack.c.l.b16 %v382
  %v1258 = vunpack.c.l.b16 %v383
  %v1259 = vunpack.c.l.b16 %v384
  %v1260 = vunpack.c.l.b16 %v385
  %v1261 = vunpack.c.l.b16 %v386
  %v1262 = vunpack.c.l.b16 %v387
  %v1263 = vunpack.c.l.b16 %v388
  %v1264 = vunpack.c.l.b16 %v389
  %v1265 = vunpack.c.l.b16 %v390
  %v1266 = vunpack.c.l.b16 %v391
  %v1267 = vunpack.c.l.b16 %v392
  %v1268 = vunpack.c.l.b16 %v393
  %v1269 = vunpack.c.l.b16 %v394
  %v1270 = vunpack.c.l.b16 %v395
  %v1271 = vunpack.c.l.b16 %v396
  %v1272 = vunpack.c.l.b16 %v397
  %v1273 = vunpack.c.l.b16 %v398
  %v1274 = vunpack.c.l.b16 %v399
  %v1275 = vunpack.c.l.b16 %v400
  %v1276 = vunpack.c.l.b16 %v401
  %v1277 = vunpack.c.l.b16 %v402
  %v1278 = vunpack.c.l.b16 %v403
  %v1279 = vunpack.c.l.b16 %v404
  %v1280 = vunpack.c.l.b16 %v405
  %v1281 = vunpack.c.l.b16 %v406
  %v1282 = vunpack.c.l.b16 %v407
  %v1283 = vunpack.c.l.b16 %v408
  %v1284 = vunpack.c.l.b16 %v409
  %v1285 = vunpack.c.l.b16 %v410
  %v1286 = vunpack.c.l.b16 %v411
  %v1287 = vunpack.c.l.b16 %v412
  %v1288 = vunpack.c.l.b16 %v413
  %v1289 = vunpack.c.l.b16 %v414
  %v1290 = vunpack.c.l.b16 %v415
  %v1291 = vunpack.c.l.b16 %v416
  %v1292 = vunpack.c.l.b16 %v417
  %v1293 = vunpack.c.l.b16 %v418
  %v1294 = vunpack.c.l.b16 %v419
  %v1295 = vunpack.c.l.b16 %v420
  %v1296 = vunpack.c.l.b16 %v421
  %v1297 = vunpack.c.l.b16 %v422
  %v1298 = vunpack.c.l.b16 %v423
  %v1299 = vunpack.c.l.b16 %v424
  %v1300 = vunpack.c.l.b16 %v425
  %v1301 = vpack.c.b16 %v910, %v909
  %v1302 = vpack.c.b16 %v912, %v911
  %v1303 = vpack.c.b16 %v914, %v913
  %v1304 = vpack.c.b16 %v916, %v915
  %v1305 = vpack.c.b16 %v918, %v917
  %v1306 = vpack.c.b16 %v920, %v919
  %v1307 = vpack.c.b16 %v922, %v921
  %v1308 = vpack.c.b16 %v924, %v923
  %v1309 = vpack.c.b16 %v926, %v925
  %v1310 = vpack.c.b16 %v928, %v927
  %v1311 = vpack.c.b16 %v930, %v929
  %v1312 = vpack.c.b16 %v932, %v931
  %v1313 = vpack.c.b16 %v934, %v933
  %v1314 = vpack.c.b16 %v936, %v935
  %v1315 = vpack.c.b16 %v938, %v937
  %v1316 = vpack.c.b16 %v940, %v939
  %v1317 = vpack.c.b16 %v942, %v941
  %v1318 = vpack.c.b16 %v944, %v943
  %v1319 = vpack.c.b16 %v946, %v945
  %v1320 = vpack.c.b16 %v948, %v947
  %v1321 = vpack.c.b16 %v950, %v949
  %v1322 = vpack.c.b16 %v952, %v951
  %v1323 = vpack.c.b16 %v954, %v953
  %v1324 = vpack.c.b16 %v956, %v955
  %v1325 = vpack.c.b16 %v958, %v957
  %v1326 = vpack.c.b16 %v960, %v959
  %v1327 = vpack.c.b16 %v962, %v961
  %v1328 = vpack.c.b16 %v964, %v963
  %v1329 = vpack.c.b16 %v966, %v965
  %v1330 = vpack.c.b16 %v968, %v967
  %v1331 = vpack.c.b16 %v970, %v969
  %v1332 = vpack.c.b16 %v972, %v971
  %v1333 = vpack.c.b16 %v974, %v973
  %v1334 = vpack.c.b16 %v976, %v975
  %v1335 = vpack.c.b16 %v978, %v977
  %v1336 = vpack.c.b16 %v980, %v979
  %v1337 = vpack.c.b16 %v982, %v981
  %v1338 = vpack.c.b16 %v984, %v983
  %v1339 = vpack.c.b16 %v986, %v985
  %v1340 = vpack.c.b16 %v988, %v987
  %v1341 = vpack.c.b16 %v990, %v989
  %v1342 = vpack.c.b16 %v992, %v991
  %v1343 = vpack.c.b16 %v994, %v993
  %v1344 = vpack.c.b16 %v996, %v995
  %v1345 = vpack.c.b16 %v998, %v997
  %v1346 = vpack.c.b16 %v1000, %v999
  %v1347 = vpack.c.b16 %v1002, %v1001
  %v1348 = vpack.c.b16 %v1004, %v1003
  %v1349 = vpack.c.b16 %v1006, %v1005
  %v1350 = vpack.c.b16 %v1008, %v1007
  %v1351 = vpack.c.b16 %v1010, %v1009
  %v1352 = vpack.c.b16 %v1012, %v1011
  %v1353 = vpack.c.b16 %v1014, %v1013
  %v1354 = vpack.c.b16 %v1016, %v1015
  %v1355 = vpack.c.b16 %v1018, %v1017
  %v1356 = vpack.c.b16 %v1020, %v1019
  %v1357 = vpack.c.b16 %v1022, %v1021
  %v1358 = vpack.c.b16 %v1024, %v1023
  %v1359 = vpack.c.b16 %v1026, %v1025
  %v1360 = vpack.c.b16 %v1028, %v1027
  %v1361 = vpack.c.b16 %v1030, %v1029
  %v1362 = vpack.c.b16 %v1032, %v1031
  %v1363 = vpack.c.b16 %v1034, %v1033
  %v1364 = vpack.c.b16 %v1036, %v1035
  %v1365 = vpack.c.b16 %v1038, %v1037
  %v1366 = vpack.c.b16 %v1040, %v1039
  %v1367 = vpack.c.b16 %v1042, %v1041
  %v1368 = vpack.c.b16 %v1044, %v1043
  %v1369 = vpack.c.b16 %v1046, %v1045
  %v1370 = vpack.c.b16 %v1048, %v1047
  %v1371 = vpack.c.b16 %v1050, %v1049
  %v1372 = vpack.c.b16 %v1052, %v1051
  %v1373 = vpack.c.b16 %v1054, %v1053
  %v1374 = vpack.c.b16 %v1056, %v1055
  %v1375 = vpack.c.b16 %v1058, %v1057
  %v1376 = vpack.c.b16 %v1060, %v1059
  %v1377 = vpack.c.b16 %v1062, %v1061
  %v1378 = vpack.c.b16 %v1064, %v1063
  %v1379 = vpack.c.b16 %v1066, %v1065
  %v1380 = vpack.c.b16 %v1068, %v1067
  %v1381 = vpack.c.b16 %v1070, %v1069
  %v1382 = vpack.c.b16 %v1072, %v1071
  %v1383 = vpack.c.b16 %v1074, %v1073
  %v1384 = vpack.c.b16 %v1076, %v1075
  %v1385 = vpack.c.b16 %v1078, %v1077
  %v1386 = vpack.c.b16 %v1080, %v1079
  %v1387 = vpack.c.b16 %v1082, %v1081
  %v1388 = vpack.c.b16 %v1084, %v1083
  %v1389 = vpack.c.b16 %v1086, %v1085
  %v1390 = vpack.c.b16 %v1088, %v1087
  %v1391 = vpack.c.b16 %v1090, %v1089
  %v1392 = vpack.c.b16 %v1092, %v1091
  %v1393 = vpack.c.b16 %v1094, %v1093
  %v1394 = vpack.c.b16 %v1096, %v1095
  %v1395 = vpack.c.b16 %v1098, %v1097
  %v1396 = vpack.c.b16 %v1100, %v1099
  %v1397 = vpack.c.b16 %v1102, %v1101
  %v1398 = vpack.c.b16 %v1104, %v1103
  %v1399 = vpack.c.b16 %v1106, %v1105
  %v1400 = vpack.c.b16 %v1108, %v1107
  %v1401 = vpack.c.b16 %v1110, %v1109
  %v1402 = vpack.c.b16 %v1112, %v1111
  %v1403 = vpack.c.b16 %v1114, %v1113
  %v1404 = vpack.c.b16 %v1116, %v1115
  %v1405 = vpack.c.b16 %v1118, %v1117
  %v1406 = vpack.c.b16 %v1120, %v1119
  %v1407 = vpack.c.b16 %v1122, %v1121
  %v1408 = vpack.c.b16 %v1124, %v1123
  %v1409 = vpack.c.b16 %v1126, %v1125
  %v1410 = vpack.c.b16 %v1128, %v1127
  %v1411 = vpack.c.b16 %v1130, %v1129
  %v1412 = vpack.c.b16 %v1132, %v1131
  %v1413 = vpack.c.b16 %v1134, %v1133
  %v1414 = vpack.c.b16 %v1136, %v1135
  %v1415 = vpack.c.b16 %v1138, %v1137
  %v1416 = vpack.c.b16 %v1140, %v1139
  %v1417 = vpack.c.b16 %v1142, %v1141
  %v1418 = vpack.c.b16 %v1144, %v1143
  %v1419 = vpack.c.b16 %v1146, %v1145
  %v1420 = vpack.c.b16 %v1148, %v1147
  %v1421 = vpack.c.b16 %v1150, %v1149
  %v1422 = vpack.c.b16 %v1152, %v1151
  %v1423 = vpack.c.b16 %v1154, %v1153
  %v1424 = vpack.c.b16 %v1156, %v1155
  %v1425 = vpack.c.b16 %v1158, %v1157
  %v1426 = vpack.c.b16 %v1160, %v1159
  %v1427 = vpack.c.b16 %v1162, %v1161
  %v1428 = vpack.c.b16 %v1164, %v1163
  %v1429 = vpack.c.b16 %v1166, %v1165
  %v1430 = vpack.c.b16 %v1168, %v1167
  %v1431 = vpack.c.b16 %v1170, %v1169
  %v1432 = vpack.c.b16 %v1172, %v1171
  %v1433 = vpack.c.b16 %v1174, %v1173
  %v1434 = vpack.c.b16 %v1176, %v1175
  %v1435 = vpack.c.b16 %v1178, %v1177
  %v1436 = vpack.c.b16 %v1180, %v1179
  %v1437 = vpack.c.b16 %v1182, %v1181
  %v1438 = vpack.c.b16 %v1184, %v1183
  %v1439 = vpack.c.b16 %v1186, %v1185
  %v1440 = vpack.c.b16 %v1188, %v1187
  %v1441 = vpack.c.b16 %v1190, %v1189
  %v1442 = vpack.c.b16 %v1192, %v1191
  %v1443 = vpack.c.b16 %v1194, %v1193
  %v1444 = vpack.c.b16 %v1196, %v1195
  %v1445 = vpack.c.b16 %v1198, %v1197
  %v1446 = vpack.c.b16 %v1200, %v1199
  %v1447 = vpack.c.b16 %v1202, %v1201
  %v1448 = vpack.c.b16 %v1204, %v1203
  %v1449 = vpack.c.b16 %v1206, %v1205
  %v1450 = vpack.c.b16 %v1208, %v1207
  %v1451 = vpack.c.b16 %v1210, %v1209
  %v1452 = vpack.c.b16 %v1212, %v1211
  %v1453 = vpack.c.b16 %v1214, %v1213
  %v1454 = vpack.c.b16 %v1216, %v1215
  %v1455 = vpack.c.b16 %v1218, %v1217
  %v1456 = vpack.c.b16 %v1220, %v1219
  %v1457 = vpack.c.b16 %v1222, %v1221
  %v1458 = vpack.c.b16 %v1224, %v1223
  %v1459 = vpack.c.b16 %v1226, %v1225
  %v1460 = vpack.c.b16 %v1228, %v1227
  %v1461 = vpack.c.b16 %v1230, %v1229
  %v1462 = vpack.c.b16 %v1232, %v1231
  %v1463 = vpack.c.b16 %v1234, %v1233
  %v1464 = vpack.c.b16 %v1236, %v1235
  %v1465 = vpack.c.b16 %v1238, %v1237
  %v1466 = vpack.c.b16 %v1240, %v1239
  %v1467 = vpack.c.b16 %v1242, %v1241
  %v1468 = vpack.c.b16 %v1244, %v1243
  %v1469 = vpack.c.b16 %v1246, %v1245
  %v1470 = vpack.c.b16 %v1248, %v1247
  %v1471 = vpack.c.b16 %v1250, %v1249
  %v1472 = vpack.c.b16 %v1252, %v1251
  %v1473 = vpack.c.b16 %v1254, %v1253
  %v1474 = vpack.c.b16 %v1256, %v1255
  %v1475 = vpack.c.b16 %v1258, %v1257
  %v1476 = vpack.c.b16 %v1260, %v1259
  %v1477 = vpack.c.b16 %v1262, %v1261
  %v1478 = vpack.c.b16 %v1264, %v1263
  %v1479 = vpack.c.b16 %v1266, %v1265
  %v1480 = vpack.c.b16 %v1268, %v1267
  %v1481 = vpack.c.b16 %v1270, %v1269
  %v1482 = vpack.c.b16 %v1272, %v1271
  %v1483 = vpack.c.b16 %v1274, %v1273
  %v1484 = vpack.c.b16 %v1276, %v1275
  %v1485 = vpack.c.b16 %v1278, %v1277
  %v1486 = vpack.c.b16 %v1280, %v1279
  %v1487 = vpack.c.b16 %v1282, %v1281
  %v1488 = vpack.c.b16 %v1284, %v1283
  %v1489 = vpack.c.b16 %v1286, %v1285
  %v1490 = vpack.c.b16 %v1288, %v1287
  %v1491 = vpack.c.b16 %v1290, %v1289
  %v1492 = vpack.c.b16 %v1292, %v1291
  %v1493 = vpack.c.b16 %v1294, %v1293
  %v1494 = vpack.c.b16 %v1296, %v1295
  %v1495 = vpack.c.b16 %v1298, %v1297
  %v1496 = vpack.c.b16 %v1300, %v1299
  %vm1693 = vcmask 523264
  %v1695 = vsel %vm1693, %v492, 0
  %1697 = vmatpush.bf16.msra.mxu0 %v1308
  %1698 = vmatpush.bf16.msra.mxu0 %v1307
  %1699 = vmatpush.bf16.msra.mxu0 %v1306
  %1700 = vmatpush.bf16.msra.mxu0 %v1305
  %1701 = vmatpush.bf16.msra.mxu0 %v1304
  %1702 = vmatpush.bf16.msra.mxu0 %v1303
  %1703 = vmatpush.bf16.msra.mxu0 %v1302
  %1704 = vmatpush.bf16.msra.mxu0 %v1301
  %1705 = vmatmul.bf16.gmra.mxu0 %v468
  %v1706 = vpop.f32.mrf.mxu0
  %v1707 = vadd.f32 %v428, %v1706
  %v1708 = vpop.f32.mrf.mxu0
  %1709 = vdwg.mxu0
  %1710 = vmatpush.bf16.msra.mxu0 %v1316
  %1711 = vmatpush.bf16.msra.mxu0 %v1315
  %1712 = vmatpush.bf16.msra.mxu0 %v1314
  %1713 = vmatpush.bf16.msra.mxu0 %v1313
  %1714 = vmatpush.bf16.msra.mxu0 %v1312
  %1715 = vmatpush.bf16.msra.mxu0 %v1311
  %1716 = vmatpush.bf16.msra.mxu0 %v1310
  %1717 = vmatpush.bf16.msra.mxu0 %v1309
  %1718 = vmatmul.bf16.gmra.mxu0 %v469
  %v1719 = vpop.f32.mrf.mxu0
  %v1720 = vadd.f32 %v1707, %v1719
  %v1721 = vpop.f32.mrf.mxu0
  %1722 = vdwg.mxu0
  %1723 = vmatpush.bf16.msra.mxu0 %v1324
  %1724 = vmatpush.bf16.msra.mxu0 %v1323
  %1725 = vmatpush.bf16.msra.mxu0 %v1322
  %1726 = vmatpush.bf16.msra.mxu0 %v1321
  %1727 = vmatpush.bf16.msra.mxu0 %v1320
  %1728 = vmatpush.bf16.msra.mxu0 %v1319
  %1729 = vmatpush.bf16.msra.mxu0 %v1318
  %1730 = vmatpush.bf16.msra.mxu0 %v1317
  %1731 = vmatmul.bf16.gmra.mxu0 %v470
  %v1732 = vpop.f32.mrf.mxu0
  %v1733 = vadd.f32 %v1720, %v1732
  %v1734 = vpop.f32.mrf.mxu0
  %1735 = vdwg.mxu0
  %1736 = vmatpush.bf16.msra.mxu0 %v1332
  %1737 = vmatpush.bf16.msra.mxu0 %v1331
  %1738 = vmatpush.bf16.msra.mxu0 %v1330
  %1739 = vmatpush.bf16.msra.mxu0 %v1329
  %1740 = vmatpush.bf16.msra.mxu0 %v1328
  %1741 = vmatpush.bf16.msra.mxu0 %v1327
  %1742 = vmatpush.bf16.msra.mxu0 %v1326
  %1743 = vmatpush.bf16.msra.mxu0 %v1325
  %1744 = vmatmul.bf16.gmra.mxu0 %v471
  %v1745 = vpop.f32.mrf.mxu0
  %v1746 = vadd.f32 %v1733, %v1745
  %v1747 = vpop.f32.mrf.mxu0
  %1748 = vdwg.mxu0
  %1749 = vmatpush.bf16.msra.mxu0 %v1340
  %1750 = vmatpush.bf16.msra.mxu0 %v1339
  %1751 = vmatpush.bf16.msra.mxu0 %v1338
  %1752 = vmatpush.bf16.msra.mxu0 %v1337
  %1753 = vmatpush.bf16.msra.mxu0 %v1336
  %1754 = vmatpush.bf16.msra.mxu0 %v1335
  %1755 = vmatpush.bf16.msra.mxu0 %v1334
  %1756 = vmatpush.bf16.msra.mxu0 %v1333
  %1757 = vmatmul.bf16.gmra.mxu0 %v472
  %v1758 = vpop.f32.mrf.mxu0
  %v1759 = vadd.f32 %v1746, %v1758
  %v1760 = vpop.f32.mrf.mxu0
  %1761 = vdwg.mxu0
  %1762 = vmatpush.bf16.msra.mxu0 %v1348
  %1763 = vmatpush.bf16.msra.mxu0 %v1347
  %1764 = vmatpush.bf16.msra.mxu0 %v1346
  %1765 = vmatpush.bf16.msra.mxu0 %v1345
  %1766 = vmatpush.bf16.msra.mxu0 %v1344
  %1767 = vmatpush.bf16.msra.mxu0 %v1343
  %1768 = vmatpush.bf16.msra.mxu0 %v1342
  %1769 = vmatpush.bf16.msra.mxu0 %v1341
  %1770 = vmatmul.bf16.gmra.mxu0 %v473
  %v1771 = vpop.f32.mrf.mxu0
  %v1772 = vadd.f32 %v1759, %v1771
  %v1773 = vpop.f32.mrf.mxu0
  %1774 = vdwg.mxu0
  %1775 = vmatpush.bf16.msra.mxu0 %v1356
  %1776 = vmatpush.bf16.msra.mxu0 %v1355
  %1777 = vmatpush.bf16.msra.mxu0 %v1354
  %1778 = vmatpush.bf16.msra.mxu0 %v1353
  %1779 = vmatpush.bf16.msra.mxu0 %v1352
  %1780 = vmatpush.bf16.msra.mxu0 %v1351
  %1781 = vmatpush.bf16.msra.mxu0 %v1350
  %1782 = vmatpush.bf16.msra.mxu0 %v1349
  %1783 = vmatmul.bf16.gmra.mxu0 %v474
  %v1784 = vpop.f32.mrf.mxu0
  %v1785 = vadd.f32 %v1772, %v1784
  %v1786 = vpop.f32.mrf.mxu0
  %1787 = vdwg.mxu0
  %1788 = vmatpush.bf16.msra.mxu0 %v1364
  %1789 = vmatpush.bf16.msra.mxu0 %v1363
  %1790 = vmatpush.bf16.msra.mxu0 %v1362
  %1791 = vmatpush.bf16.msra.mxu0 %v1361
  %1792 = vmatpush.bf16.msra.mxu0 %v1360
  %1793 = vmatpush.bf16.msra.mxu0 %v1359
  %1794 = vmatpush.bf16.msra.mxu0 %v1358
  %1795 = vmatpush.bf16.msra.mxu0 %v1357
  %1796 = vmatmul.bf16.gmra.mxu0 %v475
  %v1797 = vpop.f32.mrf.mxu0
  %v1798 = vadd.f32 %v1785, %v1797
  %v1799 = vpop.f32.mrf.mxu0
  %1800 = vdwg.mxu0
  %1801 = vmatpush.bf16.msra.mxu0 %v1372
  %1802 = vmatpush.bf16.msra.mxu0 %v1371
  %1803 = vmatpush.bf16.msra.mxu0 %v1370
  %1804 = vmatpush.bf16.msra.mxu0 %v1369
  %1805 = vmatpush.bf16.msra.mxu0 %v1368
  %1806 = vmatpush.bf16.msra.mxu0 %v1367
  %1807 = vmatpush.bf16.msra.mxu0 %v1366
  %1808 = vmatpush.bf16.msra.mxu0 %v1365
  %1809 = vmatmul.bf16.gmra.mxu0 %v476
  %v1810 = vpop.f32.mrf.mxu0
  %v1811 = vadd.f32 %v1798, %v1810
  %v1812 = vpop.f32.mrf.mxu0
  %1813 = vdwg.mxu0
  %1814 = vmatpush.bf16.msra.mxu0 %v1380
  %1815 = vmatpush.bf16.msra.mxu0 %v1379
  %1816 = vmatpush.bf16.msra.mxu0 %v1378
  %1817 = vmatpush.bf16.msra.mxu0 %v1377
  %1818 = vmatpush.bf16.msra.mxu0 %v1376
  %1819 = vmatpush.bf16.msra.mxu0 %v1375
  %1820 = vmatpush.bf16.msra.mxu0 %v1374
  %1821 = vmatpush.bf16.msra.mxu0 %v1373
  %1822 = vmatmul.bf16.gmra.mxu0 %v477
  %v1823 = vpop.f32.mrf.mxu0
  %v1824 = vadd.f32 %v1811, %v1823
  %v1825 = vpop.f32.mrf.mxu0
  %1826 = vdwg.mxu0
  %1827 = vmatpush.bf16.msra.mxu0 %v1388
  %1828 = vmatpush.bf16.msra.mxu0 %v1387
  %1829 = vmatpush.bf16.msra.mxu0 %v1386
  %1830 = vmatpush.bf16.msra.mxu0 %v1385
  %1831 = vmatpush.bf16.msra.mxu0 %v1384
  %1832 = vmatpush.bf16.msra.mxu0 %v1383
  %1833 = vmatpush.bf16.msra.mxu0 %v1382
  %1834 = vmatpush.bf16.msra.mxu0 %v1381
  %1835 = vmatmul.bf16.gmra.mxu0 %v478
  %v1836 = vpop.f32.mrf.mxu0
  %v1837 = vadd.f32 %v1824, %v1836
  %v1838 = vpop.f32.mrf.mxu0
  %1839 = vdwg.mxu0
  %1840 = vmatpush.bf16.msra.mxu0 %v1396
  %1841 = vmatpush.bf16.msra.mxu0 %v1395
  %1842 = vmatpush.bf16.msra.mxu0 %v1394
  %1843 = vmatpush.bf16.msra.mxu0 %v1393
  %1844 = vmatpush.bf16.msra.mxu0 %v1392
  %1845 = vmatpush.bf16.msra.mxu0 %v1391
  %1846 = vmatpush.bf16.msra.mxu0 %v1390
  %1847 = vmatpush.bf16.msra.mxu0 %v1389
  %1848 = vmatmul.bf16.gmra.mxu0 %v479
  %v1849 = vpop.f32.mrf.mxu0
  %v1850 = vadd.f32 %v1837, %v1849
  %v1851 = vpop.f32.mrf.mxu0
  %1852 = vdwg.mxu0
  %1853 = vmatpush.bf16.msra.mxu0 %v1404
  %1854 = vmatpush.bf16.msra.mxu0 %v1403
  %1855 = vmatpush.bf16.msra.mxu0 %v1402
  %1856 = vmatpush.bf16.msra.mxu0 %v1401
  %1857 = vmatpush.bf16.msra.mxu0 %v1400
  %1858 = vmatpush.bf16.msra.mxu0 %v1399
  %1859 = vmatpush.bf16.msra.mxu0 %v1398
  %1860 = vmatpush.bf16.msra.mxu0 %v1397
  %1861 = vmatmul.bf16.gmra.mxu0 %v480
  %v1862 = vpop.f32.mrf.mxu0
  %v1863 = vadd.f32 %v1850, %v1862
  %v1864 = vpop.f32.mrf.mxu0
  %1865 = vdwg.mxu0
  %1866 = vmatpush.bf16.msra.mxu0 %v1412
  %1867 = vmatpush.bf16.msra.mxu0 %v1411
  %1868 = vmatpush.bf16.msra.mxu0 %v1410
  %1869 = vmatpush.bf16.msra.mxu0 %v1409
  %1870 = vmatpush.bf16.msra.mxu0 %v1408
  %1871 = vmatpush.bf16.msra.mxu0 %v1407
  %1872 = vmatpush.bf16.msra.mxu0 %v1406
  %1873 = vmatpush.bf16.msra.mxu0 %v1405
  %1874 = vmatmul.bf16.gmra.mxu0 %v481
  %v1875 = vpop.f32.mrf.mxu0
  %v1876 = vadd.f32 %v1863, %v1875
  %v1877 = vpop.f32.mrf.mxu0
  %1878 = vdwg.mxu0
  %1879 = vmatpush.bf16.msra.mxu0 %v1420
  %1880 = vmatpush.bf16.msra.mxu0 %v1419
  %1881 = vmatpush.bf16.msra.mxu0 %v1418
  %1882 = vmatpush.bf16.msra.mxu0 %v1417
  %1883 = vmatpush.bf16.msra.mxu0 %v1416
  %1884 = vmatpush.bf16.msra.mxu0 %v1415
  %1885 = vmatpush.bf16.msra.mxu0 %v1414
  %1886 = vmatpush.bf16.msra.mxu0 %v1413
  %1887 = vmatmul.bf16.gmra.mxu0 %v482
  %v1888 = vpop.f32.mrf.mxu0
  %v1889 = vadd.f32 %v1876, %v1888
  %v1890 = vpop.f32.mrf.mxu0
  %1891 = vdwg.mxu0
  %1892 = vmatpush.bf16.msra.mxu0 %v1428
  %1893 = vmatpush.bf16.msra.mxu0 %v1427
  %1894 = vmatpush.bf16.msra.mxu0 %v1426
  %1895 = vmatpush.bf16.msra.mxu0 %v1425
  %1896 = vmatpush.bf16.msra.mxu0 %v1424
  %1897 = vmatpush.bf16.msra.mxu0 %v1423
  %1898 = vmatpush.bf16.msra.mxu0 %v1422
  %1899 = vmatpush.bf16.msra.mxu0 %v1421
  %1900 = vmatmul.bf16.gmra.mxu0 %v483
  %v1901 = vpop.f32.mrf.mxu0
  %v1902 = vadd.f32 %v1889, %v1901
  %v1903 = vpop.f32.mrf.mxu0
  %1904 = vdwg.mxu0
  %1905 = vmatpush.bf16.msra.mxu0 %v1436
  %1906 = vmatpush.bf16.msra.mxu0 %v1435
  %1907 = vmatpush.bf16.msra.mxu0 %v1434
  %1908 = vmatpush.bf16.msra.mxu0 %v1433
  %1909 = vmatpush.bf16.msra.mxu0 %v1432
  %1910 = vmatpush.bf16.msra.mxu0 %v1431
  %1911 = vmatpush.bf16.msra.mxu0 %v1430
  %1912 = vmatpush.bf16.msra.mxu0 %v1429
  %1913 = vmatmul.bf16.gmra.mxu0 %v484
  %v1914 = vpop.f32.mrf.mxu0
  %v1915 = vadd.f32 %v1902, %v1914
  %v1916 = vpop.f32.mrf.mxu0
  %1917 = vdwg.mxu0
  %1918 = vmatpush.bf16.msra.mxu0 %v1444
  %1919 = vmatpush.bf16.msra.mxu0 %v1443
  %1920 = vmatpush.bf16.msra.mxu0 %v1442
  %1921 = vmatpush.bf16.msra.mxu0 %v1441
  %1922 = vmatpush.bf16.msra.mxu0 %v1440
  %1923 = vmatpush.bf16.msra.mxu0 %v1439
  %1924 = vmatpush.bf16.msra.mxu0 %v1438
  %1925 = vmatpush.bf16.msra.mxu0 %v1437
  %1926 = vmatmul.bf16.gmra.mxu0 %v485
  %v1927 = vpop.f32.mrf.mxu0
  %v1928 = vadd.f32 %v1915, %v1927
  %v1929 = vpop.f32.mrf.mxu0
  %1930 = vdwg.mxu0
  %1931 = vmatpush.bf16.msra.mxu0 %v1452
  %1932 = vmatpush.bf16.msra.mxu0 %v1451
  %1933 = vmatpush.bf16.msra.mxu0 %v1450
  %1934 = vmatpush.bf16.msra.mxu0 %v1449
  %1935 = vmatpush.bf16.msra.mxu0 %v1448
  %1936 = vmatpush.bf16.msra.mxu0 %v1447
  %1937 = vmatpush.bf16.msra.mxu0 %v1446
  %1938 = vmatpush.bf16.msra.mxu0 %v1445
  %1939 = vmatmul.bf16.gmra.mxu0 %v486
  %v1940 = vpop.f32.mrf.mxu0
  %v1941 = vadd.f32 %v1928, %v1940
  %v1942 = vpop.f32.mrf.mxu0
  %1943 = vdwg.mxu0
  %1944 = vmatpush.bf16.msra.mxu0 %v1460
  %1945 = vmatpush.bf16.msra.mxu0 %v1459
  %1946 = vmatpush.bf16.msra.mxu0 %v1458
  %1947 = vmatpush.bf16.msra.mxu0 %v1457
  %1948 = vmatpush.bf16.msra.mxu0 %v1456
  %1949 = vmatpush.bf16.msra.mxu0 %v1455
  %1950 = vmatpush.bf16.msra.mxu0 %v1454
  %1951 = vmatpush.bf16.msra.mxu0 %v1453
  %1952 = vmatmul.bf16.gmra.mxu0 %v487
  %v1953 = vpop.f32.mrf.mxu0
  %v1954 = vadd.f32 %v1941, %v1953
  %v1955 = vpop.f32.mrf.mxu0
  %1956 = vdwg.mxu0
  %1957 = vmatpush.bf16.msra.mxu0 %v1468
  %1958 = vmatpush.bf16.msra.mxu0 %v1467
  %1959 = vmatpush.bf16.msra.mxu0 %v1466
  %1960 = vmatpush.bf16.msra.mxu0 %v1465
  %1961 = vmatpush.bf16.msra.mxu0 %v1464
  %1962 = vmatpush.bf16.msra.mxu0 %v1463
  %1963 = vmatpush.bf16.msra.mxu0 %v1462
  %1964 = vmatpush.bf16.msra.mxu0 %v1461
  %1965 = vmatmul.bf16.gmra.mxu0 %v488
  %v1966 = vpop.f32.mrf.mxu0
  %v1967 = vadd.f32 %v1954, %v1966
  %v1968 = vpop.f32.mrf.mxu0
  %1969 = vdwg.mxu0
  %1970 = vmatpush.bf16.msra.mxu0 %v1476
  %1971 = vmatpush.bf16.msra.mxu0 %v1475
  %1972 = vmatpush.bf16.msra.mxu0 %v1474
  %1973 = vmatpush.bf16.msra.mxu0 %v1473
  %1974 = vmatpush.bf16.msra.mxu0 %v1472
  %1975 = vmatpush.bf16.msra.mxu0 %v1471
  %1976 = vmatpush.bf16.msra.mxu0 %v1470
  %1977 = vmatpush.bf16.msra.mxu0 %v1469
  %1978 = vmatmul.bf16.gmra.mxu0 %v489
  %v1979 = vpop.f32.mrf.mxu0
  %v1980 = vadd.f32 %v1967, %v1979
  %v1981 = vpop.f32.mrf.mxu0
  %1982 = vdwg.mxu0
  %1983 = vmatpush.bf16.msra.mxu0 %v1484
  %1984 = vmatpush.bf16.msra.mxu0 %v1483
  %1985 = vmatpush.bf16.msra.mxu0 %v1482
  %1986 = vmatpush.bf16.msra.mxu0 %v1481
  %1987 = vmatpush.bf16.msra.mxu0 %v1480
  %1988 = vmatpush.bf16.msra.mxu0 %v1479
  %1989 = vmatpush.bf16.msra.mxu0 %v1478
  %1990 = vmatpush.bf16.msra.mxu0 %v1477
  %1991 = vmatmul.bf16.gmra.mxu0 %v490
  %v1992 = vpop.f32.mrf.mxu0
  %v1993 = vadd.f32 %v1980, %v1992
  %v1994 = vpop.f32.mrf.mxu0
  %1995 = vdwg.mxu0
  %1996 = vmatpush.bf16.msra.mxu0 %v1492
  %1997 = vmatpush.bf16.msra.mxu0 %v1491
  %1998 = vmatpush.bf16.msra.mxu0 %v1490
  %1999 = vmatpush.bf16.msra.mxu0 %v1489
  %2000 = vmatpush.bf16.msra.mxu0 %v1488
  %2001 = vmatpush.bf16.msra.mxu0 %v1487
  %2002 = vmatpush.bf16.msra.mxu0 %v1486
  %2003 = vmatpush.bf16.msra.mxu0 %v1485
  %2004 = vmatmul.bf16.gmra.mxu0 %v491
  %v2005 = vpop.f32.mrf.mxu0
  %v2006 = vadd.f32 %v1993, %v2005
  %v2007 = vpop.f32.mrf.mxu0
  %2008 = vdwg.mxu0
  %2009 = vmatpush.bf16.msra.mxu0 0
  %2010 = vmatpush.bf16.msra.mxu0 0
  %2011 = vmatpush.bf16.msra.mxu0 0
  %2012 = vmatpush.bf16.msra.mxu0 0
  %2013 = vmatpush.bf16.msra.mxu0 %v1496
  %2014 = vmatpush.bf16.msra.mxu0 %v1495
  %2015 = vmatpush.bf16.msra.mxu0 %v1494
  %2016 = vmatpush.bf16.msra.mxu0 %v1493
  %2017 = vmatmul.bf16.gmra.mxu0 %v1695
  %v2018 = vpop.f32.mrf.mxu0
  %v2019 = vadd.f32 %v2006, %v2018
  %v2020 = vpop.f32.mrf.mxu0
  %2021 = vdwg.mxu0
  %v2022 = vmax.f32 %v2019, 0.0
  %v2023 = vpack.c.bf16 %v2022, %v2022
  %v2024 = vld [vmem:[%s3] sm:$0xf]
  %v2025 = vld [vmem:[%s3 + $0x4] sm:$0xf]
  %v2026 = vld [vmem:[%s3 + $0x8] sm:$0xf]
  %v2027 = vld [vmem:[%s3 + $0xc] sm:$0xf]
  %v2028 = vld [vmem:[%s3 + $0x10] sm:$0xf]
  %v2029 = vld [vmem:[%s3 + $0x14] sm:$0xf]
  %v2030 = vld [vmem:[%s3 + $0x18] sm:$0xf]
  %v2031 = vld [vmem:[%s3 + $0x1c] sm:$0xf]
  %v2032 = vld [vmem:[%s3 + $0x20] sm:$0xf]
  %v2033 = vld [vmem:[%s3 + $0x24] sm:$0xf]
  %v2034 = vld [vmem:[%s3 + $0x28] sm:$0xf]
  %v2035 = vld [vmem:[%s3 + $0x2c] sm:$0xf]
  %v2036 = vld [vmem:[%s3 + $0x30] sm:$0xf]
  %v2037 = vld [vmem:[%s3 + $0x34] sm:$0xf]
  %v2038 = vld [vmem:[%s3 + $0x38] sm:$0xf]
  %v2039 = vld [vmem:[%s3 + $0x3c] sm:$0xf]
  %v2040 = vld [vmem:[%s4] sm:$0x1]
  %v2042 = vperm.slane %v2040, 0
  %v2060 = vunpack.c.l.b16 %v2024
  %v2061 = vunpack.c.l.b16 %v2025
  %v2062 = vunpack.c.l.b16 %v2026
  %v2063 = vunpack.c.l.b16 %v2027
  %v2064 = vunpack.c.l.b16 %v2028
  %v2065 = vunpack.c.l.b16 %v2029
  %v2066 = vunpack.c.l.b16 %v2030
  %v2067 = vunpack.c.l.b16 %v2031
  %v2068 = vunpack.c.l.b16 %v2032
  %v2069 = vunpack.c.l.b16 %v2033
  %v2070 = vunpack.c.l.b16 %v2034
  %v2071 = vunpack.c.l.b16 %v2035
  %v2072 = vunpack.c.l.b16 %v2036
  %v2073 = vunpack.c.l.b16 %v2037
  %v2074 = vunpack.c.l.b16 %v2038
  %v2075 = vunpack.c.l.b16 %v2039
  %v2076 = vpack.c.b16 %v2061, %v2060
  %v2077 = vpack.c.b16 %v2063, %v2062
  %v2078 = vpack.c.b16 %v2065, %v2064
  %v2079 = vpack.c.b16 %v2067, %v2066
  %v2080 = vpack.c.b16 %v2069, %v2068
  %v2081 = vpack.c.b16 %v2071, %v2070
  %v2082 = vpack.c.b16 %v2073, %v2072
  %v2083 = vpack.c.b16 %v2075, %v2074
  %2092 = vmatpush.bf16.msra.mxu0 %v2083
  %2093 = vmatpush.bf16.msra.mxu0 %v2082
  %2094 = vmatpush.bf16.msra.mxu0 %v2081
  %2095 = vmatpush.bf16.msra.mxu0 %v2080
  %2096 = vmatpush.bf16.msra.mxu0 %v2079
  %2097 = vmatpush.bf16.msra.mxu0 %v2078
  %2098 = vmatpush.bf16.msra.mxu0 %v2077
  %2099 = vmatpush.bf16.msra.mxu0 %v2076
  %2100 = vmatmul.bf16.gmra.mxu0 %v2023
  %v2101 = vpop.f32.mrf.mxu0
  %v2102 = vadd.f32 %v2042, %v2101
  %v2103 = vpop.f32.mrf.mxu0
  %2104 = vdwg.mxu0
  %vm2105 = vcmask 80896
  %2106 = vst.msk [vmem:[%s5] sm:$0xff] %vm2105, %v2102
  // Predicated region
  $region22: #{number_classifier_forward.5} parent=0 // pred_check
    _
  $region23: #{number_classifier_forward.5} parent=0 // pred_check_branch
    %2108 = sbr.rel (0) target = $region25
  $region24: #{number_classifier_forward.5} parent=0 // pred_region
    _
  $region25: #{number_classifier_forward.5} parent=0 // pred_fallthru
    _
  // Predicated region
  $region26: #{number_classifier_forward.5} parent=0 // pred_check
    _
  $region27: #{number_classifier_forward.5} parent=0 // pred_check_branch
    %2110 = sbr.rel (0) target = $region29
  $region28: #{number_classifier_forward.5} parent=0 // pred_region
    _
  $region29: #{number_classifier_forward.5} parent=0 // pred_fallthru
    _

</llo_original>
